<compile_context>
chip_gen: v7x
topology: tpu7x:2x2x1
jax: 0.10.0
libtpu: 0.0.40
codegen_flags: <defaults>
</compile_context>

<pallas_src>
import functools

import jax
import jax.numpy as jnp
from jax.experimental import pallas as pl
from jax.experimental.pallas import tpu as pltpu


KH = 9                   # unified tap grid = receptive field of dilated-5x5 (d=2)
PAD = (KH - 1) // 2      # 4
N_TAPS = KH * KH         # 81 conv taps
T_ALL = N_TAPS + 2       # + bias tap (ones) + skip tap (raw centred window)


def embed_kernel(w_oihw, dilation):
    """Embed a PyTorch-layout conv weight (O, I, kh, kw) into the unified
    (KH*KH, C_in, C_out) tap grid (dilation expanded, centred)."""
    cout, cin, kh, kw = w_oihw.shape
    eff = (kh - 1) * dilation + 1
    off = (KH - eff) // 2
    w = jnp.zeros((KH, KH, cin, cout), jnp.float32)
    for i in range(kh):
        for j in range(kw):
            w = w.at[off + i * dilation, off + j * dilation].set(w_oihw[:, :, i, j].T)
    return w.reshape(KH * KH, cin, cout)


def _mixed_op_kernel(x_ref, wbig_ref, out_ref, xcol_ref, *, NC, Wp, HWp, Lpad):
    # x_ref:    VMEM (NC, Lpad)       padded + width-flattened input of THIS op
    # wbig_ref: VMEM (NC, T_ALL*NC)   pre-mixed block-diagonal weight slab of THIS op
    # out_ref:  VMEM (NC, HWp)        width-flattened output (valid cols are w < W)
    # xcol_ref: VMEM (T_ALL*NC, HWp)  scratch: im2col slab (+ ones / raw-skip blocks)
    xraw = x_ref[...]                      # single (NC, Lpad) load
    xr = jnp.maximum(xraw, 0.0)            # ReLU once, held in registers

    # 81 unified-grid taps: one XLU lane rotate + one aligned (NC, HWp) store each.
    # pltpu.roll follows jnp.roll semantics, so roll by (Lpad - off) brings
    # element (j + off) of xr to lane j; no used element wraps (off + j <= 583 < Lpad).
    for ky in range(KH):
        for kx in range(KH):
            off = ky * Wp + kx
            tap = xr if off == 0 else pltpu.roll(xr, Lpad - off, axis=1)
            t = ky * KH + kx
            xcol_ref[t * NC:(t + 1) * NC, :] = tap[:, :HWp]

    # Bias tap: block of ones; wbig holds diag(mixed bias) in these columns.
    xcol_ref[N_TAPS * NC:(N_TAPS + 1) * NC, :] = jnp.ones((NC, HWp), jnp.float32)
    # Skip-connect tap: RAW (no ReLU) centred window; wbig holds w_skip * I there.
    center = PAD * Wp + PAD
    xcol_ref[(N_TAPS + 1) * NC:(N_TAPS + 2) * NC, :] = (
        pltpu.roll(xraw, Lpad - center, axis=1)[:, :HWp])

    # One MXU contraction: conv mixture + bias + skip branch in a single dot.
    out_ref[...] = jnp.dot(wbig_ref[...], xcol_ref[...],
                           preferred_element_type=jnp.float32)


def _premix_weight_slab(conv_ws, conv_bs, dilations, mix_w, N, C):
    """Pre-mix one MixedOp's conv kernels/biases and the skip weight with the
    architecture weights into a single block-diagonal (NC, T_ALL*NC) slab."""
    NC = N * C
    mix_w = mix_w.astype(jnp.float32)
    ncv = len(conv_ws)
    emb = jnp.stack([embed_kernel(w.astype(jnp.float32), d)
                     for w, d in zip(conv_ws, dilations)])            # (5, 81, C, C)
    wmix = jnp.einsum('j,jtio->tio', mix_w[2:2 + ncv], emb)           # (81, C, C)
    bvec = jnp.einsum('j,jc->c', mix_w[2:2 + ncv],
                      jnp.stack(conv_bs).astype(jnp.float32))         # (C,)
    bias_tap = jnp.eye(C, dtype=jnp.float32) * bvec[None, :]          # [i,o] = b[o]*d(i,o)
    skip_tap = mix_w[1] * jnp.eye(C, dtype=jnp.float32)               # [i,o] = w1*d(i,o)
    emb_all = jnp.concatenate([wmix, bias_tap[None], skip_tap[None]], axis=0)  # (83,C,C)
    # Block-diagonal over the N images folded into the sublane (matmul-M) axis:
    #   wbig[n*C+o, t*NC + m*C + i] = emb_all[t, i, o] * (n == m)
    blk = jnp.einsum('tio,nm->tnomi', emb_all, jnp.eye(N, dtype=jnp.float32))
    return blk.reshape(T_ALL, NC, NC).transpose(1, 0, 2).reshape(NC, T_ALL * NC)


def batched_mixed_op_forward(xs_nchw, conv_weights, conv_biases, dilations, mix_weights):
    """G MixedOps (the c3..c6-style instances of OptimizedDisBlock) in ONE pallas_call.

    xs_nchw:      (G, N, C, H, W) per-instance input activations
    conv_weights: [G][5] conv kernels in PyTorch OIHW layout
    conv_biases:  [G][5] conv biases, shape (C,)
    dilations:    [5]    dilation per conv primitive
    mix_weights:  (G, 7) architecture weights over PRIMITIVES
    returns:      (G, N, C, H, W)
    """
    G, N, C, H, W = xs_nchw.shape
    Hp, Wp = H + 2 * PAD, W + 2 * PAD
    HWp = H * Wp                     # width-flattened output length per row
    L = Hp * Wp
    NC = N * C
    # last tap window ends at (KH-1)*Wp + (KH-1) + HWp; pad lanes to 128 multiple
    need = max(L, (KH - 1) * Wp + (KH - 1) + HWp)
    Lpad = ((need + 127) // 128) * 128

    xs_nchw = xs_nchw.astype(jnp.float32)

    # ---- glue (XLA): zero-pad + width-flatten; reshapes only, no transposes ----
    # (relu(0) == 0, so padding before the in-kernel ReLU == "same" padding.)
    xpad = jnp.pad(xs_nchw, ((0, 0), (0, 0), (0, 0), (PAD, PAD), (PAD, PAD)))
    xflat = jnp.pad(xpad.reshape(G, NC, L), ((0, 0), (0, 0), (0, Lpad - L)))

    # ---- glue (XLA): per-op pre-mixed block-diagonal weight slabs ----
    wbig = jnp.stack([
        _premix_weight_slab(conv_weights[g], conv_biases[g], dilations,
                            mix_weights[g], N, C)
        for g in range(G)])                                    # (G, NC, 83*NC)

    kernel = functools.partial(_mixed_op_kernel, NC=NC, Wp=Wp, HWp=HWp, Lpad=Lpad)

    out_flat = pl.pallas_call(
        kernel,
        out_shape=jax.ShapeDtypeStruct((G, NC, HWp), jnp.float32),
        grid=(G,),
        in_specs=[
            pl.BlockSpec((None, NC, Lpad), lambda g: (g, 0, 0)),          # x
            pl.BlockSpec((None, NC, T_ALL * NC), lambda g: (g, 0, 0)),    # wbig
        ],
        out_specs=pl.BlockSpec((None, NC, HWp), lambda g: (g, 0, 0)),
        scratch_shapes=[
            pltpu.VMEM((T_ALL * NC, HWp), jnp.float32),    # im2col slab (~1 MiB)
        ],
        compiler_params=pltpu.CompilerParams(
            dimension_semantics=("parallel",)),    # v7x megacore shards the G ops
    )(xflat, wbig)

    # keep only the valid output columns (w < W) of each width-flattened row
    return out_flat.reshape(G, N, C, H, Wp)[..., :W]


def ref_mixed_op(x_nchw, conv_ws, conv_bs, dilations, mix_w):
    """Pure-JAX reference mirroring the PyTorch MixedOp forward."""
    xr = jnp.maximum(x_nchw, 0.0)
    outs = [jnp.zeros_like(x_nchw), x_nchw]                  # Zero, Identity
    for w, b, d in zip(conv_ws, conv_bs, dilations):
        k = w.shape[-1]
        p = ((k - 1) * d) // 2
        y = jax.lax.conv_general_dilated(
            xr, w, window_strides=(1, 1), padding=[(p, p), (p, p)],
            rhs_dilation=(d, d), dimension_numbers=("NCHW", "OIHW", "NCHW"))
        outs.append(y + b[None, :, None, None])
    return sum(wi * o for wi, o in zip(mix_w, outs))


if __name__ == "__main__":
    N, C, H, W = 2, 4, 16, 16     # in_ch == out_ch == 4, stride == 1
    G = 4                         # 4 MixedOp instances fused into one pallas_call

    key = jax.random.PRNGKey(0)
    k_act, k_param = jax.random.split(key)

    # two activation tensors standing in for OptimizedDisBlock's node0 / x;
    # instances 0,1 (c3,c4) consume the first, instances 2,3 (c5,c6) the second
    acts = jax.random.normal(k_act, (2, N, C, H, W), jnp.float32)
    xs = jnp.stack([acts[0], acts[0], acts[1], acts[1]])     # (G, N, C, H, W)

    conv_defs = [(1, 1), (3, 1), (5, 1), (3, 2), (5, 2)]     # (kernel_size, dilation)
    dilations = [d for _, d in conv_defs]

    conv_weights, conv_biases, mix_list = [], [], []
    pkeys = jax.random.split(k_param, G)
    for g in range(G):
        gkeys = jax.random.split(pkeys[g], 2 * len(conv_defs) + 1)
        ws, bs = [], []
        for i, (k, _) in enumerate(conv_defs):
            ws.append(0.1 * jax.random.normal(gkeys[2 * i], (C, C, k, k), jnp.float32))
            bs.append(0.1 * jax.random.normal(gkeys[2 * i + 1], (C,), jnp.float32))
        conv_weights.append(ws)
        conv_biases.append(bs)
        mix_list.append(jax.nn.softmax(jax.random.normal(gkeys[-1], (7,), jnp.float32)))
    mix_weights = jnp.stack(mix_list)                        # (G, 7)

    out = batched_mixed_op_forward(xs, conv_weights, conv_biases, dilations, mix_weights)
    out = jax.block_until_ready(out)
    assert out.shape == (G, N, C, H, W)

    for g in range(G):
        ref = ref_mixed_op(xs[g], conv_weights[g], conv_biases[g], dilations,
                           mix_weights[g])
        assert jnp.allclose(out[g], ref, atol=2e-3, rtol=2e-3), f"mismatch at op {g}"

    print("KERNEL_OK")
</pallas_src>

<mosaic_0001>
module attributes {stable_mosaic.version = 11 : i64} {
  func.func @_mixed_op_kernel(%arg0: i32, %arg1: memref<1x8x640xf32, #tpu.memory_space<vmem>>, %arg2: memref<1x8x664xf32, #tpu.memory_space<vmem>>, %arg3: memref<1x8x384xf32, #tpu.memory_space<vmem>>, %arg4: memref<664x384xf32, #tpu.memory_space<vmem>>) attributes {dimension_semantics = [#tpu.dimension_semantics<parallel>], iteration_bounds = array<i64: 4>, scalar_prefetch = 0 : i64, scratch_operands = 1 : i64, tpu.core_type = #tpu.core_type<tc>, window_params = [{transform_indices = @transform_0, window_bounds = array<i64: 1, 8, 640>}, {transform_indices = @transform_1, window_bounds = array<i64: 1, 8, 664>}, {transform_indices = @transform_2, window_bounds = array<i64: 1, 8, 384>}]} {
    %c0 = arith.constant 0 : index
    %c0_0 = arith.constant 0 : index
    %c0_1 = arith.constant 0 : index
    %0 = vector.load %arg1[%c0, %c0_0, %c0_1] : memref<1x8x640xf32, #tpu.memory_space<vmem>>, vector<1x8x640xf32>
    %1 = vector.shape_cast %0 : vector<1x8x640xf32> to vector<8x640xf32>
    %cst = arith.constant 0.000000e+00 : f32
    %2 = vector.broadcast %cst : f32 to vector<8x640xf32>
    %3 = arith.maximumf %1, %2 : vector<8x640xf32>
    %4 = vector.extract_strided_slice %3 {offsets = [0, 0], sizes = [8, 384], strides = [1, 1]} : vector<8x640xf32> to vector<8x384xf32>
    %c0_2 = arith.constant 0 : index
    %c0_3 = arith.constant 0 : index
    %5 = vector.load %arg4[%c0_2, %c0_3] : memref<664x384xf32, #tpu.memory_space<vmem>>, vector<8x384xf32>
    tpu.vector_store %arg4[%c0_2, %c0_3], %4 {strides = array<i32>} : memref<664x384xf32, #tpu.memory_space<vmem>>, vector<8x384xf32>,
    %c639_i32 = arith.constant 639 : i32
    %6 = tpu.dynamic_rotate %3 by %c639_i32 dim 1 : vector<8x640xf32>, i32 -> vector<8x640xf32>
    %7 = vector.extract_strided_slice %6 {offsets = [0, 0], sizes = [8, 384], strides = [1, 1]} : vector<8x640xf32> to vector<8x384xf32>
    %c8 = arith.constant 8 : index
    %c0_4 = arith.constant 0 : index
    %8 = vector.load %arg4[%c8, %c0_4] : memref<664x384xf32, #tpu.memory_space<vmem>>, vector<8x384xf32>
    tpu.vector_store %arg4[%c8, %c0_4], %7 {strides = array<i32>} : memref<664x384xf32, #tpu.memory_space<vmem>>, vector<8x384xf32>,
    %c638_i32 = arith.constant 638 : i32
    %9 = tpu.dynamic_rotate %3 by %c638_i32 dim 1 : vector<8x640xf32>, i32 -> vector<8x640xf32>
    %10 = vector.extract_strided_slice %9 {offsets = [0, 0], sizes = [8, 384], strides = [1, 1]} : vector<8x640xf32> to vector<8x384xf32>
    %c16 = arith.constant 16 : index
    %c0_5 = arith.constant 0 : index
    %11 = vector.load %arg4[%c16, %c0_5] : memref<664x384xf32, #tpu.memory_space<vmem>>, vector<8x384xf32>
    tpu.vector_store %arg4[%c16, %c0_5], %10 {strides = array<i32>} : memref<664x384xf32, #tpu.memory_space<vmem>>, vector<8x384xf32>,
    %c637_i32 = arith.constant 637 : i32
    %12 = tpu.dynamic_rotate %3 by %c637_i32 dim 1 : vector<8x640xf32>, i32 -> vector<8x640xf32>
    %13 = vector.extract_strided_slice %12 {offsets = [0, 0], sizes = [8, 384], strides = [1, 1]} : vector<8x640xf32> to vector<8x384xf32>
    %c24 = arith.constant 24 : index
    %c0_6 = arith.constant 0 : index
    %14 = vector.load %arg4[%c24, %c0_6] : memref<664x384xf32, #tpu.memory_space<vmem>>, vector<8x384xf32>
    tpu.vector_store %arg4[%c24, %c0_6], %13 {strides = array<i32>} : memref<664x384xf32, #tpu.memory_space<vmem>>, vector<8x384xf32>,
    %c636_i32 = arith.constant 636 : i32
    %15 = tpu.dynamic_rotate %3 by %c636_i32 dim 1 : vector<8x640xf32>, i32 -> vector<8x640xf32>
    %16 = vector.extract_strided_slice %15 {offsets = [0, 0], sizes = [8, 384], strides = [1, 1]} : vector<8x640xf32> to vector<8x384xf32>
    %c32 = arith.constant 32 : index
    %c0_7 = arith.constant 0 : index
    %17 = vector.load %arg4[%c32, %c0_7] : memref<664x384xf32, #tpu.memory_space<vmem>>, vector<8x384xf32>
    tpu.vector_store %arg4[%c32, %c0_7], %16 {strides = array<i32>} : memref<664x384xf32, #tpu.memory_space<vmem>>, vector<8x384xf32>,
    %c635_i32 = arith.constant 635 : i32
    %18 = tpu.dynamic_rotate %3 by %c635_i32 dim 1 : vector<8x640xf32>, i32 -> vector<8x640xf32>
    %19 = vector.extract_strided_slice %18 {offsets = [0, 0], sizes = [8, 384], strides = [1, 1]} : vector<8x640xf32> to vector<8x384xf32>
    %c40 = arith.constant 40 : index
    %c0_8 = arith.constant 0 : index
    %20 = vector.load %arg4[%c40, %c0_8] : memref<664x384xf32, #tpu.memory_space<vmem>>, vector<8x384xf32>
    tpu.vector_store %arg4[%c40, %c0_8], %19 {strides = array<i32>} : memref<664x384xf32, #tpu.memory_space<vmem>>, vector<8x384xf32>,
    %c634_i32 = arith.constant 634 : i32
    %21 = tpu.dynamic_rotate %3 by %c634_i32 dim 1 : vector<8x640xf32>, i32 -> vector<8x640xf32>
    %22 = vector.extract_strided_slice %21 {offsets = [0, 0], sizes = [8, 384], strides = [1, 1]} : vector<8x640xf32> to vector<8x384xf32>
    %c48 = arith.constant 48 : index
    %c0_9 = arith.constant 0 : index
    %23 = vector.load %arg4[%c48, %c0_9] : memref<664x384xf32, #tpu.memory_space<vmem>>, vector<8x384xf32>
    tpu.vector_store %arg4[%c48, %c0_9], %22 {strides = array<i32>} : memref<664x384xf32, #tpu.memory_space<vmem>>, vector<8x384xf32>,
    %c633_i32 = arith.constant 633 : i32
    %24 = tpu.dynamic_rotate %3 by %c633_i32 dim 1 : vector<8x640xf32>, i32 -> vector<8x640xf32>
    %25 = vector.extract_strided_slice %24 {offsets = [0, 0], sizes = [8, 384], strides = [1, 1]} : vector<8x640xf32> to vector<8x384xf32>
    %c56 = arith.constant 56 : index
    %c0_10 = arith.constant 0 : index
    %26 = vector.load %arg4[%c56, %c0_10] : memref<664x384xf32, #tpu.memory_space<vmem>>, vector<8x384xf32>
    tpu.vector_store %arg4[%c56, %c0_10], %25 {strides = array<i32>} : memref<664x384xf32, #tpu.memory_space<vmem>>, vector<8x384xf32>,
    %c632_i32 = arith.constant 632 : i32
    %27 = tpu.dynamic_rotate %3 by %c632_i32 dim 1 : vector<8x640xf32>, i32 -> vector<8x640xf32>
    %28 = vector.extract_strided_slice %27 {offsets = [0, 0], sizes = [8, 384], strides = [1, 1]} : vector<8x640xf32> to vector<8x384xf32>
    %c64 = arith.constant 64 : index
    %c0_11 = arith.constant 0 : index
    %29 = vector.load %arg4[%c64, %c0_11] : memref<664x384xf32, #tpu.memory_space<vmem>>, vector<8x384xf32>
    tpu.vector_store %arg4[%c64, %c0_11], %28 {strides = array<i32>} : memref<664x384xf32, #tpu.memory_space<vmem>>, vector<8x384xf32>,
    %c616_i32 = arith.constant 616 : i32
    %30 = tpu.dynamic_rotate %3 by %c616_i32 dim 1 : vector<8x640xf32>, i32 -> vector<8x640xf32>
    %31 = vector.extract_strided_slice %30 {offsets = [0, 0], sizes = [8, 384], strides = [1, 1]} : vector<8x640xf32> to vector<8x384xf32>
    %c72 = arith.constant 72 : index
    %c0_12 = arith.constant 0 : index
    %32 = vector.load %arg4[%c72, %c0_12] : memref<664x384xf32, #tpu.memory_space<vmem>>, vector<8x384xf32>
    tpu.vector_store %arg4[%c72, %c0_12], %31 {strides = array<i32>} : memref<664x384xf32, #tpu.memory_space<vmem>>, vector<8x384xf32>,
    %c615_i32 = arith.constant 615 : i32
    %33 = tpu.dynamic_rotate %3 by %c615_i32 dim 1 : vector<8x640xf32>, i32 -> vector<8x640xf32>
    %34 = vector.extract_strided_slice %33 {offsets = [0, 0], sizes = [8, 384], strides = [1, 1]} : vector<8x640xf32> to vector<8x384xf32>
    %c80 = arith.constant 80 : index
    %c0_13 = arith.constant 0 : index
    %35 = vector.load %arg4[%c80, %c0_13] : memref<664x384xf32, #tpu.memory_space<vmem>>, vector<8x384xf32>
    tpu.vector_store %arg4[%c80, %c0_13], %34 {strides = array<i32>} : memref<664x384xf32, #tpu.memory_space<vmem>>, vector<8x384xf32>,
    %c614_i32 = arith.constant 614 : i32
    %36 = tpu.dynamic_rotate %3 by %c614_i32 dim 1 : vector<8x640xf32>, i32 -> vector<8x640xf32>
    %37 = vector.extract_strided_slice %36 {offsets = [0, 0], sizes = [8, 384], strides = [1, 1]} : vector<8x640xf32> to vector<8x384xf32>
    %c88 = arith.constant 88 : index
    %c0_14 = arith.constant 0 : index
    %38 = vector.load %arg4[%c88, %c0_14] : memref<664x384xf32, #tpu.memory_space<vmem>>, vector<8x384xf32>
    tpu.vector_store %arg4[%c88, %c0_14], %37 {strides = array<i32>} : memref<664x384xf32, #tpu.memory_space<vmem>>, vector<8x384xf32>,
    %c613_i32 = arith.constant 613 : i32
    %39 = tpu.dynamic_rotate %3 by %c613_i32 dim 1 : vector<8x640xf32>, i32 -> vector<8x640xf32>
    %40 = vector.extract_strided_slice %39 {offsets = [0, 0], sizes = [8, 384], strides = [1, 1]} : vector<8x640xf32> to vector<8x384xf32>
    %c96 = arith.constant 96 : index
    %c0_15 = arith.constant 0 : index
    %41 = vector.load %arg4[%c96, %c0_15] : memref<664x384xf32, #tpu.memory_space<vmem>>, vector<8x384xf32>
    tpu.vector_store %arg4[%c96, %c0_15], %40 {strides = array<i32>} : memref<664x384xf32, #tpu.memory_space<vmem>>, vector<8x384xf32>,
    %c612_i32 = arith.constant 612 : i32
    %42 = tpu.dynamic_rotate %3 by %c612_i32 dim 1 : vector<8x640xf32>, i32 -> vector<8x640xf32>
    %43 = vector.extract_strided_slice %42 {offsets = [0, 0], sizes = [8, 384], strides = [1, 1]} : vector<8x640xf32> to vector<8x384xf32>
    %c104 = arith.constant 104 : index
    %c0_16 = arith.constant 0 : index
    %44 = vector.load %arg4[%c104, %c0_16] : memref<664x384xf32, #tpu.memory_space<vmem>>, vector<8x384xf32>
    tpu.vector_store %arg4[%c104, %c0_16], %43 {strides = array<i32>} : memref<664x384xf32, #tpu.memory_space<vmem>>, vector<8x384xf32>,
    %c611_i32 = arith.constant 611 : i32
    %45 = tpu.dynamic_rotate %3 by %c611_i32 dim 1 : vector<8x640xf32>, i32 -> vector<8x640xf32>
    %46 = vector.extract_strided_slice %45 {offsets = [0, 0], sizes = [8, 384], strides = [1, 1]} : vector<8x640xf32> to vector<8x384xf32>
    %c112 = arith.constant 112 : index
    %c0_17 = arith.constant 0 : index
    %47 = vector.load %arg4[%c112, %c0_17] : memref<664x384xf32, #tpu.memory_space<vmem>>, vector<8x384xf32>
    tpu.vector_store %arg4[%c112, %c0_17], %46 {strides = array<i32>} : memref<664x384xf32, #tpu.memory_space<vmem>>, vector<8x384xf32>,
    %c610_i32 = arith.constant 610 : i32
    %48 = tpu.dynamic_rotate %3 by %c610_i32 dim 1 : vector<8x640xf32>, i32 -> vector<8x640xf32>
    %49 = vector.extract_strided_slice %48 {offsets = [0, 0], sizes = [8, 384], strides = [1, 1]} : vector<8x640xf32> to vector<8x384xf32>
    %c120 = arith.constant 120 : index
    %c0_18 = arith.constant 0 : index
    %50 = vector.load %arg4[%c120, %c0_18] : memref<664x384xf32, #tpu.memory_space<vmem>>, vector<8x384xf32>
    tpu.vector_store %arg4[%c120, %c0_18], %49 {strides = array<i32>} : memref<664x384xf32, #tpu.memory_space<vmem>>, vector<8x384xf32>,
    %c609_i32 = arith.constant 609 : i32
    %51 = tpu.dynamic_rotate %3 by %c609_i32 dim 1 : vector<8x640xf32>, i32 -> vector<8x640xf32>
    %52 = vector.extract_strided_slice %51 {offsets = [0, 0], sizes = [8, 384], strides = [1, 1]} : vector<8x640xf32> to vector<8x384xf32>
    %c128 = arith.constant 128 : index
    %c0_19 = arith.constant 0 : index
    %53 = vector.load %arg4[%c128, %c0_19] : memref<664x384xf32, #tpu.memory_space<vmem>>, vector<8x384xf32>
    tpu.vector_store %arg4[%c128, %c0_19], %52 {strides = array<i32>} : memref<664x384xf32, #tpu.memory_space<vmem>>, vector<8x384xf32>,
    %c608_i32 = arith.constant 608 : i32
    %54 = tpu.dynamic_rotate %3 by %c608_i32 dim 1 : vector<8x640xf32>, i32 -> vector<8x640xf32>
    %55 = vector.extract_strided_slice %54 {offsets = [0, 0], sizes = [8, 384], strides = [1, 1]} : vector<8x640xf32> to vector<8x384xf32>
    %c136 = arith.constant 136 : index
    %c0_20 = arith.constant 0 : index
    %56 = vector.load %arg4[%c136, %c0_20] : memref<664x384xf32, #tpu.memory_space<vmem>>, vector<8x384xf32>
    tpu.vector_store %arg4[%c136, %c0_20], %55 {strides = array<i32>} : memref<664x384xf32, #tpu.memory_space<vmem>>, vector<8x384xf32>,
    %c592_i32 = arith.constant 592 : i32
    %57 = tpu.dynamic_rotate %3 by %c592_i32 dim 1 : vector<8x640xf32>, i32 -> vector<8x640xf32>
    %58 = vector.extract_strided_slice %57 {offsets = [0, 0], sizes = [8, 384], strides = [1, 1]} : vector<8x640xf32> to vector<8x384xf32>
    %c144 = arith.constant 144 : index
    %c0_21 = arith.constant 0 : index
    %59 = vector.load %arg4[%c144, %c0_21] : memref<664x384xf32, #tpu.memory_space<vmem>>, vector<8x384xf32>
    tpu.vector_store %arg4[%c144, %c0_21], %58 {strides = array<i32>} : memref<664x384xf32, #tpu.memory_space<vmem>>, vector<8x384xf32>,
    %c591_i32 = arith.constant 591 : i32
    %60 = tpu.dynamic_rotate %3 by %c591_i32 dim 1 : vector<8x640xf32>, i32 -> vector<8x640xf32>
    %61 = vector.extract_strided_slice %60 {offsets = [0, 0], sizes = [8, 384], strides = [1, 1]} : vector<8x640xf32> to vector<8x384xf32>
    %c152 = arith.constant 152 : index
    %c0_22 = arith.constant 0 : index
    %62 = vector.load %arg4[%c152, %c0_22] : memref<664x384xf32, #tpu.memory_space<vmem>>, vector<8x384xf32>
    tpu.vector_store %arg4[%c152, %c0_22], %61 {strides = array<i32>} : memref<664x384xf32, #tpu.memory_space<vmem>>, vector<8x384xf32>,
    %c590_i32 = arith.constant 590 : i32
    %63 = tpu.dynamic_rotate %3 by %c590_i32 dim 1 : vector<8x640xf32>, i32 -> vector<8x640xf32>
    %64 = vector.extract_strided_slice %63 {offsets = [0, 0], sizes = [8, 384], strides = [1, 1]} : vector<8x640xf32> to vector<8x384xf32>
    %c160 = arith.constant 160 : index
    %c0_23 = arith.constant 0 : index
    %65 = vector.load %arg4[%c160, %c0_23] : memref<664x384xf32, #tpu.memory_space<vmem>>, vector<8x384xf32>
    tpu.vector_store %arg4[%c160, %c0_23], %64 {strides = array<i32>} : memref<664x384xf32, #tpu.memory_space<vmem>>, vector<8x384xf32>,
    %c589_i32 = arith.constant 589 : i32
    %66 = tpu.dynamic_rotate %3 by %c589_i32 dim 1 : vector<8x640xf32>, i32 -> vector<8x640xf32>
    %67 = vector.extract_strided_slice %66 {offsets = [0, 0], sizes = [8, 384], strides = [1, 1]} : vector<8x640xf32> to vector<8x384xf32>
    %c168 = arith.constant 168 : index
    %c0_24 = arith.constant 0 : index
    %68 = vector.load %arg4[%c168, %c0_24] : memref<664x384xf32, #tpu.memory_space<vmem>>, vector<8x384xf32>
    tpu.vector_store %arg4[%c168, %c0_24], %67 {strides = array<i32>} : memref<664x384xf32, #tpu.memory_space<vmem>>, vector<8x384xf32>,
    %c588_i32 = arith.constant 588 : i32
    %69 = tpu.dynamic_rotate %3 by %c588_i32 dim 1 : vector<8x640xf32>, i32 -> vector<8x640xf32>
    %70 = vector.extract_strided_slice %69 {offsets = [0, 0], sizes = [8, 384], strides = [1, 1]} : vector<8x640xf32> to vector<8x384xf32>
    %c176 = arith.constant 176 : index
    %c0_25 = arith.constant 0 : index
    %71 = vector.load %arg4[%c176, %c0_25] : memref<664x384xf32, #tpu.memory_space<vmem>>, vector<8x384xf32>
    tpu.vector_store %arg4[%c176, %c0_25], %70 {strides = array<i32>} : memref<664x384xf32, #tpu.memory_space<vmem>>, vector<8x384xf32>,
    %c587_i32 = arith.constant 587 : i32
    %72 = tpu.dynamic_rotate %3 by %c587_i32 dim 1 : vector<8x640xf32>, i32 -> vector<8x640xf32>
    %73 = vector.extract_strided_slice %72 {offsets = [0, 0], sizes = [8, 384], strides = [1, 1]} : vector<8x640xf32> to vector<8x384xf32>
    %c184 = arith.constant 184 : index
    %c0_26 = arith.constant 0 : index
    %74 = vector.load %arg4[%c184, %c0_26] : memref<664x384xf32, #tpu.memory_space<vmem>>, vector<8x384xf32>
    tpu.vector_store %arg4[%c184, %c0_26], %73 {strides = array<i32>} : memref<664x384xf32, #tpu.memory_space<vmem>>, vector<8x384xf32>,
    %c586_i32 = arith.constant 586 : i32
    %75 = tpu.dynamic_rotate %3 by %c586_i32 dim 1 : vector<8x640xf32>, i32 -> vector<8x640xf32>
    %76 = vector.extract_strided_slice %75 {offsets = [0, 0], sizes = [8, 384], strides = [1, 1]} : vector<8x640xf32> to vector<8x384xf32>
    %c192 = arith.constant 192 : index
    %c0_27 = arith.constant 0 : index
    %77 = vector.load %arg4[%c192, %c0_27] : memref<664x384xf32, #tpu.memory_space<vmem>>, vector<8x384xf32>
    tpu.vector_store %arg4[%c192, %c0_27], %76 {strides = array<i32>} : memref<664x384xf32, #tpu.memory_space<vmem>>, vector<8x384xf32>,
    %c585_i32 = arith.constant 585 : i32
    %78 = tpu.dynamic_rotate %3 by %c585_i32 dim 1 : vector<8x640xf32>, i32 -> vector<8x640xf32>
    %79 = vector.extract_strided_slice %78 {offsets = [0, 0], sizes = [8, 384], strides = [1, 1]} : vector<8x640xf32> to vector<8x384xf32>
    %c200 = arith.constant 200 : index
    %c0_28 = arith.constant 0 : index
    %80 = vector.load %arg4[%c200, %c0_28] : memref<664x384xf32, #tpu.memory_space<vmem>>, vector<8x384xf32>
    tpu.vector_store %arg4[%c200, %c0_28], %79 {strides = array<i32>} : memref<664x384xf32, #tpu.memory_space<vmem>>, vector<8x384xf32>,
    %c584_i32 = arith.constant 584 : i32
    %81 = tpu.dynamic_rotate %3 by %c584_i32 dim 1 : vector<8x640xf32>, i32 -> vector<8x640xf32>
    %82 = vector.extract_strided_slice %81 {offsets = [0, 0], sizes = [8, 384], strides = [1, 1]} : vector<8x640xf32> to vector<8x384xf32>
    %c208 = arith.constant 208 : index
    %c0_29 = arith.constant 0 : index
    %83 = vector.load %arg4[%c208, %c0_29] : memref<664x384xf32, #tpu.memory_space<vmem>>, vector<8x384xf32>
    tpu.vector_store %arg4[%c208, %c0_29], %82 {strides = array<i32>} : memref<664x384xf32, #tpu.memory_space<vmem>>, vector<8x384xf32>,
    %c568_i32 = arith.constant 568 : i32
    %84 = tpu.dynamic_rotate %3 by %c568_i32 dim 1 : vector<8x640xf32>, i32 -> vector<8x640xf32>
    %85 = vector.extract_strided_slice %84 {offsets = [0, 0], sizes = [8, 384], strides = [1, 1]} : vector<8x640xf32> to vector<8x384xf32>
    %c216 = arith.constant 216 : index
    %c0_30 = arith.constant 0 : index
    %86 = vector.load %arg4[%c216, %c0_30] : memref<664x384xf32, #tpu.memory_space<vmem>>, vector<8x384xf32>
    tpu.vector_store %arg4[%c216, %c0_30], %85 {strides = array<i32>} : memref<664x384xf32, #tpu.memory_space<vmem>>, vector<8x384xf32>,
    %c567_i32 = arith.constant 567 : i32
    %87 = tpu.dynamic_rotate %3 by %c567_i32 dim 1 : vector<8x640xf32>, i32 -> vector<8x640xf32>
    %88 = vector.extract_strided_slice %87 {offsets = [0, 0], sizes = [8, 384], strides = [1, 1]} : vector<8x640xf32> to vector<8x384xf32>
    %c224 = arith.constant 224 : index
    %c0_31 = arith.constant 0 : index
    %89 = vector.load %arg4[%c224, %c0_31] : memref<664x384xf32, #tpu.memory_space<vmem>>, vector<8x384xf32>
    tpu.vector_store %arg4[%c224, %c0_31], %88 {strides = array<i32>} : memref<664x384xf32, #tpu.memory_space<vmem>>, vector<8x384xf32>,
    %c566_i32 = arith.constant 566 : i32
    %90 = tpu.dynamic_rotate %3 by %c566_i32 dim 1 : vector<8x640xf32>, i32 -> vector<8x640xf32>
    %91 = vector.extract_strided_slice %90 {offsets = [0, 0], sizes = [8, 384], strides = [1, 1]} : vector<8x640xf32> to vector<8x384xf32>
    %c232 = arith.constant 232 : index
    %c0_32 = arith.constant 0 : index
    %92 = vector.load %arg4[%c232, %c0_32] : memref<664x384xf32, #tpu.memory_space<vmem>>, vector<8x384xf32>
    tpu.vector_store %arg4[%c232, %c0_32], %91 {strides = array<i32>} : memref<664x384xf32, #tpu.memory_space<vmem>>, vector<8x384xf32>,
    %c565_i32 = arith.constant 565 : i32
    %93 = tpu.dynamic_rotate %3 by %c565_i32 dim 1 : vector<8x640xf32>, i32 -> vector<8x640xf32>
    %94 = vector.extract_strided_slice %93 {offsets = [0, 0], sizes = [8, 384], strides = [1, 1]} : vector<8x640xf32> to vector<8x384xf32>
    %c240 = arith.constant 240 : index
    %c0_33 = arith.constant 0 : index
    %95 = vector.load %arg4[%c240, %c0_33] : memref<664x384xf32, #tpu.memory_space<vmem>>, vector<8x384xf32>
    tpu.vector_store %arg4[%c240, %c0_33], %94 {strides = array<i32>} : memref<664x384xf32, #tpu.memory_space<vmem>>, vector<8x384xf32>,
    %c564_i32 = arith.constant 564 : i32
    %96 = tpu.dynamic_rotate %3 by %c564_i32 dim 1 : vector<8x640xf32>, i32 -> vector<8x640xf32>
    %97 = vector.extract_strided_slice %96 {offsets = [0, 0], sizes = [8, 384], strides = [1, 1]} : vector<8x640xf32> to vector<8x384xf32>
    %c248 = arith.constant 248 : index
    %c0_34 = arith.constant 0 : index
    %98 = vector.load %arg4[%c248, %c0_34] : memref<664x384xf32, #tpu.memory_space<vmem>>, vector<8x384xf32>
    tpu.vector_store %arg4[%c248, %c0_34], %97 {strides = array<i32>} : memref<664x384xf32, #tpu.memory_space<vmem>>, vector<8x384xf32>,
    %c563_i32 = arith.constant 563 : i32
    %99 = tpu.dynamic_rotate %3 by %c563_i32 dim 1 : vector<8x640xf32>, i32 -> vector<8x640xf32>
    %100 = vector.extract_strided_slice %99 {offsets = [0, 0], sizes = [8, 384], strides = [1, 1]} : vector<8x640xf32> to vector<8x384xf32>
    %c256 = arith.constant 256 : index
    %c0_35 = arith.constant 0 : index
    %101 = vector.load %arg4[%c256, %c0_35] : memref<664x384xf32, #tpu.memory_space<vmem>>, vector<8x384xf32>
    tpu.vector_store %arg4[%c256, %c0_35], %100 {strides = array<i32>} : memref<664x384xf32, #tpu.memory_space<vmem>>, vector<8x384xf32>,
    %c562_i32 = arith.constant 562 : i32
    %102 = tpu.dynamic_rotate %3 by %c562_i32 dim 1 : vector<8x640xf32>, i32 -> vector<8x640xf32>
    %103 = vector.extract_strided_slice %102 {offsets = [0, 0], sizes = [8, 384], strides = [1, 1]} : vector<8x640xf32> to vector<8x384xf32>
    %c264 = arith.constant 264 : index
    %c0_36 = arith.constant 0 : index
    %104 = vector.load %arg4[%c264, %c0_36] : memref<664x384xf32, #tpu.memory_space<vmem>>, vector<8x384xf32>
    tpu.vector_store %arg4[%c264, %c0_36], %103 {strides = array<i32>} : memref<664x384xf32, #tpu.memory_space<vmem>>, vector<8x384xf32>,
    %c561_i32 = arith.constant 561 : i32
    %105 = tpu.dynamic_rotate %3 by %c561_i32 dim 1 : vector<8x640xf32>, i32 -> vector<8x640xf32>
    %106 = vector.extract_strided_slice %105 {offsets = [0, 0], sizes = [8, 384], strides = [1, 1]} : vector<8x640xf32> to vector<8x384xf32>
    %c272 = arith.constant 272 : index
    %c0_37 = arith.constant 0 : index
    %107 = vector.load %arg4[%c272, %c0_37] : memref<664x384xf32, #tpu.memory_space<vmem>>, vector<8x384xf32>
    tpu.vector_store %arg4[%c272, %c0_37], %106 {strides = array<i32>} : memref<664x384xf32, #tpu.memory_space<vmem>>, vector<8x384xf32>,
    %c560_i32 = arith.constant 560 : i32
    %108 = tpu.dynamic_rotate %3 by %c560_i32 dim 1 : vector<8x640xf32>, i32 -> vector<8x640xf32>
    %109 = vector.extract_strided_slice %108 {offsets = [0, 0], sizes = [8, 384], strides = [1, 1]} : vector<8x640xf32> to vector<8x384xf32>
    %c280 = arith.constant 280 : index
    %c0_38 = arith.constant 0 : index
    %110 = vector.load %arg4[%c280, %c0_38] : memref<664x384xf32, #tpu.memory_space<vmem>>, vector<8x384xf32>
    tpu.vector_store %arg4[%c280, %c0_38], %109 {strides = array<i32>} : memref<664x384xf32, #tpu.memory_space<vmem>>, vector<8x384xf32>,
    %c544_i32 = arith.constant 544 : i32
    %111 = tpu.dynamic_rotate %3 by %c544_i32 dim 1 : vector<8x640xf32>, i32 -> vector<8x640xf32>
    %112 = vector.extract_strided_slice %111 {offsets = [0, 0], sizes = [8, 384], strides = [1, 1]} : vector<8x640xf32> to vector<8x384xf32>
    %c288 = arith.constant 288 : index
    %c0_39 = arith.constant 0 : index
    %113 = vector.load %arg4[%c288, %c0_39] : memref<664x384xf32, #tpu.memory_space<vmem>>, vector<8x384xf32>
    tpu.vector_store %arg4[%c288, %c0_39], %112 {strides = array<i32>} : memref<664x384xf32, #tpu.memory_space<vmem>>, vector<8x384xf32>,
    %c543_i32 = arith.constant 543 : i32
    %114 = tpu.dynamic_rotate %3 by %c543_i32 dim 1 : vector<8x640xf32>, i32 -> vector<8x640xf32>
    %115 = vector.extract_strided_slice %114 {offsets = [0, 0], sizes = [8, 384], strides = [1, 1]} : vector<8x640xf32> to vector<8x384xf32>
    %c296 = arith.constant 296 : index
    %c0_40 = arith.constant 0 : index
    %116 = vector.load %arg4[%c296, %c0_40] : memref<664x384xf32, #tpu.memory_space<vmem>>, vector<8x384xf32>
    tpu.vector_store %arg4[%c296, %c0_40], %115 {strides = array<i32>} : memref<664x384xf32, #tpu.memory_space<vmem>>, vector<8x384xf32>,
    %c542_i32 = arith.constant 542 : i32
    %117 = tpu.dynamic_rotate %3 by %c542_i32 dim 1 : vector<8x640xf32>, i32 -> vector<8x640xf32>
    %118 = vector.extract_strided_slice %117 {offsets = [0, 0], sizes = [8, 384], strides = [1, 1]} : vector<8x640xf32> to vector<8x384xf32>
    %c304 = arith.constant 304 : index
    %c0_41 = arith.constant 0 : index
    %119 = vector.load %arg4[%c304, %c0_41] : memref<664x384xf32, #tpu.memory_space<vmem>>, vector<8x384xf32>
    tpu.vector_store %arg4[%c304, %c0_41], %118 {strides = array<i32>} : memref<664x384xf32, #tpu.memory_space<vmem>>, vector<8x384xf32>,
    %c541_i32 = arith.constant 541 : i32
    %120 = tpu.dynamic_rotate %3 by %c541_i32 dim 1 : vector<8x640xf32>, i32 -> vector<8x640xf32>
    %121 = vector.extract_strided_slice %120 {offsets = [0, 0], sizes = [8, 384], strides = [1, 1]} : vector<8x640xf32> to vector<8x384xf32>
    %c312 = arith.constant 312 : index
    %c0_42 = arith.constant 0 : index
    %122 = vector.load %arg4[%c312, %c0_42] : memref<664x384xf32, #tpu.memory_space<vmem>>, vector<8x384xf32>
    tpu.vector_store %arg4[%c312, %c0_42], %121 {strides = array<i32>} : memref<664x384xf32, #tpu.memory_space<vmem>>, vector<8x384xf32>,
    %c540_i32 = arith.constant 540 : i32
    %123 = tpu.dynamic_rotate %3 by %c540_i32 dim 1 : vector<8x640xf32>, i32 -> vector<8x640xf32>
    %124 = vector.extract_strided_slice %123 {offsets = [0, 0], sizes = [8, 384], strides = [1, 1]} : vector<8x640xf32> to vector<8x384xf32>
    %c320 = arith.constant 320 : index
    %c0_43 = arith.constant 0 : index
    %125 = vector.load %arg4[%c320, %c0_43] : memref<664x384xf32, #tpu.memory_space<vmem>>, vector<8x384xf32>
    tpu.vector_store %arg4[%c320, %c0_43], %124 {strides = array<i32>} : memref<664x384xf32, #tpu.memory_space<vmem>>, vector<8x384xf32>,
    %c539_i32 = arith.constant 539 : i32
    %126 = tpu.dynamic_rotate %3 by %c539_i32 dim 1 : vector<8x640xf32>, i32 -> vector<8x640xf32>
    %127 = vector.extract_strided_slice %126 {offsets = [0, 0], sizes = [8, 384], strides = [1, 1]} : vector<8x640xf32> to vector<8x384xf32>
    %c328 = arith.constant 328 : index
    %c0_44 = arith.constant 0 : index
    %128 = vector.load %arg4[%c328, %c0_44] : memref<664x384xf32, #tpu.memory_space<vmem>>, vector<8x384xf32>
    tpu.vector_store %arg4[%c328, %c0_44], %127 {strides = array<i32>} : memref<664x384xf32, #tpu.memory_space<vmem>>, vector<8x384xf32>,
    %c538_i32 = arith.constant 538 : i32
    %129 = tpu.dynamic_rotate %3 by %c538_i32 dim 1 : vector<8x640xf32>, i32 -> vector<8x640xf32>
    %130 = vector.extract_strided_slice %129 {offsets = [0, 0], sizes = [8, 384], strides = [1, 1]} : vector<8x640xf32> to vector<8x384xf32>
    %c336 = arith.constant 336 : index
    %c0_45 = arith.constant 0 : index
    %131 = vector.load %arg4[%c336, %c0_45] : memref<664x384xf32, #tpu.memory_space<vmem>>, vector<8x384xf32>
    tpu.vector_store %arg4[%c336, %c0_45], %130 {strides = array<i32>} : memref<664x384xf32, #tpu.memory_space<vmem>>, vector<8x384xf32>,
    %c537_i32 = arith.constant 537 : i32
    %132 = tpu.dynamic_rotate %3 by %c537_i32 dim 1 : vector<8x640xf32>, i32 -> vector<8x640xf32>
    %133 = vector.extract_strided_slice %132 {offsets = [0, 0], sizes = [8, 384], strides = [1, 1]} : vector<8x640xf32> to vector<8x384xf32>
    %c344 = arith.constant 344 : index
    %c0_46 = arith.constant 0 : index
    %134 = vector.load %arg4[%c344, %c0_46] : memref<664x384xf32, #tpu.memory_space<vmem>>, vector<8x384xf32>
    tpu.vector_store %arg4[%c344, %c0_46], %133 {strides = array<i32>} : memref<664x384xf32, #tpu.memory_space<vmem>>, vector<8x384xf32>,
    %c536_i32 = arith.constant 536 : i32
    %135 = tpu.dynamic_rotate %3 by %c536_i32 dim 1 : vector<8x640xf32>, i32 -> vector<8x640xf32>
    %136 = vector.extract_strided_slice %135 {offsets = [0, 0], sizes = [8, 384], strides = [1, 1]} : vector<8x640xf32> to vector<8x384xf32>
    %c352 = arith.constant 352 : index
    %c0_47 = arith.constant 0 : index
    %137 = vector.load %arg4[%c352, %c0_47] : memref<664x384xf32, #tpu.memory_space<vmem>>, vector<8x384xf32>
    tpu.vector_store %arg4[%c352, %c0_47], %136 {strides = array<i32>} : memref<664x384xf32, #tpu.memory_space<vmem>>, vector<8x384xf32>,
    %c520_i32 = arith.constant 520 : i32
    %138 = tpu.dynamic_rotate %3 by %c520_i32 dim 1 : vector<8x640xf32>, i32 -> vector<8x640xf32>
    %139 = vector.extract_strided_slice %138 {offsets = [0, 0], sizes = [8, 384], strides = [1, 1]} : vector<8x640xf32> to vector<8x384xf32>
    %c360 = arith.constant 360 : index
    %c0_48 = arith.constant 0 : index
    %140 = vector.load %arg4[%c360, %c0_48] : memref<664x384xf32, #tpu.memory_space<vmem>>, vector<8x384xf32>
    tpu.vector_store %arg4[%c360, %c0_48], %139 {strides = array<i32>} : memref<664x384xf32, #tpu.memory_space<vmem>>, vector<8x384xf32>,
    %c519_i32 = arith.constant 519 : i32
    %141 = tpu.dynamic_rotate %3 by %c519_i32 dim 1 : vector<8x640xf32>, i32 -> vector<8x640xf32>
    %142 = vector.extract_strided_slice %141 {offsets = [0, 0], sizes = [8, 384], strides = [1, 1]} : vector<8x640xf32> to vector<8x384xf32>
    %c368 = arith.constant 368 : index
    %c0_49 = arith.constant 0 : index
    %143 = vector.load %arg4[%c368, %c0_49] : memref<664x384xf32, #tpu.memory_space<vmem>>, vector<8x384xf32>
    tpu.vector_store %arg4[%c368, %c0_49], %142 {strides = array<i32>} : memref<664x384xf32, #tpu.memory_space<vmem>>, vector<8x384xf32>,
    %c518_i32 = arith.constant 518 : i32
    %144 = tpu.dynamic_rotate %3 by %c518_i32 dim 1 : vector<8x640xf32>, i32 -> vector<8x640xf32>
    %145 = vector.extract_strided_slice %144 {offsets = [0, 0], sizes = [8, 384], strides = [1, 1]} : vector<8x640xf32> to vector<8x384xf32>
    %c376 = arith.constant 376 : index
    %c0_50 = arith.constant 0 : index
    %146 = vector.load %arg4[%c376, %c0_50] : memref<664x384xf32, #tpu.memory_space<vmem>>, vector<8x384xf32>
    tpu.vector_store %arg4[%c376, %c0_50], %145 {strides = array<i32>} : memref<664x384xf32, #tpu.memory_space<vmem>>, vector<8x384xf32>,
    %c517_i32 = arith.constant 517 : i32
    %147 = tpu.dynamic_rotate %3 by %c517_i32 dim 1 : vector<8x640xf32>, i32 -> vector<8x640xf32>
    %148 = vector.extract_strided_slice %147 {offsets = [0, 0], sizes = [8, 384], strides = [1, 1]} : vector<8x640xf32> to vector<8x384xf32>
    %c384 = arith.constant 384 : index
    %c0_51 = arith.constant 0 : index
    %149 = vector.load %arg4[%c384, %c0_51] : memref<664x384xf32, #tpu.memory_space<vmem>>, vector<8x384xf32>
    tpu.vector_store %arg4[%c384, %c0_51], %148 {strides = array<i32>} : memref<664x384xf32, #tpu.memory_space<vmem>>, vector<8x384xf32>,
    %c516_i32 = arith.constant 516 : i32
    %150 = tpu.dynamic_rotate %3 by %c516_i32 dim 1 : vector<8x640xf32>, i32 -> vector<8x640xf32>
    %151 = vector.extract_strided_slice %150 {offsets = [0, 0], sizes = [8, 384], strides = [1, 1]} : vector<8x640xf32> to vector<8x384xf32>
    %c392 = arith.constant 392 : index
    %c0_52 = arith.constant 0 : index
    %152 = vector.load %arg4[%c392, %c0_52] : memref<664x384xf32, #tpu.memory_space<vmem>>, vector<8x384xf32>
    tpu.vector_store %arg4[%c392, %c0_52], %151 {strides = array<i32>} : memref<664x384xf32, #tpu.memory_space<vmem>>, vector<8x384xf32>,
    %c515_i32 = arith.constant 515 : i32
    %153 = tpu.dynamic_rotate %3 by %c515_i32 dim 1 : vector<8x640xf32>, i32 -> vector<8x640xf32>
    %154 = vector.extract_strided_slice %153 {offsets = [0, 0], sizes = [8, 384], strides = [1, 1]} : vector<8x640xf32> to vector<8x384xf32>
    %c400 = arith.constant 400 : index
    %c0_53 = arith.constant 0 : index
    %155 = vector.load %arg4[%c400, %c0_53] : memref<664x384xf32, #tpu.memory_space<vmem>>, vector<8x384xf32>
    tpu.vector_store %arg4[%c400, %c0_53], %154 {strides = array<i32>} : memref<664x384xf32, #tpu.memory_space<vmem>>, vector<8x384xf32>,
    %c514_i32 = arith.constant 514 : i32
    %156 = tpu.dynamic_rotate %3 by %c514_i32 dim 1 : vector<8x640xf32>, i32 -> vector<8x640xf32>
    %157 = vector.extract_strided_slice %156 {offsets = [0, 0], sizes = [8, 384], strides = [1, 1]} : vector<8x640xf32> to vector<8x384xf32>
    %c408 = arith.constant 408 : index
    %c0_54 = arith.constant 0 : index
    %158 = vector.load %arg4[%c408, %c0_54] : memref<664x384xf32, #tpu.memory_space<vmem>>, vector<8x384xf32>
    tpu.vector_store %arg4[%c408, %c0_54], %157 {strides = array<i32>} : memref<664x384xf32, #tpu.memory_space<vmem>>, vector<8x384xf32>,
    %c513_i32 = arith.constant 513 : i32
    %159 = tpu.dynamic_rotate %3 by %c513_i32 dim 1 : vector<8x640xf32>, i32 -> vector<8x640xf32>
    %160 = vector.extract_strided_slice %159 {offsets = [0, 0], sizes = [8, 384], strides = [1, 1]} : vector<8x640xf32> to vector<8x384xf32>
    %c416 = arith.constant 416 : index
    %c0_55 = arith.constant 0 : index
    %161 = vector.load %arg4[%c416, %c0_55] : memref<664x384xf32, #tpu.memory_space<vmem>>, vector<8x384xf32>
    tpu.vector_store %arg4[%c416, %c0_55], %160 {strides = array<i32>} : memref<664x384xf32, #tpu.memory_space<vmem>>, vector<8x384xf32>,
    %c512_i32 = arith.constant 512 : i32
    %162 = tpu.dynamic_rotate %3 by %c512_i32 dim 1 : vector<8x640xf32>, i32 -> vector<8x640xf32>
    %163 = vector.extract_strided_slice %162 {offsets = [0, 0], sizes = [8, 384], strides = [1, 1]} : vector<8x640xf32> to vector<8x384xf32>
    %c424 = arith.constant 424 : index
    %c0_56 = arith.constant 0 : index
    %164 = vector.load %arg4[%c424, %c0_56] : memref<664x384xf32, #tpu.memory_space<vmem>>, vector<8x384xf32>
    tpu.vector_store %arg4[%c424, %c0_56], %163 {strides = array<i32>} : memref<664x384xf32, #tpu.memory_space<vmem>>, vector<8x384xf32>,
    %c496_i32 = arith.constant 496 : i32
    %165 = tpu.dynamic_rotate %3 by %c496_i32 dim 1 : vector<8x640xf32>, i32 -> vector<8x640xf32>
    %166 = vector.extract_strided_slice %165 {offsets = [0, 0], sizes = [8, 384], strides = [1, 1]} : vector<8x640xf32> to vector<8x384xf32>
    %c432 = arith.constant 432 : index
    %c0_57 = arith.constant 0 : index
    %167 = vector.load %arg4[%c432, %c0_57] : memref<664x384xf32, #tpu.memory_space<vmem>>, vector<8x384xf32>
    tpu.vector_store %arg4[%c432, %c0_57], %166 {strides = array<i32>} : memref<664x384xf32, #tpu.memory_space<vmem>>, vector<8x384xf32>,
    %c495_i32 = arith.constant 495 : i32
    %168 = tpu.dynamic_rotate %3 by %c495_i32 dim 1 : vector<8x640xf32>, i32 -> vector<8x640xf32>
    %169 = vector.extract_strided_slice %168 {offsets = [0, 0], sizes = [8, 384], strides = [1, 1]} : vector<8x640xf32> to vector<8x384xf32>
    %c440 = arith.constant 440 : index
    %c0_58 = arith.constant 0 : index
    %170 = vector.load %arg4[%c440, %c0_58] : memref<664x384xf32, #tpu.memory_space<vmem>>, vector<8x384xf32>
    tpu.vector_store %arg4[%c440, %c0_58], %169 {strides = array<i32>} : memref<664x384xf32, #tpu.memory_space<vmem>>, vector<8x384xf32>,
    %c494_i32 = arith.constant 494 : i32
    %171 = tpu.dynamic_rotate %3 by %c494_i32 dim 1 : vector<8x640xf32>, i32 -> vector<8x640xf32>
    %172 = vector.extract_strided_slice %171 {offsets = [0, 0], sizes = [8, 384], strides = [1, 1]} : vector<8x640xf32> to vector<8x384xf32>
    %c448 = arith.constant 448 : index
    %c0_59 = arith.constant 0 : index
    %173 = vector.load %arg4[%c448, %c0_59] : memref<664x384xf32, #tpu.memory_space<vmem>>, vector<8x384xf32>
    tpu.vector_store %arg4[%c448, %c0_59], %172 {strides = array<i32>} : memref<664x384xf32, #tpu.memory_space<vmem>>, vector<8x384xf32>,
    %c493_i32 = arith.constant 493 : i32
    %174 = tpu.dynamic_rotate %3 by %c493_i32 dim 1 : vector<8x640xf32>, i32 -> vector<8x640xf32>
    %175 = vector.extract_strided_slice %174 {offsets = [0, 0], sizes = [8, 384], strides = [1, 1]} : vector<8x640xf32> to vector<8x384xf32>
    %c456 = arith.constant 456 : index
    %c0_60 = arith.constant 0 : index
    %176 = vector.load %arg4[%c456, %c0_60] : memref<664x384xf32, #tpu.memory_space<vmem>>, vector<8x384xf32>
    tpu.vector_store %arg4[%c456, %c0_60], %175 {strides = array<i32>} : memref<664x384xf32, #tpu.memory_space<vmem>>, vector<8x384xf32>,
    %c492_i32 = arith.constant 492 : i32
    %177 = tpu.dynamic_rotate %3 by %c492_i32 dim 1 : vector<8x640xf32>, i32 -> vector<8x640xf32>
    %178 = vector.extract_strided_slice %177 {offsets = [0, 0], sizes = [8, 384], strides = [1, 1]} : vector<8x640xf32> to vector<8x384xf32>
    %c464 = arith.constant 464 : index
    %c0_61 = arith.constant 0 : index
    %179 = vector.load %arg4[%c464, %c0_61] : memref<664x384xf32, #tpu.memory_space<vmem>>, vector<8x384xf32>
    tpu.vector_store %arg4[%c464, %c0_61], %178 {strides = array<i32>} : memref<664x384xf32, #tpu.memory_space<vmem>>, vector<8x384xf32>,
    %c491_i32 = arith.constant 491 : i32
    %180 = tpu.dynamic_rotate %3 by %c491_i32 dim 1 : vector<8x640xf32>, i32 -> vector<8x640xf32>
    %181 = vector.extract_strided_slice %180 {offsets = [0, 0], sizes = [8, 384], strides = [1, 1]} : vector<8x640xf32> to vector<8x384xf32>
    %c472 = arith.constant 472 : index
    %c0_62 = arith.constant 0 : index
    %182 = vector.load %arg4[%c472, %c0_62] : memref<664x384xf32, #tpu.memory_space<vmem>>, vector<8x384xf32>
    tpu.vector_store %arg4[%c472, %c0_62], %181 {strides = array<i32>} : memref<664x384xf32, #tpu.memory_space<vmem>>, vector<8x384xf32>,
    %c490_i32 = arith.constant 490 : i32
    %183 = tpu.dynamic_rotate %3 by %c490_i32 dim 1 : vector<8x640xf32>, i32 -> vector<8x640xf32>
    %184 = vector.extract_strided_slice %183 {offsets = [0, 0], sizes = [8, 384], strides = [1, 1]} : vector<8x640xf32> to vector<8x384xf32>
    %c480 = arith.constant 480 : index
    %c0_63 = arith.constant 0 : index
    %185 = vector.load %arg4[%c480, %c0_63] : memref<664x384xf32, #tpu.memory_space<vmem>>, vector<8x384xf32>
    tpu.vector_store %arg4[%c480, %c0_63], %184 {strides = array<i32>} : memref<664x384xf32, #tpu.memory_space<vmem>>, vector<8x384xf32>,
    %c489_i32 = arith.constant 489 : i32
    %186 = tpu.dynamic_rotate %3 by %c489_i32 dim 1 : vector<8x640xf32>, i32 -> vector<8x640xf32>
    %187 = vector.extract_strided_slice %186 {offsets = [0, 0], sizes = [8, 384], strides = [1, 1]} : vector<8x640xf32> to vector<8x384xf32>
    %c488 = arith.constant 488 : index
    %c0_64 = arith.constant 0 : index
    %188 = vector.load %arg4[%c488, %c0_64] : memref<664x384xf32, #tpu.memory_space<vmem>>, vector<8x384xf32>
    tpu.vector_store %arg4[%c488, %c0_64], %187 {strides = array<i32>} : memref<664x384xf32, #tpu.memory_space<vmem>>, vector<8x384xf32>,
    %c488_i32 = arith.constant 488 : i32
    %189 = tpu.dynamic_rotate %3 by %c488_i32 dim 1 : vector<8x640xf32>, i32 -> vector<8x640xf32>
    %190 = vector.extract_strided_slice %189 {offsets = [0, 0], sizes = [8, 384], strides = [1, 1]} : vector<8x640xf32> to vector<8x384xf32>
    %c496 = arith.constant 496 : index
    %c0_65 = arith.constant 0 : index
    %191 = vector.load %arg4[%c496, %c0_65] : memref<664x384xf32, #tpu.memory_space<vmem>>, vector<8x384xf32>
    tpu.vector_store %arg4[%c496, %c0_65], %190 {strides = array<i32>} : memref<664x384xf32, #tpu.memory_space<vmem>>, vector<8x384xf32>,
    %c472_i32 = arith.constant 472 : i32
    %192 = tpu.dynamic_rotate %3 by %c472_i32 dim 1 : vector<8x640xf32>, i32 -> vector<8x640xf32>
    %193 = vector.extract_strided_slice %192 {offsets = [0, 0], sizes = [8, 384], strides = [1, 1]} : vector<8x640xf32> to vector<8x384xf32>
    %c504 = arith.constant 504 : index
    %c0_66 = arith.constant 0 : index
    %194 = vector.load %arg4[%c504, %c0_66] : memref<664x384xf32, #tpu.memory_space<vmem>>, vector<8x384xf32>
    tpu.vector_store %arg4[%c504, %c0_66], %193 {strides = array<i32>} : memref<664x384xf32, #tpu.memory_space<vmem>>, vector<8x384xf32>,
    %c471_i32 = arith.constant 471 : i32
    %195 = tpu.dynamic_rotate %3 by %c471_i32 dim 1 : vector<8x640xf32>, i32 -> vector<8x640xf32>
    %196 = vector.extract_strided_slice %195 {offsets = [0, 0], sizes = [8, 384], strides = [1, 1]} : vector<8x640xf32> to vector<8x384xf32>
    %c512 = arith.constant 512 : index
    %c0_67 = arith.constant 0 : index
    %197 = vector.load %arg4[%c512, %c0_67] : memref<664x384xf32, #tpu.memory_space<vmem>>, vector<8x384xf32>
    tpu.vector_store %arg4[%c512, %c0_67], %196 {strides = array<i32>} : memref<664x384xf32, #tpu.memory_space<vmem>>, vector<8x384xf32>,
    %c470_i32 = arith.constant 470 : i32
    %198 = tpu.dynamic_rotate %3 by %c470_i32 dim 1 : vector<8x640xf32>, i32 -> vector<8x640xf32>
    %199 = vector.extract_strided_slice %198 {offsets = [0, 0], sizes = [8, 384], strides = [1, 1]} : vector<8x640xf32> to vector<8x384xf32>
    %c520 = arith.constant 520 : index
    %c0_68 = arith.constant 0 : index
    %200 = vector.load %arg4[%c520, %c0_68] : memref<664x384xf32, #tpu.memory_space<vmem>>, vector<8x384xf32>
    tpu.vector_store %arg4[%c520, %c0_68], %199 {strides = array<i32>} : memref<664x384xf32, #tpu.memory_space<vmem>>, vector<8x384xf32>,
    %c469_i32 = arith.constant 469 : i32
    %201 = tpu.dynamic_rotate %3 by %c469_i32 dim 1 : vector<8x640xf32>, i32 -> vector<8x640xf32>
    %202 = vector.extract_strided_slice %201 {offsets = [0, 0], sizes = [8, 384], strides = [1, 1]} : vector<8x640xf32> to vector<8x384xf32>
    %c528 = arith.constant 528 : index
    %c0_69 = arith.constant 0 : index
    %203 = vector.load %arg4[%c528, %c0_69] : memref<664x384xf32, #tpu.memory_space<vmem>>, vector<8x384xf32>
    tpu.vector_store %arg4[%c528, %c0_69], %202 {strides = array<i32>} : memref<664x384xf32, #tpu.memory_space<vmem>>, vector<8x384xf32>,
    %c468_i32 = arith.constant 468 : i32
    %204 = tpu.dynamic_rotate %3 by %c468_i32 dim 1 : vector<8x640xf32>, i32 -> vector<8x640xf32>
    %205 = vector.extract_strided_slice %204 {offsets = [0, 0], sizes = [8, 384], strides = [1, 1]} : vector<8x640xf32> to vector<8x384xf32>
    %c536 = arith.constant 536 : index
    %c0_70 = arith.constant 0 : index
    %206 = vector.load %arg4[%c536, %c0_70] : memref<664x384xf32, #tpu.memory_space<vmem>>, vector<8x384xf32>
    tpu.vector_store %arg4[%c536, %c0_70], %205 {strides = array<i32>} : memref<664x384xf32, #tpu.memory_space<vmem>>, vector<8x384xf32>,
    %c467_i32 = arith.constant 467 : i32
    %207 = tpu.dynamic_rotate %3 by %c467_i32 dim 1 : vector<8x640xf32>, i32 -> vector<8x640xf32>
    %208 = vector.extract_strided_slice %207 {offsets = [0, 0], sizes = [8, 384], strides = [1, 1]} : vector<8x640xf32> to vector<8x384xf32>
    %c544 = arith.constant 544 : index
    %c0_71 = arith.constant 0 : index
    %209 = vector.load %arg4[%c544, %c0_71] : memref<664x384xf32, #tpu.memory_space<vmem>>, vector<8x384xf32>
    tpu.vector_store %arg4[%c544, %c0_71], %208 {strides = array<i32>} : memref<664x384xf32, #tpu.memory_space<vmem>>, vector<8x384xf32>,
    %c466_i32 = arith.constant 466 : i32
    %210 = tpu.dynamic_rotate %3 by %c466_i32 dim 1 : vector<8x640xf32>, i32 -> vector<8x640xf32>
    %211 = vector.extract_strided_slice %210 {offsets = [0, 0], sizes = [8, 384], strides = [1, 1]} : vector<8x640xf32> to vector<8x384xf32>
    %c552 = arith.constant 552 : index
    %c0_72 = arith.constant 0 : index
    %212 = vector.load %arg4[%c552, %c0_72] : memref<664x384xf32, #tpu.memory_space<vmem>>, vector<8x384xf32>
    tpu.vector_store %arg4[%c552, %c0_72], %211 {strides = array<i32>} : memref<664x384xf32, #tpu.memory_space<vmem>>, vector<8x384xf32>,
    %c465_i32 = arith.constant 465 : i32
    %213 = tpu.dynamic_rotate %3 by %c465_i32 dim 1 : vector<8x640xf32>, i32 -> vector<8x640xf32>
    %214 = vector.extract_strided_slice %213 {offsets = [0, 0], sizes = [8, 384], strides = [1, 1]} : vector<8x640xf32> to vector<8x384xf32>
    %c560 = arith.constant 560 : index
    %c0_73 = arith.constant 0 : index
    %215 = vector.load %arg4[%c560, %c0_73] : memref<664x384xf32, #tpu.memory_space<vmem>>, vector<8x384xf32>
    tpu.vector_store %arg4[%c560, %c0_73], %214 {strides = array<i32>} : memref<664x384xf32, #tpu.memory_space<vmem>>, vector<8x384xf32>,
    %c464_i32 = arith.constant 464 : i32
    %216 = tpu.dynamic_rotate %3 by %c464_i32 dim 1 : vector<8x640xf32>, i32 -> vector<8x640xf32>
    %217 = vector.extract_strided_slice %216 {offsets = [0, 0], sizes = [8, 384], strides = [1, 1]} : vector<8x640xf32> to vector<8x384xf32>
    %c568 = arith.constant 568 : index
    %c0_74 = arith.constant 0 : index
    %218 = vector.load %arg4[%c568, %c0_74] : memref<664x384xf32, #tpu.memory_space<vmem>>, vector<8x384xf32>
    tpu.vector_store %arg4[%c568, %c0_74], %217 {strides = array<i32>} : memref<664x384xf32, #tpu.memory_space<vmem>>, vector<8x384xf32>,
    %c448_i32 = arith.constant 448 : i32
    %219 = tpu.dynamic_rotate %3 by %c448_i32 dim 1 : vector<8x640xf32>, i32 -> vector<8x640xf32>
    %220 = vector.extract_strided_slice %219 {offsets = [0, 0], sizes = [8, 384], strides = [1, 1]} : vector<8x640xf32> to vector<8x384xf32>
    %c576 = arith.constant 576 : index
    %c0_75 = arith.constant 0 : index
    %221 = vector.load %arg4[%c576, %c0_75] : memref<664x384xf32, #tpu.memory_space<vmem>>, vector<8x384xf32>
    tpu.vector_store %arg4[%c576, %c0_75], %220 {strides = array<i32>} : memref<664x384xf32, #tpu.memory_space<vmem>>, vector<8x384xf32>,
    %c447_i32 = arith.constant 447 : i32
    %222 = tpu.dynamic_rotate %3 by %c447_i32 dim 1 : vector<8x640xf32>, i32 -> vector<8x640xf32>
    %223 = vector.extract_strided_slice %222 {offsets = [0, 0], sizes = [8, 384], strides = [1, 1]} : vector<8x640xf32> to vector<8x384xf32>
    %c584 = arith.constant 584 : index
    %c0_76 = arith.constant 0 : index
    %224 = vector.load %arg4[%c584, %c0_76] : memref<664x384xf32, #tpu.memory_space<vmem>>, vector<8x384xf32>
    tpu.vector_store %arg4[%c584, %c0_76], %223 {strides = array<i32>} : memref<664x384xf32, #tpu.memory_space<vmem>>, vector<8x384xf32>,
    %c446_i32 = arith.constant 446 : i32
    %225 = tpu.dynamic_rotate %3 by %c446_i32 dim 1 : vector<8x640xf32>, i32 -> vector<8x640xf32>
    %226 = vector.extract_strided_slice %225 {offsets = [0, 0], sizes = [8, 384], strides = [1, 1]} : vector<8x640xf32> to vector<8x384xf32>
    %c592 = arith.constant 592 : index
    %c0_77 = arith.constant 0 : index
    %227 = vector.load %arg4[%c592, %c0_77] : memref<664x384xf32, #tpu.memory_space<vmem>>, vector<8x384xf32>
    tpu.vector_store %arg4[%c592, %c0_77], %226 {strides = array<i32>} : memref<664x384xf32, #tpu.memory_space<vmem>>, vector<8x384xf32>,
    %c445_i32 = arith.constant 445 : i32
    %228 = tpu.dynamic_rotate %3 by %c445_i32 dim 1 : vector<8x640xf32>, i32 -> vector<8x640xf32>
    %229 = vector.extract_strided_slice %228 {offsets = [0, 0], sizes = [8, 384], strides = [1, 1]} : vector<8x640xf32> to vector<8x384xf32>
    %c600 = arith.constant 600 : index
    %c0_78 = arith.constant 0 : index
    %230 = vector.load %arg4[%c600, %c0_78] : memref<664x384xf32, #tpu.memory_space<vmem>>, vector<8x384xf32>
    tpu.vector_store %arg4[%c600, %c0_78], %229 {strides = array<i32>} : memref<664x384xf32, #tpu.memory_space<vmem>>, vector<8x384xf32>,
    %c444_i32 = arith.constant 444 : i32
    %231 = tpu.dynamic_rotate %3 by %c444_i32 dim 1 : vector<8x640xf32>, i32 -> vector<8x640xf32>
    %232 = vector.extract_strided_slice %231 {offsets = [0, 0], sizes = [8, 384], strides = [1, 1]} : vector<8x640xf32> to vector<8x384xf32>
    %c608 = arith.constant 608 : index
    %c0_79 = arith.constant 0 : index
    %233 = vector.load %arg4[%c608, %c0_79] : memref<664x384xf32, #tpu.memory_space<vmem>>, vector<8x384xf32>
    tpu.vector_store %arg4[%c608, %c0_79], %232 {strides = array<i32>} : memref<664x384xf32, #tpu.memory_space<vmem>>, vector<8x384xf32>,
    %c443_i32 = arith.constant 443 : i32
    %234 = tpu.dynamic_rotate %3 by %c443_i32 dim 1 : vector<8x640xf32>, i32 -> vector<8x640xf32>
    %235 = vector.extract_strided_slice %234 {offsets = [0, 0], sizes = [8, 384], strides = [1, 1]} : vector<8x640xf32> to vector<8x384xf32>
    %c616 = arith.constant 616 : index
    %c0_80 = arith.constant 0 : index
    %236 = vector.load %arg4[%c616, %c0_80] : memref<664x384xf32, #tpu.memory_space<vmem>>, vector<8x384xf32>
    tpu.vector_store %arg4[%c616, %c0_80], %235 {strides = array<i32>} : memref<664x384xf32, #tpu.memory_space<vmem>>, vector<8x384xf32>,
    %c442_i32 = arith.constant 442 : i32
    %237 = tpu.dynamic_rotate %3 by %c442_i32 dim 1 : vector<8x640xf32>, i32 -> vector<8x640xf32>
    %238 = vector.extract_strided_slice %237 {offsets = [0, 0], sizes = [8, 384], strides = [1, 1]} : vector<8x640xf32> to vector<8x384xf32>
    %c624 = arith.constant 624 : index
    %c0_81 = arith.constant 0 : index
    %239 = vector.load %arg4[%c624, %c0_81] : memref<664x384xf32, #tpu.memory_space<vmem>>, vector<8x384xf32>
    tpu.vector_store %arg4[%c624, %c0_81], %238 {strides = array<i32>} : memref<664x384xf32, #tpu.memory_space<vmem>>, vector<8x384xf32>,
    %c441_i32 = arith.constant 441 : i32
    %240 = tpu.dynamic_rotate %3 by %c441_i32 dim 1 : vector<8x640xf32>, i32 -> vector<8x640xf32>
    %241 = vector.extract_strided_slice %240 {offsets = [0, 0], sizes = [8, 384], strides = [1, 1]} : vector<8x640xf32> to vector<8x384xf32>
    %c632 = arith.constant 632 : index
    %c0_82 = arith.constant 0 : index
    %242 = vector.load %arg4[%c632, %c0_82] : memref<664x384xf32, #tpu.memory_space<vmem>>, vector<8x384xf32>
    tpu.vector_store %arg4[%c632, %c0_82], %241 {strides = array<i32>} : memref<664x384xf32, #tpu.memory_space<vmem>>, vector<8x384xf32>,
    %c440_i32 = arith.constant 440 : i32
    %243 = tpu.dynamic_rotate %3 by %c440_i32 dim 1 : vector<8x640xf32>, i32 -> vector<8x640xf32>
    %244 = vector.extract_strided_slice %243 {offsets = [0, 0], sizes = [8, 384], strides = [1, 1]} : vector<8x640xf32> to vector<8x384xf32>
    %c640 = arith.constant 640 : index
    %c0_83 = arith.constant 0 : index
    %245 = vector.load %arg4[%c640, %c0_83] : memref<664x384xf32, #tpu.memory_space<vmem>>, vector<8x384xf32>
    tpu.vector_store %arg4[%c640, %c0_83], %244 {strides = array<i32>} : memref<664x384xf32, #tpu.memory_space<vmem>>, vector<8x384xf32>,
    %cst_84 = arith.constant 1.000000e+00 : f32
    %246 = vector.broadcast %cst_84 : f32 to vector<8x384xf32>
    %c648 = arith.constant 648 : index
    %c0_85 = arith.constant 0 : index
    %247 = vector.load %arg4[%c648, %c0_85] : memref<664x384xf32, #tpu.memory_space<vmem>>, vector<8x384xf32>
    tpu.vector_store %arg4[%c648, %c0_85], %246 {strides = array<i32>} : memref<664x384xf32, #tpu.memory_space<vmem>>, vector<8x384xf32>,
    %c540_i32_86 = arith.constant 540 : i32
    %248 = tpu.dynamic_rotate %1 by %c540_i32_86 dim 1 : vector<8x640xf32>, i32 -> vector<8x640xf32>
    %249 = vector.extract_strided_slice %248 {offsets = [0, 0], sizes = [8, 384], strides = [1, 1]} : vector<8x640xf32> to vector<8x384xf32>
    %c656 = arith.constant 656 : index
    %c0_87 = arith.constant 0 : index
    %250 = vector.load %arg4[%c656, %c0_87] : memref<664x384xf32, #tpu.memory_space<vmem>>, vector<8x384xf32>
    tpu.vector_store %arg4[%c656, %c0_87], %249 {strides = array<i32>} : memref<664x384xf32, #tpu.memory_space<vmem>>, vector<8x384xf32>,
    %c0_88 = arith.constant 0 : index
    %c0_89 = arith.constant 0 : index
    %c0_90 = arith.constant 0 : index
    %251 = vector.load %arg2[%c0_88, %c0_89, %c0_90] : memref<1x8x664xf32, #tpu.memory_space<vmem>>, vector<1x8x664xf32>
    %252 = vector.shape_cast %251 : vector<1x8x664xf32> to vector<8x664xf32>
    %c0_91 = arith.constant 0 : index
    %c0_92 = arith.constant 0 : index
    %253 = vector.load %arg4[%c0_91, %c0_92] : memref<664x384xf32, #tpu.memory_space<vmem>>, vector<664x384xf32>
    %cst_93 = arith.constant dense<0.000000e+00> : vector<8x384xf32>
    %254 = tpu.matmul %252, %253, %cst_93 {dimension_numbers = #tpu.dot_dimension_numbers<[1], [0], [0], [1], [0, 0, 1, 1], [], []>} : vector<8x664xf32>, vector<664x384xf32>, vector<8x384xf32> -> vector<8x384xf32>
    %c0_94 = arith.constant 0 : index
    %c0_95 = arith.constant 0 : index
    %c0_96 = arith.constant 0 : index
    %255 = vector.load %arg3[%c0_94, %c0_95, %c0_96] : memref<1x8x384xf32, #tpu.memory_space<vmem>>, vector<1x8x384xf32>
    %256 = vector.shape_cast %255 : vector<1x8x384xf32> to vector<8x384xf32>
    %257 = vector.shape_cast %254 : vector<8x384xf32> to vector<1x8x384xf32>
    tpu.vector_store %arg3[%c0_94, %c0_95, %c0_96], %257 {strides = array<i32>} : memref<1x8x384xf32, #tpu.memory_space<vmem>>, vector<1x8x384xf32>,
    return
  }
  func.func @transform_0(%arg0: i32) -> (i32, i32, i32) {
    %c0_i32 = arith.constant 0 : i32
    %c0_i32_0 = arith.constant 0 : i32
    %c0_i32_1 = arith.constant 0 : i32
    return %arg0, %c0_i32, %c0_i32_0 : i32, i32, i32
  }
  func.func @transform_1(%arg0: i32) -> (i32, i32, i32) {
    %c0_i32 = arith.constant 0 : i32
    %c0_i32_0 = arith.constant 0 : i32
    %c0_i32_1 = arith.constant 0 : i32
    return %arg0, %c0_i32, %c0_i32_0 : i32, i32, i32
  }
  func.func @transform_2(%arg0: i32) -> (i32, i32, i32) {
    %c0_i32 = arith.constant 0 : i32
    %c0_i32_0 = arith.constant 0 : i32
    %c0_i32_1 = arith.constant 0 : i32
    return %arg0, %c0_i32, %c0_i32_0 : i32, i32, i32
  }
}

</mosaic_0001>

<llo_original>
// kernel: tpu_custom_call.1
$region0: #{tpu_custom_call.1}
  #allocation0 [shape = 'u32[]', space=smem, size = 0x4, offset = 0x4, fixed_abs, tag = 'smem constant byte address 0x4 - core index']
  #allocation1 [shape = 'u32[144,128]{1,0:T(1,128)}', space=vmem, size = 0x12000, scoped, tag = 'internal scratch']
  #allocation2 [shape = 'f32[664,384]{1,0:T(8,128)}', space=vmem, size = 0xf9000, scoped, tag = 'scratch operand']
  %s0 = inlined_call_operand.hbm [shape: f32[4,8,640], index: 0, kind: input, shape index: {}]
  %s1 = inlined_call_operand.hbm [shape: f32[4,8,664], index: 1, kind: input, shape index: {}]
  %s2 = inlined_call_operand.hbm [shape: f32[4,8,384], index: 2, kind: output, shape index: {}]
  %s3 = sld [smem:[#allocation0]]
  $region49: #{tpu_custom_call.1} parent=0
    _
  %s5 = ssub.s32 1, %s3
  %s6 = scalar_select 0, %s5, %s3
  $region1: #{tpu_custom_call.1} parent=0
    #allocation3 [shape = 'u8[40960]{0}', space=vmem, size = 0xa000, scoped, tag = 'input window, operand 0']
    #allocation4 [shape = 's32[2]{0}', space=sflag, size = 0x8, scoped, tag = 'scoped memory for tpu_custom_call.1']
    #allocation5 [shape = 's32[2]{0}', space=sflag, size = 0x8, scoped, tag = 'scoped memory for tpu_custom_call.1']
    #allocation6 [shape = 'u8[49152]{0}', space=vmem, size = 0xc000, scoped, tag = 'input window, operand 1']
    #allocation7 [shape = 's32[2]{0}', space=sflag, size = 0x8, scoped, tag = 'scoped memory for tpu_custom_call.1']
    #allocation8 [shape = 'u8[24576]{0}', space=vmem, size = 0x6000, scoped, tag = 'output window, operand 0']
    %7 = vsyncpa [#allocation4], 0
    %s8 = scalar_lea.sflag [#allocation4], 1
    %9 = vsyncpa %s8, 0
    %10 = vsyncpa [#allocation7], 0
    %s11 = scalar_lea.sflag [#allocation7], 1
    %12 = vsyncpa %s11, 0
    %13 = vsyncpa [#allocation5], 0
    %s14 = scalar_lea.sflag [#allocation5], 1
    %15 = vsyncpa %s14, 0
    loop: start=0, step=1, limit=6
    $region2: #{tpu_custom_call.1} parent=1 // loop_pre_header
      _
    $region3: #{tpu_custom_call.1} parent=1 // loop_header
      %s17 = sphi 0, %s21
      %p18 = scmp.ge.s32.totalorder %s17, 6
      %s27 = sphi 0, %s29
      %s30 = sphi 0, %s27
      %s31 = sphi 0, %s30
      %s47 = sphi 0, %s31
      %s53 = sphi 0, %s55
      %s56 = sphi 0, %s53
      %s57 = sphi 0, %s56
      %s73 = sphi 0, %s57
      %s79 = sphi 0, %s81
      %s82 = sphi 0, %s79
      %s83 = sphi 0, %s82
      %s99 = sphi 0, %s83
    $region4: #{tpu_custom_call.1} parent=1 // loop_header_branch
      %20 = sbr.rel (%p18) target = $region8
    $region5: #{tpu_custom_call.1} parent=1 // loop_body
      %s22 = ssub.s32 %s17, 1
      %s23 = ssub.s32 %s17, 2
      %s24 = sadd.s32 %s17, 1
      %s25 = ssub.s32 %s17, %s24
      %p26 = scmp.eq.s32.totalorder %s25, 0
      %s28 = sadd.s32 %s27, 1
      %s29 = scalar_select %p26, %s27, %s28
      %p32 = pneg %p26
      %p33 = scmp.eq.s32.totalorder %s17, 3
      %p34 = por %p32, %p33
      %p35 = scmp.ne.s32.totalorder %s27, %s30
      %p36 = scmp.eq.s32.totalorder %s17, 0
      %p37 = por %p35, %p36
      %p38 = scmp.ne.s32.totalorder %s27, %s30
      %p39 = scmp.eq.s32.totalorder %s22, 3
      %p40 = por %p38, %p39
      %p41 = scmp.ne.s32.totalorder %s30, %s31
      %p42 = scmp.eq.s32.totalorder %s22, 0
      %p43 = por %p41, %p42
      %p44 = scmp.ne.s32.totalorder %s30, %s31
      %p45 = scmp.eq.s32.totalorder %s23, 3
      %p46 = por %p44, %p45
      %p48 = scmp.ne.s32.totalorder %s31, %s47
      %p49 = scmp.eq.s32.totalorder %s23, 0
      %p50 = por %p48, %p49
      %s51 = ssub.s32 %s17, %s24
      %p52 = scmp.eq.s32.totalorder %s51, 0
      %s54 = sadd.s32 %s53, 1
      %s55 = scalar_select %p52, %s53, %s54
      %p58 = pneg %p52
      %p59 = scmp.eq.s32.totalorder %s17, 3
      %p60 = por %p58, %p59
      %p61 = scmp.ne.s32.totalorder %s53, %s56
      %p62 = scmp.eq.s32.totalorder %s17, 0
      %p63 = por %p61, %p62
      %p64 = scmp.ne.s32.totalorder %s53, %s56
      %p65 = scmp.eq.s32.totalorder %s22, 3
      %p66 = por %p64, %p65
      %p67 = scmp.ne.s32.totalorder %s56, %s57
      %p68 = scmp.eq.s32.totalorder %s22, 0
      %p69 = por %p67, %p68
      %p70 = scmp.ne.s32.totalorder %s56, %s57
      %p71 = scmp.eq.s32.totalorder %s23, 3
      %p72 = por %p70, %p71
      %p74 = scmp.ne.s32.totalorder %s57, %s73
      %p75 = scmp.eq.s32.totalorder %s23, 0
      %p76 = por %p74, %p75
      %s77 = ssub.s32 %s17, %s24
      %p78 = scmp.eq.s32.totalorder %s77, 0
      %s80 = sadd.s32 %s79, 1
      %s81 = scalar_select %p78, %s79, %s80
      %p84 = pneg %p78
      %p85 = scmp.eq.s32.totalorder %s17, 3
      %p86 = por %p84, %p85
      %p87 = scmp.ne.s32.totalorder %s79, %s82
      %p88 = scmp.eq.s32.totalorder %s17, 0
      %p89 = por %p87, %p88
      %p90 = scmp.ne.s32.totalorder %s79, %s82
      %p91 = scmp.eq.s32.totalorder %s22, 3
      %p92 = por %p90, %p91
      %p93 = scmp.ne.s32.totalorder %s82, %s83
      %p94 = scmp.eq.s32.totalorder %s22, 0
      %p95 = por %p93, %p94
      %p96 = scmp.ne.s32.totalorder %s82, %s83
      %p97 = scmp.eq.s32.totalorder %s23, 3
      %p98 = por %p96, %p97
      %p100 = scmp.ne.s32.totalorder %s83, %s99
      %p101 = scmp.eq.s32.totalorder %s23, 0
      %p102 = por %p100, %p101
      %p103 = scmp.le.s32.totalorder 1, %s17
      %p104 = scmp.lt.s32.totalorder %s17, 5
      %p105 = pnand %p103, %p104
      %p106 = pneg %p105
      // Predicated region
      $region9: #{tpu_custom_call.1} parent=5 // pred_check
        _
      $region10: #{tpu_custom_call.1} parent=5 // pred_check_branch
        %108 = sbr.rel (%p105) target = $region12
      $region11: #{tpu_custom_call.1} parent=5 // pred_region
        %s109 = ssub.s32 %s17, 1
      $region12: #{tpu_custom_call.1} parent=5 // pred_fallthru
        _
      %p110 = scmp.lt.s32.totalorder %s17, 4
      // Predicated region
      $region13: #{tpu_custom_call.1} parent=5 // pred_check
        %p111 = pneg %p110
      $region14: #{tpu_custom_call.1} parent=5 // pred_check_branch
        %113 = sbr.rel (%p111) target = $region16
      $region15: #{tpu_custom_call.1} parent=5 // pred_region
        // Predicated region
        $region17: #{tpu_custom_call.1} parent=15 // pred_check
          %p114 = pneg %p37
        $region18: #{tpu_custom_call.1} parent=15 // pred_check_branch
          %116 = sbr.rel (%p114) target = $region20
        $region19: #{tpu_custom_call.1} parent=15 // pred_region
          %s117 = sand.u32 %s27, 1
          %s118 = scalar_lea.sflag [#allocation4], %s117
          %s119 = sand.u32 %s27, 1
          %s120 = smul.addr %s119, 40
          %s121 = scalar_lea.vmem [#allocation3], %s120
          %s123 = ssub.s32 640, 640
          %124 = vsyncadd %s118, %s123
          %s125 = smul.addr %s17, 5
          %s126 = smul.addr %s125, 128
          %s127 = scalar_lea.hbm %s0, %s126
          %s129 = sshll.u32 %s121, 4
          %s130 = int_to_ptr.vmem [resolvable:$true] %s129
          %132 = dma.hbm_to_vmem [thread:$0]  %s127, 640, %s130, %s118
        $region20: #{tpu_custom_call.1} parent=15 // pred_fallthru
          _
        // Predicated region
        $region21: #{tpu_custom_call.1} parent=15 // pred_check
          %p133 = pneg %p63
        $region22: #{tpu_custom_call.1} parent=15 // pred_check_branch
          %135 = sbr.rel (%p133) target = $region24
        $region23: #{tpu_custom_call.1} parent=15 // pred_region
          %s136 = sand.u32 %s53, 1
          %s137 = scalar_lea.sflag [#allocation7], %s136
          %s138 = sand.u32 %s53, 1
          %s139 = smul.addr %s138, 48
          %s140 = scalar_lea.vmem [#allocation6], %s139
          %s142 = ssub.s32 768, 768
          %143 = vsyncadd %s137, %s142
          %s144 = smul.addr %s17, 6
          %s145 = smul.addr %s144, 128
          %s146 = scalar_lea.hbm %s1, %s145
          %s148 = sshll.u32 %s140, 4
          %s149 = int_to_ptr.vmem [resolvable:$true] %s148
          %151 = dma.hbm_to_vmem [thread:$0]  %s146, 768, %s149, %s137
        $region24: #{tpu_custom_call.1} parent=15 // pred_fallthru
          _
      $region16: #{tpu_custom_call.1} parent=5 // pred_fallthru
        _
      %p152 = scmp.le.s32.totalorder 1, %s17
      %p153 = scmp.lt.s32.totalorder %s17, 5
      %p154 = pnand %p152, %p153
      %p155 = pneg %p154
      // Predicated region
      $region25: #{tpu_custom_call.1} parent=5 // pred_check
        _
      $region26: #{tpu_custom_call.1} parent=5 // pred_check_branch
        %157 = sbr.rel (%p154) target = $region28
      $region27: #{tpu_custom_call.1} parent=5 // pred_region
        %s158 = ssub.s32 %s17, 1
        %s159 = sand.u32 %s30, 1
        %s160 = scalar_lea.sflag [#allocation4], %s159
        %s161 = sand.u32 %s30, 1
        %s162 = smul.addr %s161, 40
        %s163 = scalar_lea.vmem [#allocation3], %s162
        // Predicated region
        $region29: #{tpu_custom_call.1} parent=27 // pred_check
          %p164 = pneg %p43
        $region30: #{tpu_custom_call.1} parent=27 // pred_check_branch
          %166 = sbr.rel (%p164) target = $region32
        $region31: #{tpu_custom_call.1} parent=27 // pred_region
          %167 = dma.done %s160, 640
        $region32: #{tpu_custom_call.1} parent=27 // pred_fallthru
          _
        %s168 = sand.u32 %s56, 1
        %s169 = scalar_lea.sflag [#allocation7], %s168
        %s170 = sand.u32 %s56, 1
        %s171 = smul.addr %s170, 48
        %s172 = scalar_lea.vmem [#allocation6], %s171
        // Predicated region
        $region33: #{tpu_custom_call.1} parent=27 // pred_check
          %p173 = pneg %p69
        $region34: #{tpu_custom_call.1} parent=27 // pred_check_branch
          %175 = sbr.rel (%p173) target = $region36
        $region35: #{tpu_custom_call.1} parent=27 // pred_region
          %176 = dma.done %s169, 768
        $region36: #{tpu_custom_call.1} parent=27 // pred_fallthru
          _
        %s177 = sand.u32 %s30, 1
        %s178 = scalar_lea.sflag [#allocation4], %s177
        %s179 = sand.u32 %s30, 1
        %s180 = smul.addr %s179, 40
        %s181 = scalar_lea.vmem [#allocation3], %s180
        %p182 = pneg %p43
        %p183 = pneg %p40
        %s184 = sand.u32 %s56, 1
        %s185 = scalar_lea.sflag [#allocation7], %s184
        %s186 = sand.u32 %s56, 1
        %s187 = smul.addr %s186, 48
        %s188 = scalar_lea.vmem [#allocation6], %s187
        %p189 = pneg %p69
        %p190 = pneg %p66
        %p191 = pneg %p95
        %p192 = pneg %p92
        %s193 = sand.u32 %s82, 1
        %s194 = scalar_lea.sflag [#allocation5], %s193
        %s195 = sand.u32 %s82, 1
        %s196 = smul.addr %s195, 24
        %s197 = scalar_lea.vmem [#allocation8], %s196
        %v198 = vld [vmem:[%s163] sm:$0xff]
        %v199 = vld [vmem:[%s163 + $0x8] sm:$0xff]
        %v200 = vld [vmem:[%s163 + $0x10] sm:$0xff]
        %v201 = vld [vmem:[%s163 + $0x18] sm:$0xff]
        %v202 = vld [vmem:[%s163 + $0x20] sm:$0xff]
        %v203 = vmax.f32 %v198, 0.0
        %v204 = vmax.f32 %v199, 0.0
        %v205 = vmax.f32 %v200, 0.0
        %v206 = vmax.f32 %v201, 0.0
        %v207 = vmax.f32 %v202, 0.0
        %208 = vst [vmem:[#allocation2] sm:$0xff] %v203
        %209 = vst [vmem:[#allocation2 + $0x8] sm:$0xff] %v204
        %210 = vst [vmem:[#allocation2 + $0x10] sm:$0xff] %v205
        %211 = vrot.lane.b32.xlu0 %v203, 127
        %v212 = vpop.permute.xlu0 %211
        %213 = vrot.lane.b32.xlu0 %v204, 127
        %v214 = vpop.permute.xlu0 %213
        %215 = vrot.lane.b32.xlu0 %v205, 127
        %v216 = vpop.permute.xlu0 %215
        %217 = vrot.lane.b32.xlu0 %v206, 127
        %v218 = vpop.permute.xlu0 %217
        %v219 = vlaneseq
        %v220 = vand.u32 %v219, 127
        %vm221 = vcmp.lt.s32.totalorder %v220, 127
        %v222 = vsel %vm221, %v216, %v218
        %v223 = vsel %vm221, %v214, %v216
        %v224 = vsel %vm221, %v212, %v214
        %225 = vst [vmem:[#allocation2 + $0x18] sm:$0xff] %v224
        %226 = vst [vmem:[#allocation2 + $0x20] sm:$0xff] %v223
        %227 = vst [vmem:[#allocation2 + $0x28] sm:$0xff] %v222
        %228 = vrot.lane.b32.xlu0 %v203, 126
        %v229 = vpop.permute.xlu0 %228
        %230 = vrot.lane.b32.xlu0 %v204, 126
        %v231 = vpop.permute.xlu0 %230
        %232 = vrot.lane.b32.xlu0 %v205, 126
        %v233 = vpop.permute.xlu0 %232
        %234 = vrot.lane.b32.xlu0 %v206, 126
        %v235 = vpop.permute.xlu0 %234
        %vm236 = vcmp.lt.s32.totalorder %v220, 126
        %v237 = vsel %vm236, %v233, %v235
        %v238 = vsel %vm236, %v231, %v233
        %v239 = vsel %vm236, %v229, %v231
        %240 = vst [vmem:[#allocation2 + $0x30] sm:$0xff] %v239
        %241 = vst [vmem:[#allocation2 + $0x38] sm:$0xff] %v238
        %242 = vst [vmem:[#allocation2 + $0x40] sm:$0xff] %v237
        %243 = vrot.lane.b32.xlu0 %v203, 125
        %v244 = vpop.permute.xlu0 %243
        %245 = vrot.lane.b32.xlu0 %v204, 125
        %v246 = vpop.permute.xlu0 %245
        %247 = vrot.lane.b32.xlu0 %v205, 125
        %v248 = vpop.permute.xlu0 %247
        %249 = vrot.lane.b32.xlu0 %v206, 125
        %v250 = vpop.permute.xlu0 %249
        %vm251 = vcmp.lt.s32.totalorder %v220, 125
        %v252 = vsel %vm251, %v248, %v250
        %v253 = vsel %vm251, %v246, %v248
        %v254 = vsel %vm251, %v244, %v246
        %255 = vst [vmem:[#allocation2 + $0x48] sm:$0xff] %v254
        %256 = vst [vmem:[#allocation2 + $0x50] sm:$0xff] %v253
        %257 = vst [vmem:[#allocation2 + $0x58] sm:$0xff] %v252
        %258 = vrot.lane.b32.xlu0 %v203, 124
        %v259 = vpop.permute.xlu0 %258
        %260 = vrot.lane.b32.xlu0 %v204, 124
        %v261 = vpop.permute.xlu0 %260
        %262 = vrot.lane.b32.xlu0 %v205, 124
        %v263 = vpop.permute.xlu0 %262
        %264 = vrot.lane.b32.xlu0 %v206, 124
        %v265 = vpop.permute.xlu0 %264
        %vm266 = vcmp.lt.s32.totalorder %v220, 124
        %v267 = vsel %vm266, %v263, %v265
        %v268 = vsel %vm266, %v261, %v263
        %v269 = vsel %vm266, %v259, %v261
        %270 = vst [vmem:[#allocation2 + $0x60] sm:$0xff] %v269
        %271 = vst [vmem:[#allocation2 + $0x68] sm:$0xff] %v268
        %272 = vst [vmem:[#allocation2 + $0x70] sm:$0xff] %v267
        %273 = vrot.lane.b32.xlu0 %v203, 123
        %v274 = vpop.permute.xlu0 %273
        %275 = vrot.lane.b32.xlu0 %v204, 123
        %v276 = vpop.permute.xlu0 %275
        %277 = vrot.lane.b32.xlu0 %v205, 123
        %v278 = vpop.permute.xlu0 %277
        %279 = vrot.lane.b32.xlu0 %v206, 123
        %v280 = vpop.permute.xlu0 %279
        %vm281 = vcmp.lt.s32.totalorder %v220, 123
        %v282 = vsel %vm281, %v278, %v280
        %v283 = vsel %vm281, %v276, %v278
        %v284 = vsel %vm281, %v274, %v276
        %285 = vst [vmem:[#allocation2 + $0x78] sm:$0xff] %v284
        %286 = vst [vmem:[#allocation2 + $0x80] sm:$0xff] %v283
        %287 = vst [vmem:[#allocation2 + $0x88] sm:$0xff] %v282
        %288 = vrot.lane.b32.xlu0 %v203, 122
        %v289 = vpop.permute.xlu0 %288
        %290 = vrot.lane.b32.xlu0 %v204, 122
        %v291 = vpop.permute.xlu0 %290
        %292 = vrot.lane.b32.xlu0 %v205, 122
        %v293 = vpop.permute.xlu0 %292
        %294 = vrot.lane.b32.xlu0 %v206, 122
        %v295 = vpop.permute.xlu0 %294
        %vm296 = vcmp.lt.s32.totalorder %v220, 122
        %v297 = vsel %vm296, %v293, %v295
        %v298 = vsel %vm296, %v291, %v293
        %v299 = vsel %vm296, %v289, %v291
        %300 = vst [vmem:[#allocation2 + $0x90] sm:$0xff] %v299
        %301 = vst [vmem:[#allocation2 + $0x98] sm:$0xff] %v298
        %302 = vst [vmem:[#allocation2 + $0xa0] sm:$0xff] %v297
        %303 = vrot.lane.b32.xlu0 %v203, 121
        %v304 = vpop.permute.xlu0 %303
        %305 = vrot.lane.b32.xlu0 %v204, 121
        %v306 = vpop.permute.xlu0 %305
        %307 = vrot.lane.b32.xlu0 %v205, 121
        %v308 = vpop.permute.xlu0 %307
        %309 = vrot.lane.b32.xlu0 %v206, 121
        %v310 = vpop.permute.xlu0 %309
        %vm311 = vcmp.lt.s32.totalorder %v220, 121
        %v312 = vsel %vm311, %v308, %v310
        %v313 = vsel %vm311, %v306, %v308
        %v314 = vsel %vm311, %v304, %v306
        %315 = vst [vmem:[#allocation2 + $0xa8] sm:$0xff] %v314
        %316 = vst [vmem:[#allocation2 + $0xb0] sm:$0xff] %v313
        %317 = vst [vmem:[#allocation2 + $0xb8] sm:$0xff] %v312
        %318 = vrot.lane.b32.xlu0 %v203, 120
        %v319 = vpop.permute.xlu0 %318
        %320 = vrot.lane.b32.xlu0 %v204, 120
        %v321 = vpop.permute.xlu0 %320
        %322 = vrot.lane.b32.xlu0 %v205, 120
        %v323 = vpop.permute.xlu0 %322
        %324 = vrot.lane.b32.xlu0 %v206, 120
        %v325 = vpop.permute.xlu0 %324
        %vm326 = vcmp.lt.s32.totalorder %v220, 120
        %v327 = vsel %vm326, %v323, %v325
        %v328 = vsel %vm326, %v321, %v323
        %v329 = vsel %vm326, %v319, %v321
        %330 = vst [vmem:[#allocation2 + $0xc0] sm:$0xff] %v329
        %331 = vst [vmem:[#allocation2 + $0xc8] sm:$0xff] %v328
        %332 = vst [vmem:[#allocation2 + $0xd0] sm:$0xff] %v327
        %333 = vrot.lane.b32.xlu0 %v203, 104
        %v334 = vpop.permute.xlu0 %333
        %335 = vrot.lane.b32.xlu0 %v204, 104
        %v336 = vpop.permute.xlu0 %335
        %337 = vrot.lane.b32.xlu0 %v205, 104
        %v338 = vpop.permute.xlu0 %337
        %339 = vrot.lane.b32.xlu0 %v206, 104
        %v340 = vpop.permute.xlu0 %339
        %vm341 = vcmp.lt.s32.totalorder %v220, 104
        %v342 = vsel %vm341, %v338, %v340
        %v343 = vsel %vm341, %v336, %v338
        %v344 = vsel %vm341, %v334, %v336
        %345 = vst [vmem:[#allocation2 + $0xd8] sm:$0xff] %v344
        %346 = vst [vmem:[#allocation2 + $0xe0] sm:$0xff] %v343
        %347 = vst [vmem:[#allocation2 + $0xe8] sm:$0xff] %v342
        %348 = vrot.lane.b32.xlu0 %v203, 103
        %v349 = vpop.permute.xlu0 %348
        %350 = vrot.lane.b32.xlu0 %v204, 103
        %v351 = vpop.permute.xlu0 %350
        %352 = vrot.lane.b32.xlu0 %v205, 103
        %v353 = vpop.permute.xlu0 %352
        %354 = vrot.lane.b32.xlu0 %v206, 103
        %v355 = vpop.permute.xlu0 %354
        %vm356 = vcmp.lt.s32.totalorder %v220, 103
        %v357 = vsel %vm356, %v353, %v355
        %v358 = vsel %vm356, %v351, %v353
        %v359 = vsel %vm356, %v349, %v351
        %360 = vst [vmem:[#allocation2 + $0xf0] sm:$0xff] %v359
        %361 = vst [vmem:[#allocation2 + $0xf8] sm:$0xff] %v358
        %362 = vst [vmem:[#allocation2 + $0x100] sm:$0xff] %v357
        %363 = vrot.lane.b32.xlu0 %v203, 102
        %v364 = vpop.permute.xlu0 %363
        %365 = vrot.lane.b32.xlu0 %v204, 102
        %v366 = vpop.permute.xlu0 %365
        %367 = vrot.lane.b32.xlu0 %v205, 102
        %v368 = vpop.permute.xlu0 %367
        %369 = vrot.lane.b32.xlu0 %v206, 102
        %v370 = vpop.permute.xlu0 %369
        %vm371 = vcmp.lt.s32.totalorder %v220, 102
        %v372 = vsel %vm371, %v368, %v370
        %v373 = vsel %vm371, %v366, %v368
        %v374 = vsel %vm371, %v364, %v366
        %375 = vst [vmem:[#allocation2 + $0x108] sm:$0xff] %v374
        %376 = vst [vmem:[#allocation2 + $0x110] sm:$0xff] %v373
        %377 = vst [vmem:[#allocation2 + $0x118] sm:$0xff] %v372
        %378 = vrot.lane.b32.xlu0 %v203, 101
        %v379 = vpop.permute.xlu0 %378
        %380 = vrot.lane.b32.xlu0 %v204, 101
        %v381 = vpop.permute.xlu0 %380
        %382 = vrot.lane.b32.xlu0 %v205, 101
        %v383 = vpop.permute.xlu0 %382
        %384 = vrot.lane.b32.xlu0 %v206, 101
        %v385 = vpop.permute.xlu0 %384
        %vm386 = vcmp.lt.s32.totalorder %v220, 101
        %v387 = vsel %vm386, %v383, %v385
        %v388 = vsel %vm386, %v381, %v383
        %v389 = vsel %vm386, %v379, %v381
        %390 = vst [vmem:[#allocation2 + $0x120] sm:$0xff] %v389
        %391 = vst [vmem:[#allocation2 + $0x128] sm:$0xff] %v388
        %392 = vst [vmem:[#allocation2 + $0x130] sm:$0xff] %v387
        %393 = vrot.lane.b32.xlu0 %v203, 100
        %v394 = vpop.permute.xlu0 %393
        %395 = vrot.lane.b32.xlu0 %v204, 100
        %v396 = vpop.permute.xlu0 %395
        %397 = vrot.lane.b32.xlu0 %v205, 100
        %v398 = vpop.permute.xlu0 %397
        %399 = vrot.lane.b32.xlu0 %v206, 100
        %v400 = vpop.permute.xlu0 %399
        %vm401 = vcmp.lt.s32.totalorder %v220, 100
        %v402 = vsel %vm401, %v398, %v400
        %v403 = vsel %vm401, %v396, %v398
        %v404 = vsel %vm401, %v394, %v396
        %405 = vst [vmem:[#allocation2 + $0x138] sm:$0xff] %v404
        %406 = vst [vmem:[#allocation2 + $0x140] sm:$0xff] %v403
        %407 = vst [vmem:[#allocation2 + $0x148] sm:$0xff] %v402
        %408 = vrot.lane.b32.xlu0 %v203, 99
        %v409 = vpop.permute.xlu0 %408
        %410 = vrot.lane.b32.xlu0 %v204, 99
        %v411 = vpop.permute.xlu0 %410
        %412 = vrot.lane.b32.xlu0 %v205, 99
        %v413 = vpop.permute.xlu0 %412
        %414 = vrot.lane.b32.xlu0 %v206, 99
        %v415 = vpop.permute.xlu0 %414
        %vm416 = vcmp.lt.s32.totalorder %v220, 99
        %v417 = vsel %vm416, %v413, %v415
        %v418 = vsel %vm416, %v411, %v413
        %v419 = vsel %vm416, %v409, %v411
        %420 = vst [vmem:[#allocation2 + $0x150] sm:$0xff] %v419
        %421 = vst [vmem:[#allocation2 + $0x158] sm:$0xff] %v418
        %422 = vst [vmem:[#allocation2 + $0x160] sm:$0xff] %v417
        %423 = vrot.lane.b32.xlu0 %v203, 98
        %v424 = vpop.permute.xlu0 %423
        %425 = vrot.lane.b32.xlu0 %v204, 98
        %v426 = vpop.permute.xlu0 %425
        %427 = vrot.lane.b32.xlu0 %v205, 98
        %v428 = vpop.permute.xlu0 %427
        %429 = vrot.lane.b32.xlu0 %v206, 98
        %v430 = vpop.permute.xlu0 %429
        %vm431 = vcmp.lt.s32.totalorder %v220, 98
        %v432 = vsel %vm431, %v428, %v430
        %v433 = vsel %vm431, %v426, %v428
        %v434 = vsel %vm431, %v424, %v426
        %435 = vst [vmem:[#allocation2 + $0x168] sm:$0xff] %v434
        %436 = vst [vmem:[#allocation2 + $0x170] sm:$0xff] %v433
        %437 = vst [vmem:[#allocation2 + $0x178] sm:$0xff] %v432
        %438 = vrot.lane.b32.xlu0 %v203, 97
        %v439 = vpop.permute.xlu0 %438
        %440 = vrot.lane.b32.xlu0 %v204, 97
        %v441 = vpop.permute.xlu0 %440
        %442 = vrot.lane.b32.xlu0 %v205, 97
        %v443 = vpop.permute.xlu0 %442
        %444 = vrot.lane.b32.xlu0 %v206, 97
        %v445 = vpop.permute.xlu0 %444
        %vm446 = vcmp.lt.s32.totalorder %v220, 97
        %v447 = vsel %vm446, %v443, %v445
        %v448 = vsel %vm446, %v441, %v443
        %v449 = vsel %vm446, %v439, %v441
        %450 = vst [vmem:[#allocation2 + $0x180] sm:$0xff] %v449
        %451 = vst [vmem:[#allocation2 + $0x188] sm:$0xff] %v448
        %452 = vst [vmem:[#allocation2 + $0x190] sm:$0xff] %v447
        %453 = vrot.lane.b32.xlu0 %v203, 96
        %v454 = vpop.permute.xlu0 %453
        %455 = vrot.lane.b32.xlu0 %v204, 96
        %v456 = vpop.permute.xlu0 %455
        %457 = vrot.lane.b32.xlu0 %v205, 96
        %v458 = vpop.permute.xlu0 %457
        %459 = vrot.lane.b32.xlu0 %v206, 96
        %v460 = vpop.permute.xlu0 %459
        %vm461 = vcmp.lt.s32.totalorder %v220, 96
        %v462 = vsel %vm461, %v458, %v460
        %v463 = vsel %vm461, %v456, %v458
        %v464 = vsel %vm461, %v454, %v456
        %465 = vst [vmem:[#allocation2 + $0x198] sm:$0xff] %v464
        %466 = vst [vmem:[#allocation2 + $0x1a0] sm:$0xff] %v463
        %467 = vst [vmem:[#allocation2 + $0x1a8] sm:$0xff] %v462
        %468 = vrot.lane.b32.xlu0 %v203, 80
        %v469 = vpop.permute.xlu0 %468
        %470 = vrot.lane.b32.xlu0 %v204, 80
        %v471 = vpop.permute.xlu0 %470
        %472 = vrot.lane.b32.xlu0 %v205, 80
        %v473 = vpop.permute.xlu0 %472
        %474 = vrot.lane.b32.xlu0 %v206, 80
        %v475 = vpop.permute.xlu0 %474
        %vm476 = vcmp.lt.s32.totalorder %v220, 80
        %v477 = vsel %vm476, %v473, %v475
        %v478 = vsel %vm476, %v471, %v473
        %v479 = vsel %vm476, %v469, %v471
        %480 = vst [vmem:[#allocation2 + $0x1b0] sm:$0xff] %v479
        %481 = vst [vmem:[#allocation2 + $0x1b8] sm:$0xff] %v478
        %482 = vst [vmem:[#allocation2 + $0x1c0] sm:$0xff] %v477
        %483 = vrot.lane.b32.xlu0 %v203, 79
        %v484 = vpop.permute.xlu0 %483
        %485 = vrot.lane.b32.xlu0 %v204, 79
        %v486 = vpop.permute.xlu0 %485
        %487 = vrot.lane.b32.xlu0 %v205, 79
        %v488 = vpop.permute.xlu0 %487
        %489 = vrot.lane.b32.xlu0 %v206, 79
        %v490 = vpop.permute.xlu0 %489
        %vm491 = vcmp.lt.s32.totalorder %v220, 79
        %v492 = vsel %vm491, %v488, %v490
        %v493 = vsel %vm491, %v486, %v488
        %v494 = vsel %vm491, %v484, %v486
        %495 = vst [vmem:[#allocation2 + $0x1c8] sm:$0xff] %v494
        %496 = vst [vmem:[#allocation2 + $0x1d0] sm:$0xff] %v493
        %497 = vst [vmem:[#allocation2 + $0x1d8] sm:$0xff] %v492
        %498 = vrot.lane.b32.xlu0 %v203, 78
        %v499 = vpop.permute.xlu0 %498
        %500 = vrot.lane.b32.xlu0 %v204, 78
        %v501 = vpop.permute.xlu0 %500
        %502 = vrot.lane.b32.xlu0 %v205, 78
        %v503 = vpop.permute.xlu0 %502
        %504 = vrot.lane.b32.xlu0 %v206, 78
        %v505 = vpop.permute.xlu0 %504
        %vm506 = vcmp.lt.s32.totalorder %v220, 78
        %v507 = vsel %vm506, %v503, %v505
        %v508 = vsel %vm506, %v501, %v503
        %v509 = vsel %vm506, %v499, %v501
        %510 = vst [vmem:[#allocation2 + $0x1e0] sm:$0xff] %v509
        %511 = vst [vmem:[#allocation2 + $0x1e8] sm:$0xff] %v508
        %512 = vst [vmem:[#allocation2 + $0x1f0] sm:$0xff] %v507
        %513 = vrot.lane.b32.xlu0 %v203, 77
        %v514 = vpop.permute.xlu0 %513
        %515 = vrot.lane.b32.xlu0 %v204, 77
        %v516 = vpop.permute.xlu0 %515
        %517 = vrot.lane.b32.xlu0 %v205, 77
        %v518 = vpop.permute.xlu0 %517
        %519 = vrot.lane.b32.xlu0 %v206, 77
        %v520 = vpop.permute.xlu0 %519
        %vm521 = vcmp.lt.s32.totalorder %v220, 77
        %v522 = vsel %vm521, %v518, %v520
        %v523 = vsel %vm521, %v516, %v518
        %v524 = vsel %vm521, %v514, %v516
        %525 = vst [vmem:[#allocation2 + $0x1f8] sm:$0xff] %v524
        %526 = vst [vmem:[#allocation2 + $0x200] sm:$0xff] %v523
        %527 = vst [vmem:[#allocation2 + $0x208] sm:$0xff] %v522
        %528 = vrot.lane.b32.xlu0 %v203, 76
        %v529 = vpop.permute.xlu0 %528
        %530 = vrot.lane.b32.xlu0 %v204, 76
        %v531 = vpop.permute.xlu0 %530
        %532 = vrot.lane.b32.xlu0 %v205, 76
        %v533 = vpop.permute.xlu0 %532
        %534 = vrot.lane.b32.xlu0 %v206, 76
        %v535 = vpop.permute.xlu0 %534
        %vm536 = vcmp.lt.s32.totalorder %v220, 76
        %v537 = vsel %vm536, %v533, %v535
        %v538 = vsel %vm536, %v531, %v533
        %v539 = vsel %vm536, %v529, %v531
        %540 = vst [vmem:[#allocation2 + $0x210] sm:$0xff] %v539
        %541 = vst [vmem:[#allocation2 + $0x218] sm:$0xff] %v538
        %542 = vst [vmem:[#allocation2 + $0x220] sm:$0xff] %v537
        %543 = vrot.lane.b32.xlu0 %v203, 75
        %v544 = vpop.permute.xlu0 %543
        %545 = vrot.lane.b32.xlu0 %v204, 75
        %v546 = vpop.permute.xlu0 %545
        %547 = vrot.lane.b32.xlu0 %v205, 75
        %v548 = vpop.permute.xlu0 %547
        %549 = vrot.lane.b32.xlu0 %v206, 75
        %v550 = vpop.permute.xlu0 %549
        %vm551 = vcmp.lt.s32.totalorder %v220, 75
        %v552 = vsel %vm551, %v548, %v550
        %v553 = vsel %vm551, %v546, %v548
        %v554 = vsel %vm551, %v544, %v546
        %555 = vst [vmem:[#allocation2 + $0x228] sm:$0xff] %v554
        %556 = vst [vmem:[#allocation2 + $0x230] sm:$0xff] %v553
        %557 = vst [vmem:[#allocation2 + $0x238] sm:$0xff] %v552
        %558 = vrot.lane.b32.xlu0 %v203, 74
        %v559 = vpop.permute.xlu0 %558
        %560 = vrot.lane.b32.xlu0 %v204, 74
        %v561 = vpop.permute.xlu0 %560
        %562 = vrot.lane.b32.xlu0 %v205, 74
        %v563 = vpop.permute.xlu0 %562
        %564 = vrot.lane.b32.xlu0 %v206, 74
        %v565 = vpop.permute.xlu0 %564
        %vm566 = vcmp.lt.s32.totalorder %v220, 74
        %v567 = vsel %vm566, %v563, %v565
        %v568 = vsel %vm566, %v561, %v563
        %v569 = vsel %vm566, %v559, %v561
        %570 = vst [vmem:[#allocation2 + $0x240] sm:$0xff] %v569
        %571 = vst [vmem:[#allocation2 + $0x248] sm:$0xff] %v568
        %572 = vst [vmem:[#allocation2 + $0x250] sm:$0xff] %v567
        %573 = vrot.lane.b32.xlu0 %v203, 73
        %v574 = vpop.permute.xlu0 %573
        %575 = vrot.lane.b32.xlu0 %v204, 73
        %v576 = vpop.permute.xlu0 %575
        %577 = vrot.lane.b32.xlu0 %v205, 73
        %v578 = vpop.permute.xlu0 %577
        %579 = vrot.lane.b32.xlu0 %v206, 73
        %v580 = vpop.permute.xlu0 %579
        %vm581 = vcmp.lt.s32.totalorder %v220, 73
        %v582 = vsel %vm581, %v578, %v580
        %v583 = vsel %vm581, %v576, %v578
        %v584 = vsel %vm581, %v574, %v576
        %585 = vst [vmem:[#allocation2 + $0x258] sm:$0xff] %v584
        %586 = vst [vmem:[#allocation2 + $0x260] sm:$0xff] %v583
        %587 = vst [vmem:[#allocation2 + $0x268] sm:$0xff] %v582
        %588 = vrot.lane.b32.xlu0 %v203, 72
        %v589 = vpop.permute.xlu0 %588
        %590 = vrot.lane.b32.xlu0 %v204, 72
        %v591 = vpop.permute.xlu0 %590
        %592 = vrot.lane.b32.xlu0 %v205, 72
        %v593 = vpop.permute.xlu0 %592
        %594 = vrot.lane.b32.xlu0 %v206, 72
        %v595 = vpop.permute.xlu0 %594
        %vm596 = vcmp.lt.s32.totalorder %v220, 72
        %v597 = vsel %vm596, %v593, %v595
        %v598 = vsel %vm596, %v591, %v593
        %v599 = vsel %vm596, %v589, %v591
        %600 = vst [vmem:[#allocation2 + $0x270] sm:$0xff] %v599
        %601 = vst [vmem:[#allocation2 + $0x278] sm:$0xff] %v598
        %602 = vst [vmem:[#allocation2 + $0x280] sm:$0xff] %v597
        %603 = vrot.lane.b32.xlu0 %v203, 56
        %v604 = vpop.permute.xlu0 %603
        %605 = vrot.lane.b32.xlu0 %v204, 56
        %v606 = vpop.permute.xlu0 %605
        %607 = vrot.lane.b32.xlu0 %v205, 56
        %v608 = vpop.permute.xlu0 %607
        %609 = vrot.lane.b32.xlu0 %v206, 56
        %v610 = vpop.permute.xlu0 %609
        %vm611 = vcmp.lt.s32.totalorder %v220, 56
        %v612 = vsel %vm611, %v608, %v610
        %v613 = vsel %vm611, %v606, %v608
        %v614 = vsel %vm611, %v604, %v606
        %615 = vst [vmem:[#allocation2 + $0x288] sm:$0xff] %v614
        %616 = vst [vmem:[#allocation2 + $0x290] sm:$0xff] %v613
        %617 = vst [vmem:[#allocation2 + $0x298] sm:$0xff] %v612
        %618 = vrot.lane.b32.xlu0 %v203, 55
        %v619 = vpop.permute.xlu0 %618
        %620 = vrot.lane.b32.xlu0 %v204, 55
        %v621 = vpop.permute.xlu0 %620
        %622 = vrot.lane.b32.xlu0 %v205, 55
        %v623 = vpop.permute.xlu0 %622
        %624 = vrot.lane.b32.xlu0 %v206, 55
        %v625 = vpop.permute.xlu0 %624
        %vm626 = vcmp.lt.s32.totalorder %v220, 55
        %v627 = vsel %vm626, %v623, %v625
        %v628 = vsel %vm626, %v621, %v623
        %v629 = vsel %vm626, %v619, %v621
        %630 = vst [vmem:[#allocation2 + $0x2a0] sm:$0xff] %v629
        %631 = vst [vmem:[#allocation2 + $0x2a8] sm:$0xff] %v628
        %632 = vst [vmem:[#allocation2 + $0x2b0] sm:$0xff] %v627
        %633 = vrot.lane.b32.xlu0 %v203, 54
        %v634 = vpop.permute.xlu0 %633
        %635 = vrot.lane.b32.xlu0 %v204, 54
        %v636 = vpop.permute.xlu0 %635
        %637 = vrot.lane.b32.xlu0 %v205, 54
        %v638 = vpop.permute.xlu0 %637
        %639 = vrot.lane.b32.xlu0 %v206, 54
        %v640 = vpop.permute.xlu0 %639
        %vm641 = vcmp.lt.s32.totalorder %v220, 54
        %v642 = vsel %vm641, %v638, %v640
        %v643 = vsel %vm641, %v636, %v638
        %v644 = vsel %vm641, %v634, %v636
        %645 = vst [vmem:[#allocation2 + $0x2b8] sm:$0xff] %v644
        %646 = vst [vmem:[#allocation2 + $0x2c0] sm:$0xff] %v643
        %647 = vst [vmem:[#allocation2 + $0x2c8] sm:$0xff] %v642
        %648 = vrot.lane.b32.xlu0 %v203, 53
        %v649 = vpop.permute.xlu0 %648
        %650 = vrot.lane.b32.xlu0 %v204, 53
        %v651 = vpop.permute.xlu0 %650
        %652 = vrot.lane.b32.xlu0 %v205, 53
        %v653 = vpop.permute.xlu0 %652
        %654 = vrot.lane.b32.xlu0 %v206, 53
        %v655 = vpop.permute.xlu0 %654
        %vm656 = vcmp.lt.s32.totalorder %v220, 53
        %v657 = vsel %vm656, %v653, %v655
        %v658 = vsel %vm656, %v651, %v653
        %v659 = vsel %vm656, %v649, %v651
        %660 = vst [vmem:[#allocation2 + $0x2d0] sm:$0xff] %v659
        %661 = vst [vmem:[#allocation2 + $0x2d8] sm:$0xff] %v658
        %662 = vst [vmem:[#allocation2 + $0x2e0] sm:$0xff] %v657
        %663 = vrot.lane.b32.xlu0 %v203, 52
        %v664 = vpop.permute.xlu0 %663
        %665 = vrot.lane.b32.xlu0 %v204, 52
        %v666 = vpop.permute.xlu0 %665
        %667 = vrot.lane.b32.xlu0 %v205, 52
        %v668 = vpop.permute.xlu0 %667
        %669 = vrot.lane.b32.xlu0 %v206, 52
        %v670 = vpop.permute.xlu0 %669
        %vm671 = vcmp.lt.s32.totalorder %v220, 52
        %v672 = vsel %vm671, %v668, %v670
        %v673 = vsel %vm671, %v666, %v668
        %v674 = vsel %vm671, %v664, %v666
        %675 = vst [vmem:[#allocation2 + $0x2e8] sm:$0xff] %v674
        %676 = vst [vmem:[#allocation2 + $0x2f0] sm:$0xff] %v673
        %677 = vst [vmem:[#allocation2 + $0x2f8] sm:$0xff] %v672
        %678 = vrot.lane.b32.xlu0 %v203, 51
        %v679 = vpop.permute.xlu0 %678
        %680 = vrot.lane.b32.xlu0 %v204, 51
        %v681 = vpop.permute.xlu0 %680
        %682 = vrot.lane.b32.xlu0 %v205, 51
        %v683 = vpop.permute.xlu0 %682
        %684 = vrot.lane.b32.xlu0 %v206, 51
        %v685 = vpop.permute.xlu0 %684
        %vm686 = vcmp.lt.s32.totalorder %v220, 51
        %v687 = vsel %vm686, %v683, %v685
        %v688 = vsel %vm686, %v681, %v683
        %v689 = vsel %vm686, %v679, %v681
        %690 = vst [vmem:[#allocation2 + $0x300] sm:$0xff] %v689
        %691 = vst [vmem:[#allocation2 + $0x308] sm:$0xff] %v688
        %692 = vst [vmem:[#allocation2 + $0x310] sm:$0xff] %v687
        %693 = vrot.lane.b32.xlu0 %v203, 50
        %v694 = vpop.permute.xlu0 %693
        %695 = vrot.lane.b32.xlu0 %v204, 50
        %v696 = vpop.permute.xlu0 %695
        %697 = vrot.lane.b32.xlu0 %v205, 50
        %v698 = vpop.permute.xlu0 %697
        %699 = vrot.lane.b32.xlu0 %v206, 50
        %v700 = vpop.permute.xlu0 %699
        %vm701 = vcmp.lt.s32.totalorder %v220, 50
        %v702 = vsel %vm701, %v698, %v700
        %v703 = vsel %vm701, %v696, %v698
        %v704 = vsel %vm701, %v694, %v696
        %705 = vst [vmem:[#allocation2 + $0x318] sm:$0xff] %v704
        %706 = vst [vmem:[#allocation2 + $0x320] sm:$0xff] %v703
        %707 = vst [vmem:[#allocation2 + $0x328] sm:$0xff] %v702
        %708 = vrot.lane.b32.xlu0 %v203, 49
        %v709 = vpop.permute.xlu0 %708
        %710 = vrot.lane.b32.xlu0 %v204, 49
        %v711 = vpop.permute.xlu0 %710
        %712 = vrot.lane.b32.xlu0 %v205, 49
        %v713 = vpop.permute.xlu0 %712
        %714 = vrot.lane.b32.xlu0 %v206, 49
        %v715 = vpop.permute.xlu0 %714
        %vm716 = vcmp.lt.s32.totalorder %v220, 49
        %v717 = vsel %vm716, %v713, %v715
        %v718 = vsel %vm716, %v711, %v713
        %v719 = vsel %vm716, %v709, %v711
        %720 = vst [vmem:[#allocation2 + $0x330] sm:$0xff] %v719
        %721 = vst [vmem:[#allocation2 + $0x338] sm:$0xff] %v718
        %722 = vst [vmem:[#allocation2 + $0x340] sm:$0xff] %v717
        %723 = vrot.lane.b32.xlu0 %v203, 48
        %v724 = vpop.permute.xlu0 %723
        %725 = vrot.lane.b32.xlu0 %v204, 48
        %v726 = vpop.permute.xlu0 %725
        %727 = vrot.lane.b32.xlu0 %v205, 48
        %v728 = vpop.permute.xlu0 %727
        %729 = vrot.lane.b32.xlu0 %v206, 48
        %v730 = vpop.permute.xlu0 %729
        %vm731 = vcmp.lt.s32.totalorder %v220, 48
        %v732 = vsel %vm731, %v728, %v730
        %v733 = vsel %vm731, %v726, %v728
        %v734 = vsel %vm731, %v724, %v726
        %735 = vst [vmem:[#allocation2 + $0x348] sm:$0xff] %v734
        %736 = vst [vmem:[#allocation2 + $0x350] sm:$0xff] %v733
        %737 = vst [vmem:[#allocation2 + $0x358] sm:$0xff] %v732
        %738 = vrot.lane.b32.xlu0 %v203, 32
        %v739 = vpop.permute.xlu0 %738
        %740 = vrot.lane.b32.xlu0 %v204, 32
        %v741 = vpop.permute.xlu0 %740
        %742 = vrot.lane.b32.xlu0 %v205, 32
        %v743 = vpop.permute.xlu0 %742
        %744 = vrot.lane.b32.xlu0 %v206, 32
        %v745 = vpop.permute.xlu0 %744
        %vm746 = vcmp.lt.s32.totalorder %v220, 32
        %v747 = vsel %vm746, %v743, %v745
        %v748 = vsel %vm746, %v741, %v743
        %v749 = vsel %vm746, %v739, %v741
        %750 = vst [vmem:[#allocation2 + $0x360] sm:$0xff] %v749
        %751 = vst [vmem:[#allocation2 + $0x368] sm:$0xff] %v748
        %752 = vst [vmem:[#allocation2 + $0x370] sm:$0xff] %v747
        %753 = vrot.lane.b32.xlu0 %v203, 31
        %v754 = vpop.permute.xlu0 %753
        %755 = vrot.lane.b32.xlu0 %v204, 31
        %v756 = vpop.permute.xlu0 %755
        %757 = vrot.lane.b32.xlu0 %v205, 31
        %v758 = vpop.permute.xlu0 %757
        %759 = vrot.lane.b32.xlu0 %v206, 31
        %v760 = vpop.permute.xlu0 %759
        %vm761 = vcmp.lt.s32.totalorder %v220, 31
        %v762 = vsel %vm761, %v758, %v760
        %v763 = vsel %vm761, %v756, %v758
        %v764 = vsel %vm761, %v754, %v756
        %765 = vst [vmem:[#allocation2 + $0x378] sm:$0xff] %v764
        %766 = vst [vmem:[#allocation2 + $0x380] sm:$0xff] %v763
        %767 = vst [vmem:[#allocation2 + $0x388] sm:$0xff] %v762
        %768 = vrot.lane.b32.xlu0 %v203, 30
        %v769 = vpop.permute.xlu0 %768
        %770 = vrot.lane.b32.xlu0 %v204, 30
        %v771 = vpop.permute.xlu0 %770
        %772 = vrot.lane.b32.xlu0 %v205, 30
        %v773 = vpop.permute.xlu0 %772
        %774 = vrot.lane.b32.xlu0 %v206, 30
        %v775 = vpop.permute.xlu0 %774
        %vm776 = vcmp.lt.s32.totalorder %v220, 30
        %v777 = vsel %vm776, %v773, %v775
        %v778 = vsel %vm776, %v771, %v773
        %v779 = vsel %vm776, %v769, %v771
        %780 = vst [vmem:[#allocation2 + $0x390] sm:$0xff] %v779
        %781 = vst [vmem:[#allocation2 + $0x398] sm:$0xff] %v778
        %782 = vst [vmem:[#allocation2 + $0x3a0] sm:$0xff] %v777
        %783 = vrot.lane.b32.xlu0 %v203, 29
        %v784 = vpop.permute.xlu0 %783
        %785 = vrot.lane.b32.xlu0 %v204, 29
        %v786 = vpop.permute.xlu0 %785
        %787 = vrot.lane.b32.xlu0 %v205, 29
        %v788 = vpop.permute.xlu0 %787
        %789 = vrot.lane.b32.xlu0 %v206, 29
        %v790 = vpop.permute.xlu0 %789
        %vm791 = vcmp.lt.s32.totalorder %v220, 29
        %v792 = vsel %vm791, %v788, %v790
        %v793 = vsel %vm791, %v786, %v788
        %v794 = vsel %vm791, %v784, %v786
        %795 = vst [vmem:[#allocation2 + $0x3a8] sm:$0xff] %v794
        %796 = vst [vmem:[#allocation2 + $0x3b0] sm:$0xff] %v793
        %797 = vst [vmem:[#allocation2 + $0x3b8] sm:$0xff] %v792
        %798 = vrot.lane.b32.xlu0 %v203, 28
        %v799 = vpop.permute.xlu0 %798
        %800 = vrot.lane.b32.xlu0 %v204, 28
        %v801 = vpop.permute.xlu0 %800
        %802 = vrot.lane.b32.xlu0 %v205, 28
        %v803 = vpop.permute.xlu0 %802
        %804 = vrot.lane.b32.xlu0 %v206, 28
        %v805 = vpop.permute.xlu0 %804
        %vm806 = vcmp.lt.s32.totalorder %v220, 28
        %v807 = vsel %vm806, %v803, %v805
        %v808 = vsel %vm806, %v801, %v803
        %v809 = vsel %vm806, %v799, %v801
        %810 = vst [vmem:[#allocation2 + $0x3c0] sm:$0xff] %v809
        %811 = vst [vmem:[#allocation2 + $0x3c8] sm:$0xff] %v808
        %812 = vst [vmem:[#allocation2 + $0x3d0] sm:$0xff] %v807
        %813 = vrot.lane.b32.xlu0 %v203, 27
        %v814 = vpop.permute.xlu0 %813
        %815 = vrot.lane.b32.xlu0 %v204, 27
        %v816 = vpop.permute.xlu0 %815
        %817 = vrot.lane.b32.xlu0 %v205, 27
        %v818 = vpop.permute.xlu0 %817
        %819 = vrot.lane.b32.xlu0 %v206, 27
        %v820 = vpop.permute.xlu0 %819
        %vm821 = vcmp.lt.s32.totalorder %v220, 27
        %v822 = vsel %vm821, %v818, %v820
        %v823 = vsel %vm821, %v816, %v818
        %v824 = vsel %vm821, %v814, %v816
        %825 = vst [vmem:[#allocation2 + $0x3d8] sm:$0xff] %v824
        %826 = vst [vmem:[#allocation2 + $0x3e0] sm:$0xff] %v823
        %827 = vst [vmem:[#allocation2 + $0x3e8] sm:$0xff] %v822
        %828 = vrot.lane.b32.xlu0 %v203, 26
        %v829 = vpop.permute.xlu0 %828
        %830 = vrot.lane.b32.xlu0 %v204, 26
        %v831 = vpop.permute.xlu0 %830
        %832 = vrot.lane.b32.xlu0 %v205, 26
        %v833 = vpop.permute.xlu0 %832
        %834 = vrot.lane.b32.xlu0 %v206, 26
        %v835 = vpop.permute.xlu0 %834
        %vm836 = vcmp.lt.s32.totalorder %v220, 26
        %v837 = vsel %vm836, %v833, %v835
        %v838 = vsel %vm836, %v831, %v833
        %v839 = vsel %vm836, %v829, %v831
        %840 = vst [vmem:[#allocation2 + $0x3f0] sm:$0xff] %v839
        %841 = vst [vmem:[#allocation2 + $0x3f8] sm:$0xff] %v838
        %842 = vst [vmem:[#allocation2 + $0x400] sm:$0xff] %v837
        %843 = vrot.lane.b32.xlu0 %v203, 25
        %v844 = vpop.permute.xlu0 %843
        %845 = vrot.lane.b32.xlu0 %v204, 25
        %v846 = vpop.permute.xlu0 %845
        %847 = vrot.lane.b32.xlu0 %v205, 25
        %v848 = vpop.permute.xlu0 %847
        %849 = vrot.lane.b32.xlu0 %v206, 25
        %v850 = vpop.permute.xlu0 %849
        %vm851 = vcmp.lt.s32.totalorder %v220, 25
        %v852 = vsel %vm851, %v848, %v850
        %v853 = vsel %vm851, %v846, %v848
        %v854 = vsel %vm851, %v844, %v846
        %855 = vst [vmem:[#allocation2 + $0x408] sm:$0xff] %v854
        %856 = vst [vmem:[#allocation2 + $0x410] sm:$0xff] %v853
        %857 = vst [vmem:[#allocation2 + $0x418] sm:$0xff] %v852
        %858 = vrot.lane.b32.xlu0 %v203, 24
        %v859 = vpop.permute.xlu0 %858
        %860 = vrot.lane.b32.xlu0 %v204, 24
        %v861 = vpop.permute.xlu0 %860
        %862 = vrot.lane.b32.xlu0 %v205, 24
        %v863 = vpop.permute.xlu0 %862
        %864 = vrot.lane.b32.xlu0 %v206, 24
        %v865 = vpop.permute.xlu0 %864
        %vm866 = vcmp.lt.s32.totalorder %v220, 24
        %v867 = vsel %vm866, %v863, %v865
        %v868 = vsel %vm866, %v861, %v863
        %v869 = vsel %vm866, %v859, %v861
        %870 = vst [vmem:[#allocation2 + $0x420] sm:$0xff] %v869
        %871 = vst [vmem:[#allocation2 + $0x428] sm:$0xff] %v868
        %872 = vst [vmem:[#allocation2 + $0x430] sm:$0xff] %v867
        %873 = vrot.lane.b32.xlu0 %v203, 8
        %v874 = vpop.permute.xlu0 %873
        %875 = vrot.lane.b32.xlu0 %v204, 8
        %v876 = vpop.permute.xlu0 %875
        %877 = vrot.lane.b32.xlu0 %v205, 8
        %v878 = vpop.permute.xlu0 %877
        %879 = vrot.lane.b32.xlu0 %v206, 8
        %v880 = vpop.permute.xlu0 %879
        %vm881 = vcmp.lt.s32.totalorder %v220, 8
        %v882 = vsel %vm881, %v878, %v880
        %v883 = vsel %vm881, %v876, %v878
        %v884 = vsel %vm881, %v874, %v876
        %885 = vst [vmem:[#allocation2 + $0x438] sm:$0xff] %v884
        %886 = vst [vmem:[#allocation2 + $0x440] sm:$0xff] %v883
        %887 = vst [vmem:[#allocation2 + $0x448] sm:$0xff] %v882
        %888 = vrot.lane.b32.xlu0 %v203, 7
        %v889 = vpop.permute.xlu0 %888
        %890 = vrot.lane.b32.xlu0 %v204, 7
        %v891 = vpop.permute.xlu0 %890
        %892 = vrot.lane.b32.xlu0 %v205, 7
        %v893 = vpop.permute.xlu0 %892
        %894 = vrot.lane.b32.xlu0 %v206, 7
        %v895 = vpop.permute.xlu0 %894
        %vm896 = vcmp.lt.s32.totalorder %v220, 7
        %v897 = vsel %vm896, %v893, %v895
        %v898 = vsel %vm896, %v891, %v893
        %v899 = vsel %vm896, %v889, %v891
        %900 = vst [vmem:[#allocation2 + $0x450] sm:$0xff] %v899
        %901 = vst [vmem:[#allocation2 + $0x458] sm:$0xff] %v898
        %902 = vst [vmem:[#allocation2 + $0x460] sm:$0xff] %v897
        %903 = vrot.lane.b32.xlu0 %v203, 6
        %v904 = vpop.permute.xlu0 %903
        %905 = vrot.lane.b32.xlu0 %v204, 6
        %v906 = vpop.permute.xlu0 %905
        %907 = vrot.lane.b32.xlu0 %v205, 6
        %v908 = vpop.permute.xlu0 %907
        %909 = vrot.lane.b32.xlu0 %v206, 6
        %v910 = vpop.permute.xlu0 %909
        %vm911 = vcmp.lt.s32.totalorder %v220, 6
        %v912 = vsel %vm911, %v908, %v910
        %v913 = vsel %vm911, %v906, %v908
        %v914 = vsel %vm911, %v904, %v906
        %915 = vst [vmem:[#allocation2 + $0x468] sm:$0xff] %v914
        %916 = vst [vmem:[#allocation2 + $0x470] sm:$0xff] %v913
        %917 = vst [vmem:[#allocation2 + $0x478] sm:$0xff] %v912
        %918 = vrot.lane.b32.xlu0 %v203, 5
        %v919 = vpop.permute.xlu0 %918
        %920 = vrot.lane.b32.xlu0 %v204, 5
        %v921 = vpop.permute.xlu0 %920
        %922 = vrot.lane.b32.xlu0 %v205, 5
        %v923 = vpop.permute.xlu0 %922
        %924 = vrot.lane.b32.xlu0 %v206, 5
        %v925 = vpop.permute.xlu0 %924
        %vm926 = vcmp.lt.s32.totalorder %v220, 5
        %v927 = vsel %vm926, %v923, %v925
        %v928 = vsel %vm926, %v921, %v923
        %v929 = vsel %vm926, %v919, %v921
        %930 = vst [vmem:[#allocation2 + $0x480] sm:$0xff] %v929
        %931 = vst [vmem:[#allocation2 + $0x488] sm:$0xff] %v928
        %932 = vst [vmem:[#allocation2 + $0x490] sm:$0xff] %v927
        %933 = vrot.lane.b32.xlu0 %v203, 4
        %v934 = vpop.permute.xlu0 %933
        %935 = vrot.lane.b32.xlu0 %v204, 4
        %v936 = vpop.permute.xlu0 %935
        %937 = vrot.lane.b32.xlu0 %v205, 4
        %v938 = vpop.permute.xlu0 %937
        %939 = vrot.lane.b32.xlu0 %v206, 4
        %v940 = vpop.permute.xlu0 %939
        %vm941 = vcmp.lt.s32.totalorder %v220, 4
        %v942 = vsel %vm941, %v938, %v940
        %v943 = vsel %vm941, %v936, %v938
        %v944 = vsel %vm941, %v934, %v936
        %945 = vst [vmem:[#allocation2 + $0x498] sm:$0xff] %v944
        %946 = vst [vmem:[#allocation2 + $0x4a0] sm:$0xff] %v943
        %947 = vst [vmem:[#allocation2 + $0x4a8] sm:$0xff] %v942
        %948 = vrot.lane.b32.xlu0 %v203, 3
        %v949 = vpop.permute.xlu0 %948
        %950 = vrot.lane.b32.xlu0 %v204, 3
        %v951 = vpop.permute.xlu0 %950
        %952 = vrot.lane.b32.xlu0 %v205, 3
        %v953 = vpop.permute.xlu0 %952
        %954 = vrot.lane.b32.xlu0 %v206, 3
        %v955 = vpop.permute.xlu0 %954
        %vm956 = vcmp.lt.s32.totalorder %v220, 3
        %v957 = vsel %vm956, %v953, %v955
        %v958 = vsel %vm956, %v951, %v953
        %v959 = vsel %vm956, %v949, %v951
        %960 = vst [vmem:[#allocation2 + $0x4b0] sm:$0xff] %v959
        %961 = vst [vmem:[#allocation2 + $0x4b8] sm:$0xff] %v958
        %962 = vst [vmem:[#allocation2 + $0x4c0] sm:$0xff] %v957
        %963 = vrot.lane.b32.xlu0 %v203, 2
        %v964 = vpop.permute.xlu0 %963
        %965 = vrot.lane.b32.xlu0 %v204, 2
        %v966 = vpop.permute.xlu0 %965
        %967 = vrot.lane.b32.xlu0 %v205, 2
        %v968 = vpop.permute.xlu0 %967
        %969 = vrot.lane.b32.xlu0 %v206, 2
        %v970 = vpop.permute.xlu0 %969
        %vm971 = vcmp.lt.s32.totalorder %v220, 2
        %v972 = vsel %vm971, %v968, %v970
        %v973 = vsel %vm971, %v966, %v968
        %v974 = vsel %vm971, %v964, %v966
        %975 = vst [vmem:[#allocation2 + $0x4c8] sm:$0xff] %v974
        %976 = vst [vmem:[#allocation2 + $0x4d0] sm:$0xff] %v973
        %977 = vst [vmem:[#allocation2 + $0x4d8] sm:$0xff] %v972
        %978 = vrot.lane.b32.xlu0 %v203, 1
        %v979 = vpop.permute.xlu0 %978
        %980 = vrot.lane.b32.xlu0 %v204, 1
        %v981 = vpop.permute.xlu0 %980
        %982 = vrot.lane.b32.xlu0 %v205, 1
        %v983 = vpop.permute.xlu0 %982
        %984 = vrot.lane.b32.xlu0 %v206, 1
        %v985 = vpop.permute.xlu0 %984
        %vm986 = vcmp.lt.s32.totalorder %v220, 1
        %v987 = vsel %vm986, %v983, %v985
        %v988 = vsel %vm986, %v981, %v983
        %v989 = vsel %vm986, %v979, %v981
        %990 = vst [vmem:[#allocation2 + $0x4e0] sm:$0xff] %v989
        %991 = vst [vmem:[#allocation2 + $0x4e8] sm:$0xff] %v988
        %992 = vst [vmem:[#allocation2 + $0x4f0] sm:$0xff] %v987
        %993 = vst [vmem:[#allocation2 + $0x4f8] sm:$0xff] %v204
        %994 = vst [vmem:[#allocation2 + $0x500] sm:$0xff] %v205
        %995 = vst [vmem:[#allocation2 + $0x508] sm:$0xff] %v206
        %996 = vrot.lane.b32.xlu0 %v204, 112
        %v997 = vpop.permute.xlu0 %996
        %998 = vrot.lane.b32.xlu0 %v205, 112
        %v999 = vpop.permute.xlu0 %998
        %1000 = vrot.lane.b32.xlu0 %v206, 112
        %v1001 = vpop.permute.xlu0 %1000
        %1002 = vrot.lane.b32.xlu0 %v207, 112
        %v1003 = vpop.permute.xlu0 %1002
        %vm1004 = vcmp.lt.s32.totalorder %v220, 112
        %v1005 = vsel %vm1004, %v1001, %v1003
        %v1006 = vsel %vm1004, %v999, %v1001
        %v1007 = vsel %vm1004, %v997, %v999
        %1008 = vst [vmem:[#allocation2 + $0x510] sm:$0xff] %v1007
        %1009 = vst [vmem:[#allocation2 + $0x518] sm:$0xff] %v1006
        %1010 = vst [vmem:[#allocation2 + $0x520] sm:$0xff] %v1005
        %1011 = vrot.lane.b32.xlu0 %v204, 111
        %v1012 = vpop.permute.xlu0 %1011
        %1013 = vrot.lane.b32.xlu0 %v205, 111
        %v1014 = vpop.permute.xlu0 %1013
        %1015 = vrot.lane.b32.xlu0 %v206, 111
        %v1016 = vpop.permute.xlu0 %1015
        %1017 = vrot.lane.b32.xlu0 %v207, 111
        %v1018 = vpop.permute.xlu0 %1017
        %vm1019 = vcmp.lt.s32.totalorder %v220, 111
        %v1020 = vsel %vm1019, %v1016, %v1018
        %v1021 = vsel %vm1019, %v1014, %v1016
        %v1022 = vsel %vm1019, %v1012, %v1014
        %1023 = vst [vmem:[#allocation2 + $0x528] sm:$0xff] %v1022
        %1024 = vst [vmem:[#allocation2 + $0x530] sm:$0xff] %v1021
        %1025 = vst [vmem:[#allocation2 + $0x538] sm:$0xff] %v1020
        %1026 = vrot.lane.b32.xlu0 %v204, 110
        %v1027 = vpop.permute.xlu0 %1026
        %1028 = vrot.lane.b32.xlu0 %v205, 110
        %v1029 = vpop.permute.xlu0 %1028
        %1030 = vrot.lane.b32.xlu0 %v206, 110
        %v1031 = vpop.permute.xlu0 %1030
        %1032 = vrot.lane.b32.xlu0 %v207, 110
        %v1033 = vpop.permute.xlu0 %1032
        %vm1034 = vcmp.lt.s32.totalorder %v220, 110
        %v1035 = vsel %vm1034, %v1031, %v1033
        %v1036 = vsel %vm1034, %v1029, %v1031
        %v1037 = vsel %vm1034, %v1027, %v1029
        %1038 = vst [vmem:[#allocation2 + $0x540] sm:$0xff] %v1037
        %1039 = vst [vmem:[#allocation2 + $0x548] sm:$0xff] %v1036
        %1040 = vst [vmem:[#allocation2 + $0x550] sm:$0xff] %v1035
        %1041 = vrot.lane.b32.xlu0 %v204, 109
        %v1042 = vpop.permute.xlu0 %1041
        %1043 = vrot.lane.b32.xlu0 %v205, 109
        %v1044 = vpop.permute.xlu0 %1043
        %1045 = vrot.lane.b32.xlu0 %v206, 109
        %v1046 = vpop.permute.xlu0 %1045
        %1047 = vrot.lane.b32.xlu0 %v207, 109
        %v1048 = vpop.permute.xlu0 %1047
        %vm1049 = vcmp.lt.s32.totalorder %v220, 109
        %v1050 = vsel %vm1049, %v1046, %v1048
        %v1051 = vsel %vm1049, %v1044, %v1046
        %v1052 = vsel %vm1049, %v1042, %v1044
        %1053 = vst [vmem:[#allocation2 + $0x558] sm:$0xff] %v1052
        %1054 = vst [vmem:[#allocation2 + $0x560] sm:$0xff] %v1051
        %1055 = vst [vmem:[#allocation2 + $0x568] sm:$0xff] %v1050
        %1056 = vrot.lane.b32.xlu0 %v204, 108
        %v1057 = vpop.permute.xlu0 %1056
        %1058 = vrot.lane.b32.xlu0 %v205, 108
        %v1059 = vpop.permute.xlu0 %1058
        %1060 = vrot.lane.b32.xlu0 %v206, 108
        %v1061 = vpop.permute.xlu0 %1060
        %1062 = vrot.lane.b32.xlu0 %v207, 108
        %v1063 = vpop.permute.xlu0 %1062
        %vm1064 = vcmp.lt.s32.totalorder %v220, 108
        %v1065 = vsel %vm1064, %v1061, %v1063
        %v1066 = vsel %vm1064, %v1059, %v1061
        %v1067 = vsel %vm1064, %v1057, %v1059
        %1068 = vst [vmem:[#allocation2 + $0x570] sm:$0xff] %v1067
        %1069 = vst [vmem:[#allocation2 + $0x578] sm:$0xff] %v1066
        %1070 = vst [vmem:[#allocation2 + $0x580] sm:$0xff] %v1065
        %1071 = vrot.lane.b32.xlu0 %v204, 107
        %v1072 = vpop.permute.xlu0 %1071
        %1073 = vrot.lane.b32.xlu0 %v205, 107
        %v1074 = vpop.permute.xlu0 %1073
        %1075 = vrot.lane.b32.xlu0 %v206, 107
        %v1076 = vpop.permute.xlu0 %1075
        %1077 = vrot.lane.b32.xlu0 %v207, 107
        %v1078 = vpop.permute.xlu0 %1077
        %vm1079 = vcmp.lt.s32.totalorder %v220, 107
        %v1080 = vsel %vm1079, %v1076, %v1078
        %v1081 = vsel %vm1079, %v1074, %v1076
        %v1082 = vsel %vm1079, %v1072, %v1074
        %1083 = vst [vmem:[#allocation2 + $0x588] sm:$0xff] %v1082
        %1084 = vst [vmem:[#allocation2 + $0x590] sm:$0xff] %v1081
        %1085 = vst [vmem:[#allocation2 + $0x598] sm:$0xff] %v1080
        %1086 = vrot.lane.b32.xlu0 %v204, 106
        %v1087 = vpop.permute.xlu0 %1086
        %1088 = vrot.lane.b32.xlu0 %v205, 106
        %v1089 = vpop.permute.xlu0 %1088
        %1090 = vrot.lane.b32.xlu0 %v206, 106
        %v1091 = vpop.permute.xlu0 %1090
        %1092 = vrot.lane.b32.xlu0 %v207, 106
        %v1093 = vpop.permute.xlu0 %1092
        %vm1094 = vcmp.lt.s32.totalorder %v220, 106
        %v1095 = vsel %vm1094, %v1091, %v1093
        %v1096 = vsel %vm1094, %v1089, %v1091
        %v1097 = vsel %vm1094, %v1087, %v1089
        %1098 = vst [vmem:[#allocation2 + $0x5a0] sm:$0xff] %v1097
        %1099 = vst [vmem:[#allocation2 + $0x5a8] sm:$0xff] %v1096
        %1100 = vst [vmem:[#allocation2 + $0x5b0] sm:$0xff] %v1095
        %1101 = vrot.lane.b32.xlu0 %v204, 105
        %v1102 = vpop.permute.xlu0 %1101
        %1103 = vrot.lane.b32.xlu0 %v205, 105
        %v1104 = vpop.permute.xlu0 %1103
        %1105 = vrot.lane.b32.xlu0 %v206, 105
        %v1106 = vpop.permute.xlu0 %1105
        %1107 = vrot.lane.b32.xlu0 %v207, 105
        %v1108 = vpop.permute.xlu0 %1107
        %vm1109 = vcmp.lt.s32.totalorder %v220, 105
        %v1110 = vsel %vm1109, %v1106, %v1108
        %v1111 = vsel %vm1109, %v1104, %v1106
        %v1112 = vsel %vm1109, %v1102, %v1104
        %1113 = vst [vmem:[#allocation2 + $0x5b8] sm:$0xff] %v1112
        %1114 = vst [vmem:[#allocation2 + $0x5c0] sm:$0xff] %v1111
        %1115 = vst [vmem:[#allocation2 + $0x5c8] sm:$0xff] %v1110
        %1116 = vrot.lane.b32.xlu0 %v207, 104
        %v1117 = vpop.permute.xlu0 %1116
        %v1118 = vsel %vm341, %v340, %v1117
        %1119 = vst [vmem:[#allocation2 + $0x5d0] sm:$0xff] %v343
        %1120 = vst [vmem:[#allocation2 + $0x5d8] sm:$0xff] %v342
        %1121 = vst [vmem:[#allocation2 + $0x5e0] sm:$0xff] %v1118
        %1122 = vrot.lane.b32.xlu0 %v204, 88
        %v1123 = vpop.permute.xlu0 %1122
        %1124 = vrot.lane.b32.xlu0 %v205, 88
        %v1125 = vpop.permute.xlu0 %1124
        %1126 = vrot.lane.b32.xlu0 %v206, 88
        %v1127 = vpop.permute.xlu0 %1126
        %1128 = vrot.lane.b32.xlu0 %v207, 88
        %v1129 = vpop.permute.xlu0 %1128
        %vm1130 = vcmp.lt.s32.totalorder %v220, 88
        %v1131 = vsel %vm1130, %v1127, %v1129
        %v1132 = vsel %vm1130, %v1125, %v1127
        %v1133 = vsel %vm1130, %v1123, %v1125
        %1134 = vst [vmem:[#allocation2 + $0x5e8] sm:$0xff] %v1133
        %1135 = vst [vmem:[#allocation2 + $0x5f0] sm:$0xff] %v1132
        %1136 = vst [vmem:[#allocation2 + $0x5f8] sm:$0xff] %v1131
        %1137 = vrot.lane.b32.xlu0 %v204, 87
        %v1138 = vpop.permute.xlu0 %1137
        %1139 = vrot.lane.b32.xlu0 %v205, 87
        %v1140 = vpop.permute.xlu0 %1139
        %1141 = vrot.lane.b32.xlu0 %v206, 87
        %v1142 = vpop.permute.xlu0 %1141
        %1143 = vrot.lane.b32.xlu0 %v207, 87
        %v1144 = vpop.permute.xlu0 %1143
        %vm1145 = vcmp.lt.s32.totalorder %v220, 87
        %v1146 = vsel %vm1145, %v1142, %v1144
        %v1147 = vsel %vm1145, %v1140, %v1142
        %v1148 = vsel %vm1145, %v1138, %v1140
        %1149 = vst [vmem:[#allocation2 + $0x600] sm:$0xff] %v1148
        %1150 = vst [vmem:[#allocation2 + $0x608] sm:$0xff] %v1147
        %1151 = vst [vmem:[#allocation2 + $0x610] sm:$0xff] %v1146
        %1152 = vrot.lane.b32.xlu0 %v204, 86
        %v1153 = vpop.permute.xlu0 %1152
        %1154 = vrot.lane.b32.xlu0 %v205, 86
        %v1155 = vpop.permute.xlu0 %1154
        %1156 = vrot.lane.b32.xlu0 %v206, 86
        %v1157 = vpop.permute.xlu0 %1156
        %1158 = vrot.lane.b32.xlu0 %v207, 86
        %v1159 = vpop.permute.xlu0 %1158
        %vm1160 = vcmp.lt.s32.totalorder %v220, 86
        %v1161 = vsel %vm1160, %v1157, %v1159
        %v1162 = vsel %vm1160, %v1155, %v1157
        %v1163 = vsel %vm1160, %v1153, %v1155
        %1164 = vst [vmem:[#allocation2 + $0x618] sm:$0xff] %v1163
        %1165 = vst [vmem:[#allocation2 + $0x620] sm:$0xff] %v1162
        %1166 = vst [vmem:[#allocation2 + $0x628] sm:$0xff] %v1161
        %1167 = vrot.lane.b32.xlu0 %v204, 85
        %v1168 = vpop.permute.xlu0 %1167
        %1169 = vrot.lane.b32.xlu0 %v205, 85
        %v1170 = vpop.permute.xlu0 %1169
        %1171 = vrot.lane.b32.xlu0 %v206, 85
        %v1172 = vpop.permute.xlu0 %1171
        %1173 = vrot.lane.b32.xlu0 %v207, 85
        %v1174 = vpop.permute.xlu0 %1173
        %vm1175 = vcmp.lt.s32.totalorder %v220, 85
        %v1176 = vsel %vm1175, %v1172, %v1174
        %v1177 = vsel %vm1175, %v1170, %v1172
        %v1178 = vsel %vm1175, %v1168, %v1170
        %1179 = vst [vmem:[#allocation2 + $0x630] sm:$0xff] %v1178
        %1180 = vst [vmem:[#allocation2 + $0x638] sm:$0xff] %v1177
        %1181 = vst [vmem:[#allocation2 + $0x640] sm:$0xff] %v1176
        %1182 = vrot.lane.b32.xlu0 %v204, 84
        %v1183 = vpop.permute.xlu0 %1182
        %1184 = vrot.lane.b32.xlu0 %v205, 84
        %v1185 = vpop.permute.xlu0 %1184
        %1186 = vrot.lane.b32.xlu0 %v206, 84
        %v1187 = vpop.permute.xlu0 %1186
        %1188 = vrot.lane.b32.xlu0 %v207, 84
        %v1189 = vpop.permute.xlu0 %1188
        %vm1190 = vcmp.lt.s32.totalorder %v220, 84
        %v1191 = vsel %vm1190, %v1187, %v1189
        %v1192 = vsel %vm1190, %v1185, %v1187
        %v1193 = vsel %vm1190, %v1183, %v1185
        %1194 = vst [vmem:[#allocation2 + $0x648] sm:$0xff] %v1193
        %1195 = vst [vmem:[#allocation2 + $0x650] sm:$0xff] %v1192
        %1196 = vst [vmem:[#allocation2 + $0x658] sm:$0xff] %v1191
        %1197 = vrot.lane.b32.xlu0 %v204, 83
        %v1198 = vpop.permute.xlu0 %1197
        %1199 = vrot.lane.b32.xlu0 %v205, 83
        %v1200 = vpop.permute.xlu0 %1199
        %1201 = vrot.lane.b32.xlu0 %v206, 83
        %v1202 = vpop.permute.xlu0 %1201
        %1203 = vrot.lane.b32.xlu0 %v207, 83
        %v1204 = vpop.permute.xlu0 %1203
        %vm1205 = vcmp.lt.s32.totalorder %v220, 83
        %v1206 = vsel %vm1205, %v1202, %v1204
        %v1207 = vsel %vm1205, %v1200, %v1202
        %v1208 = vsel %vm1205, %v1198, %v1200
        %1209 = vst [vmem:[#allocation2 + $0x660] sm:$0xff] %v1208
        %1210 = vst [vmem:[#allocation2 + $0x668] sm:$0xff] %v1207
        %1211 = vst [vmem:[#allocation2 + $0x670] sm:$0xff] %v1206
        %1212 = vrot.lane.b32.xlu0 %v204, 82
        %v1213 = vpop.permute.xlu0 %1212
        %1214 = vrot.lane.b32.xlu0 %v205, 82
        %v1215 = vpop.permute.xlu0 %1214
        %1216 = vrot.lane.b32.xlu0 %v206, 82
        %v1217 = vpop.permute.xlu0 %1216
        %1218 = vrot.lane.b32.xlu0 %v207, 82
        %v1219 = vpop.permute.xlu0 %1218
        %vm1220 = vcmp.lt.s32.totalorder %v220, 82
        %v1221 = vsel %vm1220, %v1217, %v1219
        %v1222 = vsel %vm1220, %v1215, %v1217
        %v1223 = vsel %vm1220, %v1213, %v1215
        %1224 = vst [vmem:[#allocation2 + $0x678] sm:$0xff] %v1223
        %1225 = vst [vmem:[#allocation2 + $0x680] sm:$0xff] %v1222
        %1226 = vst [vmem:[#allocation2 + $0x688] sm:$0xff] %v1221
        %1227 = vrot.lane.b32.xlu0 %v204, 81
        %v1228 = vpop.permute.xlu0 %1227
        %1229 = vrot.lane.b32.xlu0 %v205, 81
        %v1230 = vpop.permute.xlu0 %1229
        %1231 = vrot.lane.b32.xlu0 %v206, 81
        %v1232 = vpop.permute.xlu0 %1231
        %1233 = vrot.lane.b32.xlu0 %v207, 81
        %v1234 = vpop.permute.xlu0 %1233
        %vm1235 = vcmp.lt.s32.totalorder %v220, 81
        %v1236 = vsel %vm1235, %v1232, %v1234
        %v1237 = vsel %vm1235, %v1230, %v1232
        %v1238 = vsel %vm1235, %v1228, %v1230
        %1239 = vst [vmem:[#allocation2 + $0x690] sm:$0xff] %v1238
        %1240 = vst [vmem:[#allocation2 + $0x698] sm:$0xff] %v1237
        %1241 = vst [vmem:[#allocation2 + $0x6a0] sm:$0xff] %v1236
        %1242 = vrot.lane.b32.xlu0 %v207, 80
        %v1243 = vpop.permute.xlu0 %1242
        %v1244 = vsel %vm476, %v475, %v1243
        %1245 = vst [vmem:[#allocation2 + $0x6a8] sm:$0xff] %v478
        %1246 = vst [vmem:[#allocation2 + $0x6b0] sm:$0xff] %v477
        %1247 = vst [vmem:[#allocation2 + $0x6b8] sm:$0xff] %v1244
        %1248 = vrot.lane.b32.xlu0 %v204, 64
        %v1249 = vpop.permute.xlu0 %1248
        %1250 = vrot.lane.b32.xlu0 %v205, 64
        %v1251 = vpop.permute.xlu0 %1250
        %1252 = vrot.lane.b32.xlu0 %v206, 64
        %v1253 = vpop.permute.xlu0 %1252
        %1254 = vrot.lane.b32.xlu0 %v207, 64
        %v1255 = vpop.permute.xlu0 %1254
        %vm1256 = vcmp.lt.s32.totalorder %v220, 64
        %v1257 = vsel %vm1256, %v1253, %v1255
        %v1258 = vsel %vm1256, %v1251, %v1253
        %v1259 = vsel %vm1256, %v1249, %v1251
        %1260 = vst [vmem:[#allocation2 + $0x6c0] sm:$0xff] %v1259
        %1261 = vst [vmem:[#allocation2 + $0x6c8] sm:$0xff] %v1258
        %1262 = vst [vmem:[#allocation2 + $0x6d0] sm:$0xff] %v1257
        %1263 = vrot.lane.b32.xlu0 %v204, 63
        %v1264 = vpop.permute.xlu0 %1263
        %1265 = vrot.lane.b32.xlu0 %v205, 63
        %v1266 = vpop.permute.xlu0 %1265
        %1267 = vrot.lane.b32.xlu0 %v206, 63
        %v1268 = vpop.permute.xlu0 %1267
        %1269 = vrot.lane.b32.xlu0 %v207, 63
        %v1270 = vpop.permute.xlu0 %1269
        %vm1271 = vcmp.lt.s32.totalorder %v220, 63
        %v1272 = vsel %vm1271, %v1268, %v1270
        %v1273 = vsel %vm1271, %v1266, %v1268
        %v1274 = vsel %vm1271, %v1264, %v1266
        %1275 = vst [vmem:[#allocation2 + $0x6d8] sm:$0xff] %v1274
        %1276 = vst [vmem:[#allocation2 + $0x6e0] sm:$0xff] %v1273
        %1277 = vst [vmem:[#allocation2 + $0x6e8] sm:$0xff] %v1272
        %1278 = vrot.lane.b32.xlu0 %v204, 62
        %v1279 = vpop.permute.xlu0 %1278
        %1280 = vrot.lane.b32.xlu0 %v205, 62
        %v1281 = vpop.permute.xlu0 %1280
        %1282 = vrot.lane.b32.xlu0 %v206, 62
        %v1283 = vpop.permute.xlu0 %1282
        %1284 = vrot.lane.b32.xlu0 %v207, 62
        %v1285 = vpop.permute.xlu0 %1284
        %vm1286 = vcmp.lt.s32.totalorder %v220, 62
        %v1287 = vsel %vm1286, %v1283, %v1285
        %v1288 = vsel %vm1286, %v1281, %v1283
        %v1289 = vsel %vm1286, %v1279, %v1281
        %1290 = vst [vmem:[#allocation2 + $0x6f0] sm:$0xff] %v1289
        %1291 = vst [vmem:[#allocation2 + $0x6f8] sm:$0xff] %v1288
        %1292 = vst [vmem:[#allocation2 + $0x700] sm:$0xff] %v1287
        %1293 = vrot.lane.b32.xlu0 %v204, 61
        %v1294 = vpop.permute.xlu0 %1293
        %1295 = vrot.lane.b32.xlu0 %v205, 61
        %v1296 = vpop.permute.xlu0 %1295
        %1297 = vrot.lane.b32.xlu0 %v206, 61
        %v1298 = vpop.permute.xlu0 %1297
        %1299 = vrot.lane.b32.xlu0 %v207, 61
        %v1300 = vpop.permute.xlu0 %1299
        %vm1301 = vcmp.lt.s32.totalorder %v220, 61
        %v1302 = vsel %vm1301, %v1298, %v1300
        %v1303 = vsel %vm1301, %v1296, %v1298
        %v1304 = vsel %vm1301, %v1294, %v1296
        %1305 = vst [vmem:[#allocation2 + $0x708] sm:$0xff] %v1304
        %1306 = vst [vmem:[#allocation2 + $0x710] sm:$0xff] %v1303
        %1307 = vst [vmem:[#allocation2 + $0x718] sm:$0xff] %v1302
        %1308 = vrot.lane.b32.xlu0 %v204, 60
        %v1309 = vpop.permute.xlu0 %1308
        %1310 = vrot.lane.b32.xlu0 %v205, 60
        %v1311 = vpop.permute.xlu0 %1310
        %1312 = vrot.lane.b32.xlu0 %v206, 60
        %v1313 = vpop.permute.xlu0 %1312
        %1314 = vrot.lane.b32.xlu0 %v207, 60
        %v1315 = vpop.permute.xlu0 %1314
        %vm1316 = vcmp.lt.s32.totalorder %v220, 60
        %v1317 = vsel %vm1316, %v1313, %v1315
        %v1318 = vsel %vm1316, %v1311, %v1313
        %v1319 = vsel %vm1316, %v1309, %v1311
        %1320 = vst [vmem:[#allocation2 + $0x720] sm:$0xff] %v1319
        %1321 = vst [vmem:[#allocation2 + $0x728] sm:$0xff] %v1318
        %1322 = vst [vmem:[#allocation2 + $0x730] sm:$0xff] %v1317
        %1323 = vrot.lane.b32.xlu0 %v204, 59
        %v1324 = vpop.permute.xlu0 %1323
        %1325 = vrot.lane.b32.xlu0 %v205, 59
        %v1326 = vpop.permute.xlu0 %1325
        %1327 = vrot.lane.b32.xlu0 %v206, 59
        %v1328 = vpop.permute.xlu0 %1327
        %1329 = vrot.lane.b32.xlu0 %v207, 59
        %v1330 = vpop.permute.xlu0 %1329
        %vm1331 = vcmp.lt.s32.totalorder %v220, 59
        %v1332 = vsel %vm1331, %v1328, %v1330
        %v1333 = vsel %vm1331, %v1326, %v1328
        %v1334 = vsel %vm1331, %v1324, %v1326
        %1335 = vst [vmem:[#allocation2 + $0x738] sm:$0xff] %v1334
        %1336 = vst [vmem:[#allocation2 + $0x740] sm:$0xff] %v1333
        %1337 = vst [vmem:[#allocation2 + $0x748] sm:$0xff] %v1332
        %1338 = vrot.lane.b32.xlu0 %v204, 58
        %v1339 = vpop.permute.xlu0 %1338
        %1340 = vrot.lane.b32.xlu0 %v205, 58
        %v1341 = vpop.permute.xlu0 %1340
        %1342 = vrot.lane.b32.xlu0 %v206, 58
        %v1343 = vpop.permute.xlu0 %1342
        %1344 = vrot.lane.b32.xlu0 %v207, 58
        %v1345 = vpop.permute.xlu0 %1344
        %vm1346 = vcmp.lt.s32.totalorder %v220, 58
        %v1347 = vsel %vm1346, %v1343, %v1345
        %v1348 = vsel %vm1346, %v1341, %v1343
        %v1349 = vsel %vm1346, %v1339, %v1341
        %1350 = vst [vmem:[#allocation2 + $0x750] sm:$0xff] %v1349
        %1351 = vst [vmem:[#allocation2 + $0x758] sm:$0xff] %v1348
        %1352 = vst [vmem:[#allocation2 + $0x760] sm:$0xff] %v1347
        %1353 = vrot.lane.b32.xlu0 %v204, 57
        %v1354 = vpop.permute.xlu0 %1353
        %1355 = vrot.lane.b32.xlu0 %v205, 57
        %v1356 = vpop.permute.xlu0 %1355
        %1357 = vrot.lane.b32.xlu0 %v206, 57
        %v1358 = vpop.permute.xlu0 %1357
        %1359 = vrot.lane.b32.xlu0 %v207, 57
        %v1360 = vpop.permute.xlu0 %1359
        %vm1361 = vcmp.lt.s32.totalorder %v220, 57
        %v1362 = vsel %vm1361, %v1358, %v1360
        %v1363 = vsel %vm1361, %v1356, %v1358
        %v1364 = vsel %vm1361, %v1354, %v1356
        %1365 = vst [vmem:[#allocation2 + $0x768] sm:$0xff] %v1364
        %1366 = vst [vmem:[#allocation2 + $0x770] sm:$0xff] %v1363
        %1367 = vst [vmem:[#allocation2 + $0x778] sm:$0xff] %v1362
        %1368 = vrot.lane.b32.xlu0 %v207, 56
        %v1369 = vpop.permute.xlu0 %1368
        %v1370 = vsel %vm611, %v610, %v1369
        %1371 = vst [vmem:[#allocation2 + $0x780] sm:$0xff] %v613
        %1372 = vst [vmem:[#allocation2 + $0x788] sm:$0xff] %v612
        %1373 = vst [vmem:[#allocation2 + $0x790] sm:$0xff] %v1370
        %1374 = vst [vmem:[#allocation2 + $0x798] sm:$0xff] 1.0
        %1375 = vst [vmem:[#allocation2 + $0x7a0] sm:$0xff] 1.0
        %1376 = vst [vmem:[#allocation2 + $0x7a8] sm:$0xff] 1.0
        %1377 = vrot.lane.b32.xlu0 %v198, 28
        %v1378 = vpop.permute.xlu0 %1377
        %1379 = vrot.lane.b32.xlu0 %v199, 28
        %v1380 = vpop.permute.xlu0 %1379
        %1381 = vrot.lane.b32.xlu0 %v200, 28
        %v1382 = vpop.permute.xlu0 %1381
        %1383 = vrot.lane.b32.xlu0 %v201, 28
        %v1384 = vpop.permute.xlu0 %1383
        %v1385 = vsel %vm806, %v1382, %v1384
        %v1386 = vsel %vm806, %v1380, %v1382
        %v1387 = vsel %vm806, %v1378, %v1380
        %1388 = vst [vmem:[#allocation2 + $0x7b0] sm:$0xff] %v1387
        %1389 = vst [vmem:[#allocation2 + $0x7b8] sm:$0xff] %v1386
        %1390 = vst [vmem:[#allocation2 + $0x7c0] sm:$0xff] %v1385
        %v1391 = vld [vmem:[%s172] sm:$0xff]
        %v1392 = vld [vmem:[%s172 + $0x8] sm:$0xff]
        %v1393 = vld [vmem:[%s172 + $0x10] sm:$0xff]
        %v1394 = vld [vmem:[%s172 + $0x18] sm:$0xff]
        %v1395 = vld [vmem:[%s172 + $0x20] sm:$0xff]
        %v1396 = vld [vmem:[%s172 + $0x28] sm:$0xff]
        %v1397 = vld [vmem:[#allocation2] sm:$0xff]
        %v1398 = vld [vmem:[#allocation2 + $0x8] sm:$0xff]
        %v1399 = vld [vmem:[#allocation2 + $0x10] sm:$0xff]
        %v1400 = vld [vmem:[#allocation2 + $0x18] sm:$0xff]
        %v1401 = vld [vmem:[#allocation2 + $0x20] sm:$0xff]
        %v1402 = vld [vmem:[#allocation2 + $0x28] sm:$0xff]
        %v1403 = vld [vmem:[#allocation2 + $0x30] sm:$0xff]
        %v1404 = vld [vmem:[#allocation2 + $0x38] sm:$0xff]
        %v1405 = vld [vmem:[#allocation2 + $0x40] sm:$0xff]
        %v1406 = vld [vmem:[#allocation2 + $0x48] sm:$0xff]
        %v1407 = vld [vmem:[#allocation2 + $0x50] sm:$0xff]
        %v1408 = vld [vmem:[#allocation2 + $0x58] sm:$0xff]
        %v1409 = vld [vmem:[#allocation2 + $0x60] sm:$0xff]
        %v1410 = vld [vmem:[#allocation2 + $0x68] sm:$0xff]
        %v1411 = vld [vmem:[#allocation2 + $0x70] sm:$0xff]
        %v1412 = vld [vmem:[#allocation2 + $0x78] sm:$0xff]
        %v1413 = vld [vmem:[#allocation2 + $0x80] sm:$0xff]
        %v1414 = vld [vmem:[#allocation2 + $0x88] sm:$0xff]
        %v1415 = vld [vmem:[#allocation2 + $0x90] sm:$0xff]
        %v1416 = vld [vmem:[#allocation2 + $0x98] sm:$0xff]
        %v1417 = vld [vmem:[#allocation2 + $0xa0] sm:$0xff]
        %v1418 = vld [vmem:[#allocation2 + $0xa8] sm:$0xff]
        %v1419 = vld [vmem:[#allocation2 + $0xb0] sm:$0xff]
        %v1420 = vld [vmem:[#allocation2 + $0xb8] sm:$0xff]
        %v1421 = vld [vmem:[#allocation2 + $0xc0] sm:$0xff]
        %v1422 = vld [vmem:[#allocation2 + $0xc8] sm:$0xff]
        %v1423 = vld [vmem:[#allocation2 + $0xd0] sm:$0xff]
        %v1424 = vld [vmem:[#allocation2 + $0xd8] sm:$0xff]
        %v1425 = vld [vmem:[#allocation2 + $0xe0] sm:$0xff]
        %v1426 = vld [vmem:[#allocation2 + $0xe8] sm:$0xff]
        %v1427 = vld [vmem:[#allocation2 + $0xf0] sm:$0xff]
        %v1428 = vld [vmem:[#allocation2 + $0xf8] sm:$0xff]
        %v1429 = vld [vmem:[#allocation2 + $0x100] sm:$0xff]
        %v1430 = vld [vmem:[#allocation2 + $0x108] sm:$0xff]
        %v1431 = vld [vmem:[#allocation2 + $0x110] sm:$0xff]
        %v1432 = vld [vmem:[#allocation2 + $0x118] sm:$0xff]
        %v1433 = vld [vmem:[#allocation2 + $0x120] sm:$0xff]
        %v1434 = vld [vmem:[#allocation2 + $0x128] sm:$0xff]
        %v1435 = vld [vmem:[#allocation2 + $0x130] sm:$0xff]
        %v1436 = vld [vmem:[#allocation2 + $0x138] sm:$0xff]
        %v1437 = vld [vmem:[#allocation2 + $0x140] sm:$0xff]
        %v1438 = vld [vmem:[#allocation2 + $0x148] sm:$0xff]
        %v1439 = vld [vmem:[#allocation2 + $0x150] sm:$0xff]
        %v1440 = vld [vmem:[#allocation2 + $0x158] sm:$0xff]
        %v1441 = vld [vmem:[#allocation2 + $0x160] sm:$0xff]
        %v1442 = vld [vmem:[#allocation2 + $0x168] sm:$0xff]
        %v1443 = vld [vmem:[#allocation2 + $0x170] sm:$0xff]
        %v1444 = vld [vmem:[#allocation2 + $0x178] sm:$0xff]
        %v1445 = vld [vmem:[#allocation2 + $0x180] sm:$0xff]
        %v1446 = vld [vmem:[#allocation2 + $0x188] sm:$0xff]
        %v1447 = vld [vmem:[#allocation2 + $0x190] sm:$0xff]
        %v1448 = vld [vmem:[#allocation2 + $0x198] sm:$0xff]
        %v1449 = vld [vmem:[#allocation2 + $0x1a0] sm:$0xff]
        %v1450 = vld [vmem:[#allocation2 + $0x1a8] sm:$0xff]
        %v1451 = vld [vmem:[#allocation2 + $0x1b0] sm:$0xff]
        %v1452 = vld [vmem:[#allocation2 + $0x1b8] sm:$0xff]
        %v1453 = vld [vmem:[#allocation2 + $0x1c0] sm:$0xff]
        %v1454 = vld [vmem:[#allocation2 + $0x1c8] sm:$0xff]
        %v1455 = vld [vmem:[#allocation2 + $0x1d0] sm:$0xff]
        %v1456 = vld [vmem:[#allocation2 + $0x1d8] sm:$0xff]
        %v1457 = vld [vmem:[#allocation2 + $0x1e0] sm:$0xff]
        %v1458 = vld [vmem:[#allocation2 + $0x1e8] sm:$0xff]
        %v1459 = vld [vmem:[#allocation2 + $0x1f0] sm:$0xff]
        %v1460 = vld [vmem:[#allocation2 + $0x1f8] sm:$0xff]
        %v1461 = vld [vmem:[#allocation2 + $0x200] sm:$0xff]
        %v1462 = vld [vmem:[#allocation2 + $0x208] sm:$0xff]
        %v1463 = vld [vmem:[#allocation2 + $0x210] sm:$0xff]
        %v1464 = vld [vmem:[#allocation2 + $0x218] sm:$0xff]
        %v1465 = vld [vmem:[#allocation2 + $0x220] sm:$0xff]
        %v1466 = vld [vmem:[#allocation2 + $0x228] sm:$0xff]
        %v1467 = vld [vmem:[#allocation2 + $0x230] sm:$0xff]
        %v1468 = vld [vmem:[#allocation2 + $0x238] sm:$0xff]
        %v1469 = vld [vmem:[#allocation2 + $0x240] sm:$0xff]
        %v1470 = vld [vmem:[#allocation2 + $0x248] sm:$0xff]
        %v1471 = vld [vmem:[#allocation2 + $0x250] sm:$0xff]
        %v1472 = vld [vmem:[#allocation2 + $0x258] sm:$0xff]
        %v1473 = vld [vmem:[#allocation2 + $0x260] sm:$0xff]
        %v1474 = vld [vmem:[#allocation2 + $0x268] sm:$0xff]
        %v1475 = vld [vmem:[#allocation2 + $0x270] sm:$0xff]
        %v1476 = vld [vmem:[#allocation2 + $0x278] sm:$0xff]
        %v1477 = vld [vmem:[#allocation2 + $0x280] sm:$0xff]
        %v1478 = vld [vmem:[#allocation2 + $0x288] sm:$0xff]
        %v1479 = vld [vmem:[#allocation2 + $0x290] sm:$0xff]
        %v1480 = vld [vmem:[#allocation2 + $0x298] sm:$0xff]
        %v1481 = vld [vmem:[#allocation2 + $0x2a0] sm:$0xff]
        %v1482 = vld [vmem:[#allocation2 + $0x2a8] sm:$0xff]
        %v1483 = vld [vmem:[#allocation2 + $0x2b0] sm:$0xff]
        %v1484 = vld [vmem:[#allocation2 + $0x2b8] sm:$0xff]
        %v1485 = vld [vmem:[#allocation2 + $0x2c0] sm:$0xff]
        %v1486 = vld [vmem:[#allocation2 + $0x2c8] sm:$0xff]
        %v1487 = vld [vmem:[#allocation2 + $0x2d0] sm:$0xff]
        %v1488 = vld [vmem:[#allocation2 + $0x2d8] sm:$0xff]
        %v1489 = vld [vmem:[#allocation2 + $0x2e0] sm:$0xff]
        %v1490 = vld [vmem:[#allocation2 + $0x2e8] sm:$0xff]
        %v1491 = vld [vmem:[#allocation2 + $0x2f0] sm:$0xff]
        %v1492 = vld [vmem:[#allocation2 + $0x2f8] sm:$0xff]
        %v1493 = vld [vmem:[#allocation2 + $0x300] sm:$0xff]
        %v1494 = vld [vmem:[#allocation2 + $0x308] sm:$0xff]
        %v1495 = vld [vmem:[#allocation2 + $0x310] sm:$0xff]
        %v1496 = vld [vmem:[#allocation2 + $0x318] sm:$0xff]
        %v1497 = vld [vmem:[#allocation2 + $0x320] sm:$0xff]
        %v1498 = vld [vmem:[#allocation2 + $0x328] sm:$0xff]
        %v1499 = vld [vmem:[#allocation2 + $0x330] sm:$0xff]
        %v1500 = vld [vmem:[#allocation2 + $0x338] sm:$0xff]
        %v1501 = vld [vmem:[#allocation2 + $0x340] sm:$0xff]
        %v1502 = vld [vmem:[#allocation2 + $0x348] sm:$0xff]
        %v1503 = vld [vmem:[#allocation2 + $0x350] sm:$0xff]
        %v1504 = vld [vmem:[#allocation2 + $0x358] sm:$0xff]
        %v1505 = vld [vmem:[#allocation2 + $0x360] sm:$0xff]
        %v1506 = vld [vmem:[#allocation2 + $0x368] sm:$0xff]
        %v1507 = vld [vmem:[#allocation2 + $0x370] sm:$0xff]
        %v1508 = vld [vmem:[#allocation2 + $0x378] sm:$0xff]
        %v1509 = vld [vmem:[#allocation2 + $0x380] sm:$0xff]
        %v1510 = vld [vmem:[#allocation2 + $0x388] sm:$0xff]
        %v1511 = vld [vmem:[#allocation2 + $0x390] sm:$0xff]
        %v1512 = vld [vmem:[#allocation2 + $0x398] sm:$0xff]
        %v1513 = vld [vmem:[#allocation2 + $0x3a0] sm:$0xff]
        %v1514 = vld [vmem:[#allocation2 + $0x3a8] sm:$0xff]
        %v1515 = vld [vmem:[#allocation2 + $0x3b0] sm:$0xff]
        %v1516 = vld [vmem:[#allocation2 + $0x3b8] sm:$0xff]
        %v1517 = vld [vmem:[#allocation2 + $0x3c0] sm:$0xff]
        %v1518 = vld [vmem:[#allocation2 + $0x3c8] sm:$0xff]
        %v1519 = vld [vmem:[#allocation2 + $0x3d0] sm:$0xff]
        %v1520 = vld [vmem:[#allocation2 + $0x3d8] sm:$0xff]
        %v1521 = vld [vmem:[#allocation2 + $0x3e0] sm:$0xff]
        %v1522 = vld [vmem:[#allocation2 + $0x3e8] sm:$0xff]
        %v1523 = vld [vmem:[#allocation2 + $0x3f0] sm:$0xff]
        %v1524 = vld [vmem:[#allocation2 + $0x3f8] sm:$0xff]
        %v1525 = vld [vmem:[#allocation2 + $0x400] sm:$0xff]
        %v1526 = vld [vmem:[#allocation2 + $0x408] sm:$0xff]
        %v1527 = vld [vmem:[#allocation2 + $0x410] sm:$0xff]
        %v1528 = vld [vmem:[#allocation2 + $0x418] sm:$0xff]
        %v1529 = vld [vmem:[#allocation2 + $0x420] sm:$0xff]
        %v1530 = vld [vmem:[#allocation2 + $0x428] sm:$0xff]
        %v1531 = vld [vmem:[#allocation2 + $0x430] sm:$0xff]
        %v1532 = vld [vmem:[#allocation2 + $0x438] sm:$0xff]
        %v1533 = vld [vmem:[#allocation2 + $0x440] sm:$0xff]
        %v1534 = vld [vmem:[#allocation2 + $0x448] sm:$0xff]
        %v1535 = vld [vmem:[#allocation2 + $0x450] sm:$0xff]
        %v1536 = vld [vmem:[#allocation2 + $0x458] sm:$0xff]
        %v1537 = vld [vmem:[#allocation2 + $0x460] sm:$0xff]
        %v1538 = vld [vmem:[#allocation2 + $0x468] sm:$0xff]
        %v1539 = vld [vmem:[#allocation2 + $0x470] sm:$0xff]
        %v1540 = vld [vmem:[#allocation2 + $0x478] sm:$0xff]
        %v1541 = vld [vmem:[#allocation2 + $0x480] sm:$0xff]
        %v1542 = vld [vmem:[#allocation2 + $0x488] sm:$0xff]
        %v1543 = vld [vmem:[#allocation2 + $0x490] sm:$0xff]
        %v1544 = vld [vmem:[#allocation2 + $0x498] sm:$0xff]
        %v1545 = vld [vmem:[#allocation2 + $0x4a0] sm:$0xff]
        %v1546 = vld [vmem:[#allocation2 + $0x4a8] sm:$0xff]
        %v1547 = vld [vmem:[#allocation2 + $0x4b0] sm:$0xff]
        %v1548 = vld [vmem:[#allocation2 + $0x4b8] sm:$0xff]
        %v1549 = vld [vmem:[#allocation2 + $0x4c0] sm:$0xff]
        %v1550 = vld [vmem:[#allocation2 + $0x4c8] sm:$0xff]
        %v1551 = vld [vmem:[#allocation2 + $0x4d0] sm:$0xff]
        %v1552 = vld [vmem:[#allocation2 + $0x4d8] sm:$0xff]
        %v1553 = vld [vmem:[#allocation2 + $0x4e0] sm:$0xff]
        %v1554 = vld [vmem:[#allocation2 + $0x4e8] sm:$0xff]
        %v1555 = vld [vmem:[#allocation2 + $0x4f0] sm:$0xff]
        %v1556 = vld [vmem:[#allocation2 + $0x4f8] sm:$0xff]
        %v1557 = vld [vmem:[#allocation2 + $0x500] sm:$0xff]
        %v1558 = vld [vmem:[#allocation2 + $0x508] sm:$0xff]
        %v1559 = vld [vmem:[#allocation2 + $0x510] sm:$0xff]
        %v1560 = vld [vmem:[#allocation2 + $0x518] sm:$0xff]
        %v1561 = vld [vmem:[#allocation2 + $0x520] sm:$0xff]
        %v1562 = vld [vmem:[#allocation2 + $0x528] sm:$0xff]
        %v1563 = vld [vmem:[#allocation2 + $0x530] sm:$0xff]
        %v1564 = vld [vmem:[#allocation2 + $0x538] sm:$0xff]
        %v1565 = vld [vmem:[#allocation2 + $0x540] sm:$0xff]
        %v1566 = vld [vmem:[#allocation2 + $0x548] sm:$0xff]
        %v1567 = vld [vmem:[#allocation2 + $0x550] sm:$0xff]
        %v1568 = vld [vmem:[#allocation2 + $0x558] sm:$0xff]
        %v1569 = vld [vmem:[#allocation2 + $0x560] sm:$0xff]
        %v1570 = vld [vmem:[#allocation2 + $0x568] sm:$0xff]
        %v1571 = vld [vmem:[#allocation2 + $0x570] sm:$0xff]
        %v1572 = vld [vmem:[#allocation2 + $0x578] sm:$0xff]
        %v1573 = vld [vmem:[#allocation2 + $0x580] sm:$0xff]
        %v1574 = vld [vmem:[#allocation2 + $0x588] sm:$0xff]
        %v1575 = vld [vmem:[#allocation2 + $0x590] sm:$0xff]
        %v1576 = vld [vmem:[#allocation2 + $0x598] sm:$0xff]
        %v1577 = vld [vmem:[#allocation2 + $0x5a0] sm:$0xff]
        %v1578 = vld [vmem:[#allocation2 + $0x5a8] sm:$0xff]
        %v1579 = vld [vmem:[#allocation2 + $0x5b0] sm:$0xff]
        %v1580 = vld [vmem:[#allocation2 + $0x5b8] sm:$0xff]
        %v1581 = vld [vmem:[#allocation2 + $0x5c0] sm:$0xff]
        %v1582 = vld [vmem:[#allocation2 + $0x5c8] sm:$0xff]
        %v1583 = vld [vmem:[#allocation2 + $0x5d0] sm:$0xff]
        %v1584 = vld [vmem:[#allocation2 + $0x5d8] sm:$0xff]
        %v1585 = vld [vmem:[#allocation2 + $0x5e0] sm:$0xff]
        %v1586 = vld [vmem:[#allocation2 + $0x5e8] sm:$0xff]
        %v1587 = vld [vmem:[#allocation2 + $0x5f0] sm:$0xff]
        %v1588 = vld [vmem:[#allocation2 + $0x5f8] sm:$0xff]
        %v1589 = vld [vmem:[#allocation2 + $0x600] sm:$0xff]
        %v1590 = vld [vmem:[#allocation2 + $0x608] sm:$0xff]
        %v1591 = vld [vmem:[#allocation2 + $0x610] sm:$0xff]
        %v1592 = vld [vmem:[#allocation2 + $0x618] sm:$0xff]
        %v1593 = vld [vmem:[#allocation2 + $0x620] sm:$0xff]
        %v1594 = vld [vmem:[#allocation2 + $0x628] sm:$0xff]
        %v1595 = vld [vmem:[#allocation2 + $0x630] sm:$0xff]
        %v1596 = vld [vmem:[#allocation2 + $0x638] sm:$0xff]
        %v1597 = vld [vmem:[#allocation2 + $0x640] sm:$0xff]
        %v1598 = vld [vmem:[#allocation2 + $0x648] sm:$0xff]
        %v1599 = vld [vmem:[#allocation2 + $0x650] sm:$0xff]
        %v1600 = vld [vmem:[#allocation2 + $0x658] sm:$0xff]
        %v1601 = vld [vmem:[#allocation2 + $0x660] sm:$0xff]
        %v1602 = vld [vmem:[#allocation2 + $0x668] sm:$0xff]
        %v1603 = vld [vmem:[#allocation2 + $0x670] sm:$0xff]
        %v1604 = vld [vmem:[#allocation2 + $0x678] sm:$0xff]
        %v1605 = vld [vmem:[#allocation2 + $0x680] sm:$0xff]
        %v1606 = vld [vmem:[#allocation2 + $0x688] sm:$0xff]
        %v1607 = vld [vmem:[#allocation2 + $0x690] sm:$0xff]
        %v1608 = vld [vmem:[#allocation2 + $0x698] sm:$0xff]
        %v1609 = vld [vmem:[#allocation2 + $0x6a0] sm:$0xff]
        %v1610 = vld [vmem:[#allocation2 + $0x6a8] sm:$0xff]
        %v1611 = vld [vmem:[#allocation2 + $0x6b0] sm:$0xff]
        %v1612 = vld [vmem:[#allocation2 + $0x6b8] sm:$0xff]
        %v1613 = vld [vmem:[#allocation2 + $0x6c0] sm:$0xff]
        %v1614 = vld [vmem:[#allocation2 + $0x6c8] sm:$0xff]
        %v1615 = vld [vmem:[#allocation2 + $0x6d0] sm:$0xff]
        %v1616 = vld [vmem:[#allocation2 + $0x6d8] sm:$0xff]
        %v1617 = vld [vmem:[#allocation2 + $0x6e0] sm:$0xff]
        %v1618 = vld [vmem:[#allocation2 + $0x6e8] sm:$0xff]
        %v1619 = vld [vmem:[#allocation2 + $0x6f0] sm:$0xff]
        %v1620 = vld [vmem:[#allocation2 + $0x6f8] sm:$0xff]
        %v1621 = vld [vmem:[#allocation2 + $0x700] sm:$0xff]
        %v1622 = vld [vmem:[#allocation2 + $0x708] sm:$0xff]
        %v1623 = vld [vmem:[#allocation2 + $0x710] sm:$0xff]
        %v1624 = vld [vmem:[#allocation2 + $0x718] sm:$0xff]
        %v1625 = vld [vmem:[#allocation2 + $0x720] sm:$0xff]
        %v1626 = vld [vmem:[#allocation2 + $0x728] sm:$0xff]
        %v1627 = vld [vmem:[#allocation2 + $0x730] sm:$0xff]
        %v1628 = vld [vmem:[#allocation2 + $0x738] sm:$0xff]
        %v1629 = vld [vmem:[#allocation2 + $0x740] sm:$0xff]
        %v1630 = vld [vmem:[#allocation2 + $0x748] sm:$0xff]
        %v1631 = vld [vmem:[#allocation2 + $0x750] sm:$0xff]
        %v1632 = vld [vmem:[#allocation2 + $0x758] sm:$0xff]
        %v1633 = vld [vmem:[#allocation2 + $0x760] sm:$0xff]
        %v1634 = vld [vmem:[#allocation2 + $0x768] sm:$0xff]
        %v1635 = vld [vmem:[#allocation2 + $0x770] sm:$0xff]
        %v1636 = vld [vmem:[#allocation2 + $0x778] sm:$0xff]
        %v1637 = vld [vmem:[#allocation2 + $0x780] sm:$0xff]
        %v1638 = vld [vmem:[#allocation2 + $0x788] sm:$0xff]
        %v1639 = vld [vmem:[#allocation2 + $0x790] sm:$0xff]
        %v1640 = vld [vmem:[#allocation2 + $0x798] sm:$0xff]
        %v1641 = vld [vmem:[#allocation2 + $0x7a0] sm:$0xff]
        %v1642 = vld [vmem:[#allocation2 + $0x7a8] sm:$0xff]
        %v1643 = vld [vmem:[#allocation2 + $0x7b0] sm:$0xff]
        %v1644 = vld [vmem:[#allocation2 + $0x7b8] sm:$0xff]
        %v1645 = vld [vmem:[#allocation2 + $0x7c0] sm:$0xff]
        %vm1646 = vcmask 195584
        %v1648 = vsel %vm1646, %v1396, 0
        %1650 = vmatprep.subr.mxu0 %v1398
        %1651 = vmatpush1.msra.mxu0 %v1397
        %1652 = vmatprep.subr.mxu0 %v1401
        %1653 = vmatpush1.msra.mxu0 %v1400
        %1654 = vmatprep.subr.mxu0 %v1404
        %1655 = vmatpush1.msra.mxu0 %v1403
        %1656 = vmatprep.subr.mxu0 %v1407
        %1657 = vmatpush1.msra.mxu0 %v1406
        %1658 = vmatprep.subr.mxu0 %v1410
        %1659 = vmatpush1.msra.mxu0 %v1409
        %1660 = vmatprep.subr.mxu0 %v1413
        %1661 = vmatpush1.msra.mxu0 %v1412
        %1662 = vmatprep.subr.mxu0 %v1416
        %1663 = vmatpush1.msra.mxu0 %v1415
        %1664 = vmatprep.subr.mxu0 %v1419
        %1665 = vmatpush1.msra.mxu0 %v1418
        %1666 = vmatprep.subr.mxu0 %v1422
        %1667 = vmatpush1.msra.mxu0 %v1421
        %1668 = vmatprep.subr.mxu0 %v1425
        %1669 = vmatpush1.msra.mxu0 %v1424
        %1670 = vmatprep.subr.mxu0 %v1428
        %1671 = vmatpush1.msra.mxu0 %v1427
        %1672 = vmatprep.subr.mxu0 %v1431
        %1673 = vmatpush1.msra.mxu0 %v1430
        %1674 = vmatprep.subr.mxu0 %v1434
        %1675 = vmatpush1.msra.mxu0 %v1433
        %1676 = vmatprep.subr.mxu0 %v1437
        %1677 = vmatpush1.msra.mxu0 %v1436
        %1678 = vmatprep.subr.mxu0 %v1440
        %1679 = vmatpush1.msra.mxu0 %v1439
        %1680 = vmatprep.subr.mxu0 %v1443
        %1681 = vmatpush1.msra.mxu0 %v1442
        %1682 = vmatprep.subr.mxu0 %v1446
        %1683 = vmatpush1.msra.mxu0 %v1445
        %1684 = vmatprep.subr.mxu0 %v1449
        %1685 = vmatpush1.msra.mxu0 %v1448
        %1686 = vmatprep.subr.mxu0 %v1452
        %1687 = vmatpush1.msra.mxu0 %v1451
        %1688 = vmatprep.subr.mxu0 %v1455
        %1689 = vmatpush1.msra.mxu0 %v1454
        %1690 = vmatprep.subr.mxu0 %v1458
        %1691 = vmatpush1.msra.mxu0 %v1457
        %1692 = vmatprep.subr.mxu0 %v1461
        %1693 = vmatpush1.msra.mxu0 %v1460
        %1694 = vmatprep.subr.mxu0 %v1464
        %1695 = vmatpush1.msra.mxu0 %v1463
        %1696 = vmatprep.subr.mxu0 %v1467
        %1697 = vmatpush1.msra.mxu0 %v1466
        %1698 = vmatprep.subr.mxu0 %v1470
        %1699 = vmatpush1.msra.mxu0 %v1469
        %1700 = vmatprep.subr.mxu0 %v1473
        %1701 = vmatpush1.msra.mxu0 %v1472
        %1702 = vmatprep.subr.mxu0 %v1476
        %1703 = vmatpush1.msra.mxu0 %v1475
        %1704 = vmatprep.subr.mxu0 %v1479
        %1705 = vmatpush1.msra.mxu0 %v1478
        %1706 = vmatprep.subr.mxu0 %v1482
        %1707 = vmatpush1.msra.mxu0 %v1481
        %1708 = vmatprep.subr.mxu0 %v1485
        %1709 = vmatpush1.msra.mxu0 %v1484
        %1710 = vmatprep.subr.mxu0 %v1488
        %1711 = vmatpush1.msra.mxu0 %v1487
        %1712 = vmatprep.subr.mxu0 %v1491
        %1713 = vmatpush1.msra.mxu0 %v1490
        %1714 = vmatprep.mubr.f32.mxu0 %v1392
        %1715 = vmatmul.mubr.f32.gmra.mrb[0].mxu0 %v1391
        %v1716 = vpop.f32.mrb[0].mxu0
        %v1717 = vadd.f32 0.0, %v1716
        %v1718 = vpop.f32.mrb[0].mxu0
        %v1719 = vadd.f32 0.0, %v1718
        %1720 = vdwg.mxu0
        %1721 = vmatprep.subr.mxu0 %v1494
        %1722 = vmatpush1.msra.mxu0 %v1493
        %1723 = vmatprep.subr.mxu0 %v1497
        %1724 = vmatpush1.msra.mxu0 %v1496
        %1725 = vmatprep.subr.mxu0 %v1500
        %1726 = vmatpush1.msra.mxu0 %v1499
        %1727 = vmatprep.subr.mxu0 %v1503
        %1728 = vmatpush1.msra.mxu0 %v1502
        %1729 = vmatprep.subr.mxu0 %v1506
        %1730 = vmatpush1.msra.mxu0 %v1505
        %1731 = vmatprep.subr.mxu0 %v1509
        %1732 = vmatpush1.msra.mxu0 %v1508
        %1733 = vmatprep.subr.mxu0 %v1512
        %1734 = vmatpush1.msra.mxu0 %v1511
        %1735 = vmatprep.subr.mxu0 %v1515
        %1736 = vmatpush1.msra.mxu0 %v1514
        %1737 = vmatprep.subr.mxu0 %v1518
        %1738 = vmatpush1.msra.mxu0 %v1517
        %1739 = vmatprep.subr.mxu0 %v1521
        %1740 = vmatpush1.msra.mxu0 %v1520
        %1741 = vmatprep.subr.mxu0 %v1524
        %1742 = vmatpush1.msra.mxu0 %v1523
        %1743 = vmatprep.subr.mxu0 %v1527
        %1744 = vmatpush1.msra.mxu0 %v1526
        %1745 = vmatprep.subr.mxu0 %v1530
        %1746 = vmatpush1.msra.mxu0 %v1529
        %1747 = vmatprep.subr.mxu0 %v1533
        %1748 = vmatpush1.msra.mxu0 %v1532
        %1749 = vmatprep.subr.mxu0 %v1536
        %1750 = vmatpush1.msra.mxu0 %v1535
        %1751 = vmatprep.subr.mxu0 %v1539
        %1752 = vmatpush1.msra.mxu0 %v1538
        %1753 = vmatprep.subr.mxu0 %v1542
        %1754 = vmatpush1.msra.mxu0 %v1541
        %1755 = vmatprep.subr.mxu0 %v1545
        %1756 = vmatpush1.msra.mxu0 %v1544
        %1757 = vmatprep.subr.mxu0 %v1548
        %1758 = vmatpush1.msra.mxu0 %v1547
        %1759 = vmatprep.subr.mxu0 %v1551
        %1760 = vmatpush1.msra.mxu0 %v1550
        %1761 = vmatprep.subr.mxu0 %v1554
        %1762 = vmatpush1.msra.mxu0 %v1553
        %1763 = vmatprep.subr.mxu0 %v1557
        %1764 = vmatpush1.msra.mxu0 %v1556
        %1765 = vmatprep.subr.mxu0 %v1560
        %1766 = vmatpush1.msra.mxu0 %v1559
        %1767 = vmatprep.subr.mxu0 %v1563
        %1768 = vmatpush1.msra.mxu0 %v1562
        %1769 = vmatprep.subr.mxu0 %v1566
        %1770 = vmatpush1.msra.mxu0 %v1565
        %1771 = vmatprep.subr.mxu0 %v1569
        %1772 = vmatpush1.msra.mxu0 %v1568
        %1773 = vmatprep.subr.mxu0 %v1572
        %1774 = vmatpush1.msra.mxu0 %v1571
        %1775 = vmatprep.subr.mxu0 %v1575
        %1776 = vmatpush1.msra.mxu0 %v1574
        %1777 = vmatprep.subr.mxu0 %v1578
        %1778 = vmatpush1.msra.mxu0 %v1577
        %1779 = vmatprep.subr.mxu0 %v1581
        %1780 = vmatpush1.msra.mxu0 %v1580
        %1781 = vmatprep.subr.mxu0 %v1584
        %1782 = vmatpush1.msra.mxu0 %v1583
        %1783 = vmatprep.subr.mxu0 %v1587
        %1784 = vmatpush1.msra.mxu0 %v1586
        %1785 = vmatprep.mubr.f32.mxu0 %v1394
        %1786 = vmatmul.mubr.f32.gmra.mrb[0].mxu0 %v1393
        %v1787 = vpop.f32.mrb[0].mxu0
        %v1788 = vadd.f32 %v1717, %v1787
        %v1789 = vpop.f32.mrb[0].mxu0
        %v1790 = vadd.f32 %v1719, %v1789
        %1791 = vdwg.mxu0
        %1792 = vmatprep.subr.mxu0 %v1590
        %1793 = vmatpush1.msra.mxu0 %v1589
        %1794 = vmatprep.subr.mxu0 %v1593
        %1795 = vmatpush1.msra.mxu0 %v1592
        %1796 = vmatprep.subr.mxu0 %v1596
        %1797 = vmatpush1.msra.mxu0 %v1595
        %1798 = vmatprep.subr.mxu0 %v1599
        %1799 = vmatpush1.msra.mxu0 %v1598
        %1800 = vmatprep.subr.mxu0 %v1602
        %1801 = vmatpush1.msra.mxu0 %v1601
        %1802 = vmatprep.subr.mxu0 %v1605
        %1803 = vmatpush1.msra.mxu0 %v1604
        %1804 = vmatprep.subr.mxu0 %v1608
        %1805 = vmatpush1.msra.mxu0 %v1607
        %1806 = vmatprep.subr.mxu0 %v1611
        %1807 = vmatpush1.msra.mxu0 %v1610
        %1808 = vmatprep.subr.mxu0 %v1614
        %1809 = vmatpush1.msra.mxu0 %v1613
        %1810 = vmatprep.subr.mxu0 %v1617
        %1811 = vmatpush1.msra.mxu0 %v1616
        %1812 = vmatprep.subr.mxu0 %v1620
        %1813 = vmatpush1.msra.mxu0 %v1619
        %1814 = vmatprep.subr.mxu0 %v1623
        %1815 = vmatpush1.msra.mxu0 %v1622
        %1816 = vmatprep.subr.mxu0 %v1626
        %1817 = vmatpush1.msra.mxu0 %v1625
        %1818 = vmatprep.subr.mxu0 %v1629
        %1819 = vmatpush1.msra.mxu0 %v1628
        %1820 = vmatprep.subr.mxu0 %v1632
        %1821 = vmatpush1.msra.mxu0 %v1631
        %1822 = vmatprep.subr.mxu0 %v1635
        %1823 = vmatpush1.msra.mxu0 %v1634
        %1824 = vmatprep.subr.mxu0 %v1638
        %1825 = vmatpush1.msra.mxu0 %v1637
        %1826 = vmatprep.subr.mxu0 %v1641
        %1827 = vmatpush1.msra.mxu0 %v1640
        %1828 = vmatprep.subr.mxu0 %v1644
        %1829 = vmatpush1.msra.mxu0 %v1643
        %1830 = vmatprep.subr.mxu0 0.0
        %1831 = vmatpush1.msra.mxu0 0.0
        %1832 = vmatprep.subr.mxu0 0.0
        %1833 = vmatpush1.msra.mxu0 0.0
        %1834 = vmatprep.subr.mxu0 0.0
        %1835 = vmatpush1.msra.mxu0 0.0
        %1836 = vmatprep.subr.mxu0 0.0
        %1837 = vmatpush1.msra.mxu0 0.0
        %1838 = vmatprep.subr.mxu0 0.0
        %1839 = vmatpush1.msra.mxu0 0.0
        %1840 = vmatprep.subr.mxu0 0.0
        %1841 = vmatpush1.msra.mxu0 0.0
        %1842 = vmatprep.subr.mxu0 0.0
        %1843 = vmatpush1.msra.mxu0 0.0
        %1844 = vmatprep.subr.mxu0 0.0
        %1845 = vmatpush1.msra.mxu0 0.0
        %1846 = vmatprep.subr.mxu0 0.0
        %1847 = vmatpush1.msra.mxu0 0.0
        %1848 = vmatprep.subr.mxu0 0.0
        %1849 = vmatpush1.msra.mxu0 0.0
        %1850 = vmatprep.subr.mxu0 0.0
        %1851 = vmatpush1.msra.mxu0 0.0
        %1852 = vmatprep.subr.mxu0 0.0
        %1853 = vmatpush1.msra.mxu0 0.0
        %1854 = vmatprep.subr.mxu0 0.0
        %1855 = vmatpush1.msra.mxu0 0.0
        %1856 = vmatprep.mubr.f32.mxu0 %v1648
        %1857 = vmatmul.mubr.f32.gmra.mrb[0].mxu0 %v1395
        %v1858 = vpop.f32.mrb[0].mxu0
        %v1859 = vadd.f32 %v1788, %v1858
        %v1860 = vpop.f32.mrb[0].mxu0
        %v1861 = vadd.f32 %v1790, %v1860
        %1862 = vdwg.mxu0
        %1863 = vmatprep.subr.mxu0 0.0
        %1864 = vmatpush1.msra.mxu0 %v1399
        %1865 = vmatprep.subr.mxu0 0.0
        %1866 = vmatpush1.msra.mxu0 %v1402
        %1867 = vmatprep.subr.mxu0 0.0
        %1868 = vmatpush1.msra.mxu0 %v1405
        %1869 = vmatprep.subr.mxu0 0.0
        %1870 = vmatpush1.msra.mxu0 %v1408
        %1871 = vmatprep.subr.mxu0 0.0
        %1872 = vmatpush1.msra.mxu0 %v1411
        %1873 = vmatprep.subr.mxu0 0.0
        %1874 = vmatpush1.msra.mxu0 %v1414
        %1875 = vmatprep.subr.mxu0 0.0
        %1876 = vmatpush1.msra.mxu0 %v1417
        %1877 = vmatprep.subr.mxu0 0.0
        %1878 = vmatpush1.msra.mxu0 %v1420
        %1879 = vmatprep.subr.mxu0 0.0
        %1880 = vmatpush1.msra.mxu0 %v1423
        %1881 = vmatprep.subr.mxu0 0.0
        %1882 = vmatpush1.msra.mxu0 %v1426
        %1883 = vmatprep.subr.mxu0 0.0
        %1884 = vmatpush1.msra.mxu0 %v1429
        %1885 = vmatprep.subr.mxu0 0.0
        %1886 = vmatpush1.msra.mxu0 %v1432
        %1887 = vmatprep.subr.mxu0 0.0
        %1888 = vmatpush1.msra.mxu0 %v1435
        %1889 = vmatprep.subr.mxu0 0.0
        %1890 = vmatpush1.msra.mxu0 %v1438
        %1891 = vmatprep.subr.mxu0 0.0
        %1892 = vmatpush1.msra.mxu0 %v1441
        %1893 = vmatprep.subr.mxu0 0.0
        %1894 = vmatpush1.msra.mxu0 %v1444
        %1895 = vmatprep.subr.mxu0 0.0
        %1896 = vmatpush1.msra.mxu0 %v1447
        %1897 = vmatprep.subr.mxu0 0.0
        %1898 = vmatpush1.msra.mxu0 %v1450
        %1899 = vmatprep.subr.mxu0 0.0
        %1900 = vmatpush1.msra.mxu0 %v1453
        %1901 = vmatprep.subr.mxu0 0.0
        %1902 = vmatpush1.msra.mxu0 %v1456
        %1903 = vmatprep.subr.mxu0 0.0
        %1904 = vmatpush1.msra.mxu0 %v1459
        %1905 = vmatprep.subr.mxu0 0.0
        %1906 = vmatpush1.msra.mxu0 %v1462
        %1907 = vmatprep.subr.mxu0 0.0
        %1908 = vmatpush1.msra.mxu0 %v1465
        %1909 = vmatprep.subr.mxu0 0.0
        %1910 = vmatpush1.msra.mxu0 %v1468
        %1911 = vmatprep.subr.mxu0 0.0
        %1912 = vmatpush1.msra.mxu0 %v1471
        %1913 = vmatprep.subr.mxu0 0.0
        %1914 = vmatpush1.msra.mxu0 %v1474
        %1915 = vmatprep.subr.mxu0 0.0
        %1916 = vmatpush1.msra.mxu0 %v1477
        %1917 = vmatprep.subr.mxu0 0.0
        %1918 = vmatpush1.msra.mxu0 %v1480
        %1919 = vmatprep.subr.mxu0 0.0
        %1920 = vmatpush1.msra.mxu0 %v1483
        %1921 = vmatprep.subr.mxu0 0.0
        %1922 = vmatpush1.msra.mxu0 %v1486
        %1923 = vmatprep.subr.mxu0 0.0
        %1924 = vmatpush1.msra.mxu0 %v1489
        %1925 = vmatprep.subr.mxu0 0.0
        %1926 = vmatpush1.msra.mxu0 %v1492
        %1927 = vmatprep.mubr.f32.mxu0 %v1392
        %1928 = vmatmul.mubr.f32.gmra.mrb[0].mxu0 %v1391
        %v1929 = vpop.f32.mrb[0].mxu0
        %v1930 = vadd.f32 0.0, %v1929
        %v1931 = vpop.f32.mrb[0].mxu0
        %1932 = vdwg.mxu0
        %1933 = vmatprep.subr.mxu0 0.0
        %1934 = vmatpush1.msra.mxu0 %v1495
        %1935 = vmatprep.subr.mxu0 0.0
        %1936 = vmatpush1.msra.mxu0 %v1498
        %1937 = vmatprep.subr.mxu0 0.0
        %1938 = vmatpush1.msra.mxu0 %v1501
        %1939 = vmatprep.subr.mxu0 0.0
        %1940 = vmatpush1.msra.mxu0 %v1504
        %1941 = vmatprep.subr.mxu0 0.0
        %1942 = vmatpush1.msra.mxu0 %v1507
        %1943 = vmatprep.subr.mxu0 0.0
        %1944 = vmatpush1.msra.mxu0 %v1510
        %1945 = vmatprep.subr.mxu0 0.0
        %1946 = vmatpush1.msra.mxu0 %v1513
        %1947 = vmatprep.subr.mxu0 0.0
        %1948 = vmatpush1.msra.mxu0 %v1516
        %1949 = vmatprep.subr.mxu0 0.0
        %1950 = vmatpush1.msra.mxu0 %v1519
        %1951 = vmatprep.subr.mxu0 0.0
        %1952 = vmatpush1.msra.mxu0 %v1522
        %1953 = vmatprep.subr.mxu0 0.0
        %1954 = vmatpush1.msra.mxu0 %v1525
        %1955 = vmatprep.subr.mxu0 0.0
        %1956 = vmatpush1.msra.mxu0 %v1528
        %1957 = vmatprep.subr.mxu0 0.0
        %1958 = vmatpush1.msra.mxu0 %v1531
        %1959 = vmatprep.subr.mxu0 0.0
        %1960 = vmatpush1.msra.mxu0 %v1534
        %1961 = vmatprep.subr.mxu0 0.0
        %1962 = vmatpush1.msra.mxu0 %v1537
        %1963 = vmatprep.subr.mxu0 0.0
        %1964 = vmatpush1.msra.mxu0 %v1540
        %1965 = vmatprep.subr.mxu0 0.0
        %1966 = vmatpush1.msra.mxu0 %v1543
        %1967 = vmatprep.subr.mxu0 0.0
        %1968 = vmatpush1.msra.mxu0 %v1546
        %1969 = vmatprep.subr.mxu0 0.0
        %1970 = vmatpush1.msra.mxu0 %v1549
        %1971 = vmatprep.subr.mxu0 0.0
        %1972 = vmatpush1.msra.mxu0 %v1552
        %1973 = vmatprep.subr.mxu0 0.0
        %1974 = vmatpush1.msra.mxu0 %v1555
        %1975 = vmatprep.subr.mxu0 0.0
        %1976 = vmatpush1.msra.mxu0 %v1558
        %1977 = vmatprep.subr.mxu0 0.0
        %1978 = vmatpush1.msra.mxu0 %v1561
        %1979 = vmatprep.subr.mxu0 0.0
        %1980 = vmatpush1.msra.mxu0 %v1564
        %1981 = vmatprep.subr.mxu0 0.0
        %1982 = vmatpush1.msra.mxu0 %v1567
        %1983 = vmatprep.subr.mxu0 0.0
        %1984 = vmatpush1.msra.mxu0 %v1570
        %1985 = vmatprep.subr.mxu0 0.0
        %1986 = vmatpush1.msra.mxu0 %v1573
        %1987 = vmatprep.subr.mxu0 0.0
        %1988 = vmatpush1.msra.mxu0 %v1576
        %1989 = vmatprep.subr.mxu0 0.0
        %1990 = vmatpush1.msra.mxu0 %v1579
        %1991 = vmatprep.subr.mxu0 0.0
        %1992 = vmatpush1.msra.mxu0 %v1582
        %1993 = vmatprep.subr.mxu0 0.0
        %1994 = vmatpush1.msra.mxu0 %v1585
        %1995 = vmatprep.subr.mxu0 0.0
        %1996 = vmatpush1.msra.mxu0 %v1588
        %1997 = vmatprep.mubr.f32.mxu0 %v1394
        %1998 = vmatmul.mubr.f32.gmra.mrb[0].mxu0 %v1393
        %v1999 = vpop.f32.mrb[0].mxu0
        %v2000 = vadd.f32 %v1930, %v1999
        %v2001 = vpop.f32.mrb[0].mxu0
        %2002 = vdwg.mxu0
        %2003 = vmatprep.subr.mxu0 0.0
        %2004 = vmatpush1.msra.mxu0 %v1591
        %2005 = vmatprep.subr.mxu0 0.0
        %2006 = vmatpush1.msra.mxu0 %v1594
        %2007 = vmatprep.subr.mxu0 0.0
        %2008 = vmatpush1.msra.mxu0 %v1597
        %2009 = vmatprep.subr.mxu0 0.0
        %2010 = vmatpush1.msra.mxu0 %v1600
        %2011 = vmatprep.subr.mxu0 0.0
        %2012 = vmatpush1.msra.mxu0 %v1603
        %2013 = vmatprep.subr.mxu0 0.0
        %2014 = vmatpush1.msra.mxu0 %v1606
        %2015 = vmatprep.subr.mxu0 0.0
        %2016 = vmatpush1.msra.mxu0 %v1609
        %2017 = vmatprep.subr.mxu0 0.0
        %2018 = vmatpush1.msra.mxu0 %v1612
        %2019 = vmatprep.subr.mxu0 0.0
        %2020 = vmatpush1.msra.mxu0 %v1615
        %2021 = vmatprep.subr.mxu0 0.0
        %2022 = vmatpush1.msra.mxu0 %v1618
        %2023 = vmatprep.subr.mxu0 0.0
        %2024 = vmatpush1.msra.mxu0 %v1621
        %2025 = vmatprep.subr.mxu0 0.0
        %2026 = vmatpush1.msra.mxu0 %v1624
        %2027 = vmatprep.subr.mxu0 0.0
        %2028 = vmatpush1.msra.mxu0 %v1627
        %2029 = vmatprep.subr.mxu0 0.0
        %2030 = vmatpush1.msra.mxu0 %v1630
        %2031 = vmatprep.subr.mxu0 0.0
        %2032 = vmatpush1.msra.mxu0 %v1633
        %2033 = vmatprep.subr.mxu0 0.0
        %2034 = vmatpush1.msra.mxu0 %v1636
        %2035 = vmatprep.subr.mxu0 0.0
        %2036 = vmatpush1.msra.mxu0 %v1639
        %2037 = vmatprep.subr.mxu0 0.0
        %2038 = vmatpush1.msra.mxu0 %v1642
        %2039 = vmatprep.subr.mxu0 0.0
        %2040 = vmatpush1.msra.mxu0 %v1645
        %2041 = vmatprep.subr.mxu0 0.0
        %2042 = vmatpush1.msra.mxu0 0.0
        %2043 = vmatprep.subr.mxu0 0.0
        %2044 = vmatpush1.msra.mxu0 0.0
        %2045 = vmatprep.subr.mxu0 0.0
        %2046 = vmatpush1.msra.mxu0 0.0
        %2047 = vmatprep.subr.mxu0 0.0
        %2048 = vmatpush1.msra.mxu0 0.0
        %2049 = vmatprep.subr.mxu0 0.0
        %2050 = vmatpush1.msra.mxu0 0.0
        %2051 = vmatprep.subr.mxu0 0.0
        %2052 = vmatpush1.msra.mxu0 0.0
        %2053 = vmatprep.subr.mxu0 0.0
        %2054 = vmatpush1.msra.mxu0 0.0
        %2055 = vmatprep.subr.mxu0 0.0
        %2056 = vmatpush1.msra.mxu0 0.0
        %2057 = vmatprep.subr.mxu0 0.0
        %2058 = vmatpush1.msra.mxu0 0.0
        %2059 = vmatprep.subr.mxu0 0.0
        %2060 = vmatpush1.msra.mxu0 0.0
        %2061 = vmatprep.subr.mxu0 0.0
        %2062 = vmatpush1.msra.mxu0 0.0
        %2063 = vmatprep.subr.mxu0 0.0
        %2064 = vmatpush1.msra.mxu0 0.0
        %2065 = vmatprep.subr.mxu0 0.0
        %2066 = vmatpush1.msra.mxu0 0.0
        %2067 = vmatprep.mubr.f32.mxu0 %v1648
        %2068 = vmatmul.mubr.f32.gmra.mrb[0].mxu0 %v1395
        %v2069 = vpop.f32.mrb[0].mxu0
        %v2070 = vadd.f32 %v2000, %v2069
        %v2071 = vpop.f32.mrb[0].mxu0
        %2072 = vdwg.mxu0
        %2073 = vst [vmem:[%s197] sm:$0xff] %v1859
        %2074 = vst [vmem:[%s197 + $0x8] sm:$0xff] %v1861
        %2075 = vst [vmem:[%s197 + $0x10] sm:$0xff] %v2070
        %s2076 = sand.u32 %s82, 1
        %s2077 = scalar_lea.sflag [#allocation5], %s2076
        %s2078 = sand.u32 %s82, 1
        %s2079 = smul.addr %s2078, 24
        %s2080 = scalar_lea.vmem [#allocation8], %s2079
        // Predicated region
        $region37: #{tpu_custom_call.1} parent=27 // pred_check
          %p2081 = pneg %p92
        $region38: #{tpu_custom_call.1} parent=27 // pred_check_branch
          %2083 = sbr.rel (%p2081) target = $region40
        $region39: #{tpu_custom_call.1} parent=27 // pred_region
          %s2085 = ssub.s32 384, 384
          %2086 = vsyncadd %s2077, %s2085
          %s2087 = smul.addr %s22, 3
          %s2088 = smul.addr %s2087, 128
          %s2089 = scalar_lea.hbm %s2, %s2088
          %s2091 = sshll.u32 %s2080, 4
          %s2092 = int_to_ptr.vmem [resolvable:$true] %s2091
          %2094 = dma.vmem_to_hbm [thread:$0]  %s2092, 384, %s2089, %s2077
        $region40: #{tpu_custom_call.1} parent=27 // pred_fallthru
          _
      $region28: #{tpu_custom_call.1} parent=5 // pred_fallthru
        _
      %p2095 = scmp.le.s32.totalorder 2, %s17
      // Predicated region
      $region41: #{tpu_custom_call.1} parent=5 // pred_check
        %p2096 = pneg %p2095
      $region42: #{tpu_custom_call.1} parent=5 // pred_check_branch
        %2098 = sbr.rel (%p2096) target = $region44
      $region43: #{tpu_custom_call.1} parent=5 // pred_region
        %s2099 = ssub.s32 %s17, 2
        // Predicated region
        $region45: #{tpu_custom_call.1} parent=43 // pred_check
          %p2100 = pneg %p98
        $region46: #{tpu_custom_call.1} parent=43 // pred_check_branch
          %2102 = sbr.rel (%p2100) target = $region48
        $region47: #{tpu_custom_call.1} parent=43 // pred_region
          %s2103 = sand.u32 %s83, 1
          %s2104 = scalar_lea.sflag [#allocation5], %s2103
          %s2105 = sand.u32 %s83, 1
          %s2106 = smul.addr %s2105, 24
          %s2107 = scalar_lea.vmem [#allocation8], %s2106
          %2108 = dma.done %s2104, 384
        $region48: #{tpu_custom_call.1} parent=43 // pred_fallthru
          _
      $region44: #{tpu_custom_call.1} parent=5 // pred_fallthru
        _
    $region6: #{tpu_custom_call.1} parent=1 // loop_footer
      %s21 = sadd.s32 1, %s17
    $region7: #{tpu_custom_call.1} parent=1 // loop_footer_branch
      %16 = sbr.rel target = $region3
    $region8: #{tpu_custom_call.1} parent=1 // loop_exit
      _
    %2109 = vsyncpa [#allocation4], 1
    %s2110 = scalar_lea.sflag [#allocation4], 1
    %2111 = vsyncpa %s2110, 1
    %2112 = vsyncpa [#allocation7], 1
    %s2113 = scalar_lea.sflag [#allocation7], 1
    %2114 = vsyncpa %s2113, 1
    %2115 = vsyncpa [#allocation5], 1
    %s2116 = scalar_lea.sflag [#allocation5], 1
    %2117 = vsyncpa %s2116, 1

</llo_original>
